<compile_context>
chip_gen: v7x
topology: tpu7x:2x2x1
jax: 0.10.0
libtpu: 0.0.40
codegen_flags: <defaults>
</compile_context>

<pallas_src>
import functools

import jax
import jax.numpy as jnp
from jax import lax
from jax.experimental import pallas as pl
from jax.experimental.pallas import tpu as pltpu


# ---------------------------------------------------------------------------
# Path A: whole batch resident in VMEM -> single invocation, no grid, one-pass
# BatchNorm (centered), fc1 computed exactly once, zero grid-step overhead.
# ---------------------------------------------------------------------------
def _mlp_single_kernel(x_ref, w1_ref, b1_ref, w2_ref, b2_ref, w3r_ref, b3_ref, o_ref):
    x = x_ref[...]

    # fc1 + LeakyReLU(0.1)
    h = jnp.dot(x, w1_ref[...], preferred_element_type=jnp.float32) + b1_ref[...]
    h = jnp.where(h > 0, h, 0.1 * h)

    # BatchNorm1d, training mode: batch stats, biased variance, eps=1e-5,
    # gamma=1 / beta=0 (PyTorch default init).  Whole batch is resident, so use
    # the centered form (no E[x^2]-E[x]^2 cancellation risk).
    inv_n = jnp.float32(1.0 / h.shape[0])
    mean = jnp.sum(h, axis=0, keepdims=True) * inv_n
    c = h - mean
    var = jnp.sum(c * c, axis=0, keepdims=True) * inv_n
    hn = c * lax.rsqrt(var + 1e-5)

    # fc2 + LeakyReLU(0.05)
    h2 = jnp.dot(hn, w2_ref[...], preferred_element_type=jnp.float32) + b2_ref[...]
    h2 = jnp.where(h2 > 0, h2, 0.05 * h2)

    # fc3: output width 1 -> VPU multiply + cross-lane reduce (no MXU),
    # written lane-dense as (1, B).
    o = jnp.sum(h2 * w3r_ref[...], axis=-1) + b3_ref[0]
    o_ref[...] = o.reshape(1, -1).astype(o_ref.dtype)


# ---------------------------------------------------------------------------
# Path B (large batch): two-phase grid.  Phase 0 streams x tiles through fc1,
# stashes post-activation h1 in a persistent VMEM scratch and accumulates BN
# sums; phase 1 normalizes from the stash (no fc1 recompute, no x re-stream)
# and runs fc2 / fc3.
# ---------------------------------------------------------------------------
def _mlp_tiled_kernel(x_ref, w1_ref, b1_ref, w2_ref, b2_ref, w3r_ref, b3_ref, o_ref,
                      h1_stash, sum_sc, sqsum_sc, mean_sc, rstd_sc,
                      *, total_rows, tb):
    phase = pl.program_id(0)      # 0: fc1 + stash + BN stats, 1: BN + fc2 + fc3
    tile = pl.program_id(1)       # batch-tile index
    n_tiles = pl.num_programs(1)
    row0 = pl.multiple_of(tile * tb, tb)

    @pl.when(phase == 0)
    def _fc1_and_stats():
        @pl.when(tile == 0)
        def _init():
            sum_sc[...] = jnp.zeros_like(sum_sc)
            sqsum_sc[...] = jnp.zeros_like(sqsum_sc)

        h = jnp.dot(x_ref[...], w1_ref[...],
                    preferred_element_type=jnp.float32) + b1_ref[...]
        h = jnp.where(h > 0, h, 0.1 * h)
        h1_stash[pl.ds(row0, tb), :] = h
        sum_sc[...] = sum_sc[...] + jnp.sum(h, axis=0, keepdims=True)
        sqsum_sc[...] = sqsum_sc[...] + jnp.sum(h * h, axis=0, keepdims=True)
        # NOTE: no o_ref write in phase 0 (review: the zero writeback was wasted
        # store/DMA work); output blocks are produced only in phase 1.

        @pl.when(tile == n_tiles - 1)
        def _finalize():
            inv_n = jnp.float32(1.0 / total_rows)
            mean = sum_sc[...] * inv_n
            # E[x^2] - E[x]^2 biased variance; acceptable at eps=1e-5 and the
            # 1e-4 tolerance for this parameter scale (flagged in the review).
            var = sqsum_sc[...] * inv_n - mean * mean
            mean_sc[...] = mean
            rstd_sc[...] = lax.rsqrt(var + 1e-5)

    @pl.when(phase == 1)
    def _normalize_and_project():
        h = h1_stash[pl.ds(row0, tb), :]
        hn = (h - mean_sc[...]) * rstd_sc[...]

        h2 = jnp.dot(hn, w2_ref[...], preferred_element_type=jnp.float32) + b2_ref[...]
        h2 = jnp.where(h2 > 0, h2, 0.05 * h2)

        o = jnp.sum(h2 * w3r_ref[...], axis=-1) + b3_ref[0]
        o_ref[...] = o.reshape(1, -1).astype(o_ref.dtype)


def mlp_forward(x, w1, b1, w2, b2, w3, b3, *, batch_tile=1024, force_tiled=False):
    B, in_size = x.shape
    d1 = w1.shape[1]
    d2 = w2.shape[1]

    b1r = b1.reshape(1, -1)
    b2r = b2.reshape(1, -1)
    w3r = w3.reshape(1, -1)

    weight_bytes = 4 * (in_size * d1 + d1 * d2 + 2 * d1 + 2 * d2 + 1)
    # Rough resident footprint of the single-shot path (x + fc1/fc2 activations
    # and temporaries + output), with generous slack.
    single_bytes = 4 * B * (in_size + 4 * d1 + 2 * d2 + 4) + weight_bytes

    # ---------------- Path A: single invocation, whole batch resident --------
    if not force_tiled and single_bytes <= (24 << 20):
        vmem_limit = int(min(max(4 * single_bytes, 8 << 20), 48 << 20))
        vmem_spec = pl.BlockSpec(memory_space=pltpu.MemorySpace.VMEM)
        out = pl.pallas_call(
            _mlp_single_kernel,
            out_shape=jax.ShapeDtypeStruct((1, B), jnp.float32),
            in_specs=[vmem_spec,                                       # x
                      vmem_spec,                                       # w1
                      vmem_spec,                                       # b1
                      vmem_spec,                                       # w2
                      vmem_spec,                                       # b2
                      vmem_spec,                                       # w3^T row
                      pl.BlockSpec(memory_space=pltpu.MemorySpace.SMEM)],  # b3 scalar
            out_specs=vmem_spec,
            compiler_params=pltpu.CompilerParams(vmem_limit_bytes=vmem_limit),
        )(x, w1, b1r, w2, b2r, w3r, b3)
        return out.reshape(B, 1)

    # ---------------- Path B: two-phase, batch-tiled, h1 stashed in VMEM -----
    tb = int(min(batch_tile, B))
    assert B % tb == 0, "batch must be divisible by the batch tile"
    assert tb % 8 == 0 or tb == B, "batch tile must be a multiple of 8 (sublane)"
    # Lane-dense (1, B) output with (1, tb) blocks needs tb % 128 == 0 or tb == B.
    assert tb % 128 == 0 or tb == B
    n_tiles = B // tb

    stash_bytes = 4 * B * d1
    assert stash_bytes <= (40 << 20), (
        "h1 stash exceeds the conservative cross-generation VMEM budget")
    # TODO(synk): for batches where the (B, h1) stash no longer fits VMEM, fall
    # back to re-streaming x / recomputing fc1 in phase 1 (original design).
    est_bytes = stash_bytes + 2 * 4 * tb * in_size + 2 * weight_bytes + (1 << 20)
    vmem_limit = int(min(max(2 * est_bytes, 16 << 20), 48 << 20))

    const = lambda shape: pl.BlockSpec(shape, lambda p, i: (0, 0))

    out = pl.pallas_call(
        functools.partial(_mlp_tiled_kernel, total_rows=B, tb=tb),
        out_shape=jax.ShapeDtypeStruct((1, B), jnp.float32),
        grid_spec=pltpu.PrefetchScalarGridSpec(
            num_scalar_prefetch=0,
            grid=(2, n_tiles),                  # (phase, batch tile)
            in_specs=[
                # x: advance by tile in phase 0; pinned to block 0 in phase 1 so
                # it is not re-streamed from HBM (phase 1 reads the h1 stash).
                pl.BlockSpec((tb, in_size), lambda p, i: (i * (1 - p), 0)),
                const((in_size, d1)),                                 # w1
                const((1, d1)),                                       # b1
                const((d1, d2)),                                      # w2
                const((1, d2)),                                       # b2
                const((1, d2)),                                       # w3^T row
                pl.BlockSpec(memory_space=pltpu.MemorySpace.SMEM),    # b3 scalar
            ],
            out_specs=pl.BlockSpec((1, tb), lambda p, i: (0, i)),
            scratch_shapes=[
                pltpu.VMEM((B, d1), jnp.float32),   # h1 stash (post-LeakyReLU)
                pltpu.VMEM((1, d1), jnp.float32),   # per-feature sum
                pltpu.VMEM((1, d1), jnp.float32),   # per-feature sum of squares
                pltpu.VMEM((1, d1), jnp.float32),   # mean
                pltpu.VMEM((1, d1), jnp.float32),   # rsqrt(var + eps)
            ],
        ),
        compiler_params=pltpu.CompilerParams(
            # BN stats accumulate sequentially across batch tiles and must be
            # complete before phase 1 -> both axes "arbitrary".
            dimension_semantics=("arbitrary", "arbitrary"),
            vmem_limit_bytes=vmem_limit,
        ),
    )(x, w1, b1r, w2, b2r, w3r, b3)

    return out.reshape(B, 1)


def mlp_reference(x, w1, b1, w2, b2, w3, b3):
    h = x @ w1 + b1
    h = jnp.where(h > 0, h, 0.1 * h)
    mean = jnp.mean(h, axis=0, keepdims=True)
    var = jnp.var(h, axis=0, keepdims=True)
    h = (h - mean) / jnp.sqrt(var + 1e-5)
    h = h @ w2 + b2
    h = jnp.where(h > 0, h, 0.05 * h)
    return h @ w3 + b3


if __name__ == "__main__":
    # batch.trans_poi flattened to (batch_size, input_size).
    B, INPUT, H1, H2 = 256, 32, 32, 16

    key = jax.random.PRNGKey(0)
    kx, k1, k2, k3, kb1, kb2, kb3 = jax.random.split(key, 7)

    x = jax.random.normal(kx, (B, INPUT), dtype=jnp.float32)

    # Deterministic parameter init (uniform, roughly matching nn.Linear scale).
    def init_linear(kw, kb, fan_in, fan_out):
        bound = 1.0 / (fan_in ** 0.5)
        w = jax.random.uniform(kw, (fan_in, fan_out), jnp.float32, -bound, bound)
        b = jax.random.uniform(kb, (fan_out,), jnp.float32, -bound, bound)
        return w, b

    w1, b1 = init_linear(k1, kb1, INPUT, H1)
    w2, b2 = init_linear(k2, kb2, H1, H2)
    w3, b3 = init_linear(k3, kb3, H2, 1)

    ref = mlp_reference(x, w1, b1, w2, b2, w3, b3)

    # Primary path: single-shot kernel (batch resident in VMEM).
    out = jax.block_until_ready(mlp_forward(x, w1, b1, w2, b2, w3, b3))
    assert out.shape == (B, 1)
    assert jnp.allclose(out, ref, atol=1e-4, rtol=1e-4)

    # Large-batch fallback path: two-phase tiled kernel with the h1 VMEM stash
    # (forced here on the same small inputs to validate it end-to-end).
    out_tiled = jax.block_until_ready(
        mlp_forward(x, w1, b1, w2, b2, w3, b3, batch_tile=128, force_tiled=True))
    assert out_tiled.shape == (B, 1)
    assert jnp.allclose(out_tiled, ref, atol=1e-4, rtol=1e-4)

    print("KERNEL_OK")
</pallas_src>

<mosaic_0001>
module attributes {stable_mosaic.version = 11 : i64} {
  func.func @_mlp_single_kernel(%arg0: memref<256x32xf32, #tpu.memory_space<vmem>>, %arg1: memref<32x32xf32, #tpu.memory_space<vmem>>, %arg2: memref<1x32xf32, #tpu.memory_space<vmem>>, %arg3: memref<32x16xf32, #tpu.memory_space<vmem>>, %arg4: memref<1x16xf32, #tpu.memory_space<vmem>>, %arg5: memref<1x16xf32, #tpu.memory_space<vmem>>, %arg6: memref<1xf32, #tpu.memory_space<smem>>, %arg7: memref<1x256xf32, #tpu.memory_space<vmem>>) attributes {dimension_semantics = [], scalar_prefetch = 0 : i64, scratch_operands = 0 : i64, tpu.core_type = #tpu.core_type<tc>} {
    %c0 = arith.constant 0 : index
    %c0_0 = arith.constant 0 : index
    %0 = vector.load %arg0[%c0, %c0_0] : memref<256x32xf32, #tpu.memory_space<vmem>>, vector<256x32xf32>
    %c0_1 = arith.constant 0 : index
    %c0_2 = arith.constant 0 : index
    %1 = vector.load %arg1[%c0_1, %c0_2] : memref<32x32xf32, #tpu.memory_space<vmem>>, vector<32x32xf32>
    %cst = arith.constant dense<0.000000e+00> : vector<256x32xf32>
    %2 = tpu.matmul %0, %1, %cst {dimension_numbers = #tpu.dot_dimension_numbers<[1], [0], [0], [1], [0, 0, 1, 1], [], []>} : vector<256x32xf32>, vector<32x32xf32>, vector<256x32xf32> -> vector<256x32xf32>
    %c0_3 = arith.constant 0 : index
    %c0_4 = arith.constant 0 : index
    %3 = vector.load %arg2[%c0_3, %c0_4] : memref<1x32xf32, #tpu.memory_space<vmem>>, vector<1x32xf32>
    %4 = vector.broadcast %3 : vector<1x32xf32> to vector<256x32xf32>
    %5 = arith.addf %2, %4 : vector<256x32xf32>
    %cst_5 = arith.constant 0.000000e+00 : f32
    %6 = vector.broadcast %cst_5 : f32 to vector<256x32xf32>
    %7 = arith.cmpf ogt, %5, %6 : vector<256x32xf32>
    %cst_6 = arith.constant 1.000000e-01 : f32
    %8 = vector.broadcast %cst_6 : f32 to vector<256x32xf32>
    %9 = arith.mulf %8, %5 : vector<256x32xf32>
    %10 = arith.select %7, %5, %9 : vector<256x32xi1>, vector<256x32xf32>
    %cst_7 = arith.constant dense<0.000000e+00> : vector<32xf32>
    %11 = vector.multi_reduction <add>, %10, %cst_7 [0] : vector<256x32xf32> to vector<32xf32>
    %12 = vector.shape_cast %11 : vector<32xf32> to vector<1x32xf32>
    %cst_8 = arith.constant 3.906250e-03 : f32
    %13 = vector.broadcast %cst_8 : f32 to vector<1x32xf32>
    %14 = arith.mulf %12, %13 : vector<1x32xf32>
    %15 = vector.broadcast %14 : vector<1x32xf32> to vector<256x32xf32>
    %16 = arith.subf %10, %15 : vector<256x32xf32>
    %17 = arith.mulf %16, %16 : vector<256x32xf32>
    %cst_9 = arith.constant dense<0.000000e+00> : vector<32xf32>
    %18 = vector.multi_reduction <add>, %17, %cst_9 [0] : vector<256x32xf32> to vector<32xf32>
    %19 = vector.shape_cast %18 : vector<32xf32> to vector<1x32xf32>
    %cst_10 = arith.constant 3.906250e-03 : f32
    %20 = vector.broadcast %cst_10 : f32 to vector<1x32xf32>
    %21 = arith.mulf %19, %20 : vector<1x32xf32>
    %cst_11 = arith.constant 9.99999974E-6 : f32
    %22 = vector.broadcast %cst_11 : f32 to vector<1x32xf32>
    %23 = arith.addf %21, %22 : vector<1x32xf32>
    %24 = math.rsqrt %23 : vector<1x32xf32>
    %25 = vector.broadcast %24 : vector<1x32xf32> to vector<256x32xf32>
    %26 = arith.mulf %16, %25 : vector<256x32xf32>
    %c0_12 = arith.constant 0 : index
    %c0_13 = arith.constant 0 : index
    %27 = vector.load %arg3[%c0_12, %c0_13] : memref<32x16xf32, #tpu.memory_space<vmem>>, vector<32x16xf32>
    %cst_14 = arith.constant dense<0.000000e+00> : vector<256x16xf32>
    %28 = tpu.matmul %26, %27, %cst_14 {dimension_numbers = #tpu.dot_dimension_numbers<[1], [0], [0], [1], [0, 0, 1, 1], [], []>} : vector<256x32xf32>, vector<32x16xf32>, vector<256x16xf32> -> vector<256x16xf32>
    %c0_15 = arith.constant 0 : index
    %c0_16 = arith.constant 0 : index
    %29 = vector.load %arg4[%c0_15, %c0_16] : memref<1x16xf32, #tpu.memory_space<vmem>>, vector<1x16xf32>
    %30 = vector.broadcast %29 : vector<1x16xf32> to vector<256x16xf32>
    %31 = arith.addf %28, %30 : vector<256x16xf32>
    %cst_17 = arith.constant 0.000000e+00 : f32
    %32 = vector.broadcast %cst_17 : f32 to vector<256x16xf32>
    %33 = arith.cmpf ogt, %31, %32 : vector<256x16xf32>
    %cst_18 = arith.constant 5.000000e-02 : f32
    %34 = vector.broadcast %cst_18 : f32 to vector<256x16xf32>
    %35 = arith.mulf %34, %31 : vector<256x16xf32>
    %36 = arith.select %33, %31, %35 : vector<256x16xi1>, vector<256x16xf32>
    %c0_19 = arith.constant 0 : index
    %c0_20 = arith.constant 0 : index
    %37 = vector.load %arg5[%c0_19, %c0_20] : memref<1x16xf32, #tpu.memory_space<vmem>>, vector<1x16xf32>
    %38 = vector.broadcast %37 : vector<1x16xf32> to vector<256x16xf32>
    %39 = arith.mulf %36, %38 : vector<256x16xf32>
    %cst_21 = arith.constant dense<0.000000e+00> : vector<256xf32>
    %40 = vector.multi_reduction <add>, %39, %cst_21 [1] : vector<256x16xf32> to vector<256xf32>
    %c0_22 = arith.constant 0 : index
    %41 = memref.load %arg6[%c0_22] : memref<1xf32, #tpu.memory_space<smem>>
    %42 = vector.broadcast %41 : f32 to vector<256xf32>
    %43 = arith.addf %40, %42 : vector<256xf32>
    %44 = vector.shape_cast %43 : vector<256xf32> to vector<1x256xf32>
    %c0_23 = arith.constant 0 : index
    %c0_24 = arith.constant 0 : index
    %45 = vector.load %arg7[%c0_23, %c0_24] : memref<1x256xf32, #tpu.memory_space<vmem>>, vector<1x256xf32>
    tpu.vector_store %arg7[%c0_23, %c0_24], %44 {strides = array<i32>} : memref<1x256xf32, #tpu.memory_space<vmem>>, vector<1x256xf32>,
    return
  }
}

</mosaic_0001>

<llo_original>
// kernel: tpu_custom_call.1
$region0: #{tpu_custom_call.1}
  #allocation0 [shape = 'u32[]', space=smem, size = 0x4, offset = 0x4, fixed_abs, tag = 'smem constant byte address 0x4 - core index']
  #allocation1 [shape = 'u32[144,128]{1,0:T(1,128)}', space=vmem, size = 0x12000, scoped, tag = 'internal scratch']
  #allocation2 [shape = 'f32[1]{0:T(128)S(6)}', space=smem, size = 0x200, scoped, tag = 'scoped memory for tpu_custom_call.1']
  %s0 = inlined_call_operand.vmem [shape: f32[256,32], index: 0, kind: input, shape index: {}]
  %s1 = inlined_call_operand.vmem [shape: f32[32,32], index: 1, kind: input, shape index: {}]
  %s2 = inlined_call_operand.vmem [shape: f32[1,32], index: 2, kind: input, shape index: {}]
  %s3 = inlined_call_operand.vmem [shape: f32[32,16], index: 3, kind: input, shape index: {}]
  %s4 = inlined_call_operand.vmem [shape: f32[1,16], index: 4, kind: input, shape index: {}]
  %s5 = inlined_call_operand.vmem [shape: f32[1,16], index: 5, kind: input, shape index: {}]
  %s6 = inlined_call_operand.<no memory space> [shape: f32[1], index: 6, kind: input, shape index: {}]
  %s7 = inlined_call_operand.hbm [shape: f32[1,256], index: 7, kind: output, shape index: {}]
  %s8 = sld [smem:[#allocation0]]
  $region38: #{tpu_custom_call.1} parent=0
    _
  %s10 = ssub.s32 1, %s8
  %s11 = scalar_select 0, %s10, %s8
  %12 = sst [smem:[#allocation2]] %s6
  $region1: #{tpu_custom_call.1} parent=0
    #allocation3 [shape = 'u8[1024]{0}', space=vmem, size = 0x400, scoped, tag = 'output window, operand 0, single buffered']
    #allocation4 [shape = 's32[1]{0}', space=sflag, size = 0x4, scoped, tag = 'scoped memory for tpu_custom_call.1']
    %13 = vsyncpa [#allocation4], 0
    // Predicated region
    $region2: #{tpu_custom_call.1} parent=1 // pred_check
      _
    $region3: #{tpu_custom_call.1} parent=1 // pred_check_branch
      %15 = sbr.rel (0) target = $region5
    $region4: #{tpu_custom_call.1} parent=1 // pred_region
      _
    $region5: #{tpu_custom_call.1} parent=1 // pred_fallthru
      _
    // Predicated region
    $region6: #{tpu_custom_call.1} parent=1 // pred_check
      _
    $region7: #{tpu_custom_call.1} parent=1 // pred_check_branch
      %17 = sbr.rel (0) target = $region9
    $region8: #{tpu_custom_call.1} parent=1 // pred_region
      _
    $region9: #{tpu_custom_call.1} parent=1 // pred_fallthru
      _
    // Predicated region
    $region10: #{tpu_custom_call.1} parent=1 // pred_check
      _
    $region11: #{tpu_custom_call.1} parent=1 // pred_check_branch
      %19 = sbr.rel (0) target = $region13
    $region12: #{tpu_custom_call.1} parent=1 // pred_region
      _
    $region13: #{tpu_custom_call.1} parent=1 // pred_fallthru
      _
    // Predicated region
    $region14: #{tpu_custom_call.1} parent=1 // pred_check
      _
    $region15: #{tpu_custom_call.1} parent=1 // pred_check_branch
      %21 = sbr.rel (0) target = $region17
    $region16: #{tpu_custom_call.1} parent=1 // pred_region
      _
    $region17: #{tpu_custom_call.1} parent=1 // pred_fallthru
      _
    // Predicated region
    $region18: #{tpu_custom_call.1} parent=1 // pred_check
      _
    $region19: #{tpu_custom_call.1} parent=1 // pred_check_branch
      %23 = sbr.rel (0) target = $region21
    $region20: #{tpu_custom_call.1} parent=1 // pred_region
      _
    $region21: #{tpu_custom_call.1} parent=1 // pred_fallthru
      _
    // Predicated region
    $region22: #{tpu_custom_call.1} parent=1 // pred_check
      _
    $region23: #{tpu_custom_call.1} parent=1 // pred_check_branch
      %25 = sbr.rel (0) target = $region25
    $region24: #{tpu_custom_call.1} parent=1 // pred_region
      _
    $region25: #{tpu_custom_call.1} parent=1 // pred_fallthru
      _
    // Predicated region
    $region26: #{tpu_custom_call.1} parent=1 // pred_check
      _
    $region27: #{tpu_custom_call.1} parent=1 // pred_check_branch
      %27 = sbr.rel (0) target = $region29
    $region28: #{tpu_custom_call.1} parent=1 // pred_region
      _
    $region29: #{tpu_custom_call.1} parent=1 // pred_fallthru
      _
    %v28 = vld [vmem:[%s0] sm:$0xff]
    %v29 = vld [vmem:[%s0 + $0x8] sm:$0xff]
    %v30 = vld [vmem:[%s0 + $0x10] sm:$0xff]
    %v31 = vld [vmem:[%s0 + $0x18] sm:$0xff]
    %v32 = vld [vmem:[%s0 + $0x20] sm:$0xff]
    %v33 = vld [vmem:[%s0 + $0x28] sm:$0xff]
    %v34 = vld [vmem:[%s0 + $0x30] sm:$0xff]
    %v35 = vld [vmem:[%s0 + $0x38] sm:$0xff]
    %v36 = vld [vmem:[%s0 + $0x40] sm:$0xff]
    %v37 = vld [vmem:[%s0 + $0x48] sm:$0xff]
    %v38 = vld [vmem:[%s0 + $0x50] sm:$0xff]
    %v39 = vld [vmem:[%s0 + $0x58] sm:$0xff]
    %v40 = vld [vmem:[%s0 + $0x60] sm:$0xff]
    %v41 = vld [vmem:[%s0 + $0x68] sm:$0xff]
    %v42 = vld [vmem:[%s0 + $0x70] sm:$0xff]
    %v43 = vld [vmem:[%s0 + $0x78] sm:$0xff]
    %v44 = vld [vmem:[%s0 + $0x80] sm:$0xff]
    %v45 = vld [vmem:[%s0 + $0x88] sm:$0xff]
    %v46 = vld [vmem:[%s0 + $0x90] sm:$0xff]
    %v47 = vld [vmem:[%s0 + $0x98] sm:$0xff]
    %v48 = vld [vmem:[%s0 + $0xa0] sm:$0xff]
    %v49 = vld [vmem:[%s0 + $0xa8] sm:$0xff]
    %v50 = vld [vmem:[%s0 + $0xb0] sm:$0xff]
    %v51 = vld [vmem:[%s0 + $0xb8] sm:$0xff]
    %v52 = vld [vmem:[%s0 + $0xc0] sm:$0xff]
    %v53 = vld [vmem:[%s0 + $0xc8] sm:$0xff]
    %v54 = vld [vmem:[%s0 + $0xd0] sm:$0xff]
    %v55 = vld [vmem:[%s0 + $0xd8] sm:$0xff]
    %v56 = vld [vmem:[%s0 + $0xe0] sm:$0xff]
    %v57 = vld [vmem:[%s0 + $0xe8] sm:$0xff]
    %v58 = vld [vmem:[%s0 + $0xf0] sm:$0xff]
    %v59 = vld [vmem:[%s0 + $0xf8] sm:$0xff]
    %v60 = vld [vmem:[%s1] sm:$0xff]
    %v61 = vld [vmem:[%s1 + $0x8] sm:$0xff]
    %v62 = vld [vmem:[%s1 + $0x10] sm:$0xff]
    %v63 = vld [vmem:[%s1 + $0x18] sm:$0xff]
    %v64 = vld [vmem:[%s2] sm:$0x1]
    %v66 = vlaneseq
    %v67 = vshrl.u32 %v66, 7
    %v68 = vsub.s32 0, %v67
    %v69 = vrot.slane %v64, %v68
    %vm71 = vcmask 261120
    %v73 = vsel %vm71, %v28, 0
    %v76 = vsel %vm71, %v29, 0
    %v79 = vsel %vm71, %v30, 0
    %v82 = vsel %vm71, %v31, 0
    %v85 = vsel %vm71, %v32, 0
    %v88 = vsel %vm71, %v33, 0
    %v91 = vsel %vm71, %v34, 0
    %v94 = vsel %vm71, %v35, 0
    %v97 = vsel %vm71, %v36, 0
    %v100 = vsel %vm71, %v37, 0
    %v103 = vsel %vm71, %v38, 0
    %v106 = vsel %vm71, %v39, 0
    %v109 = vsel %vm71, %v40, 0
    %v112 = vsel %vm71, %v41, 0
    %v115 = vsel %vm71, %v42, 0
    %v118 = vsel %vm71, %v43, 0
    %v121 = vsel %vm71, %v44, 0
    %v124 = vsel %vm71, %v45, 0
    %v127 = vsel %vm71, %v46, 0
    %v130 = vsel %vm71, %v47, 0
    %v133 = vsel %vm71, %v48, 0
    %v136 = vsel %vm71, %v49, 0
    %v139 = vsel %vm71, %v50, 0
    %v142 = vsel %vm71, %v51, 0
    %v145 = vsel %vm71, %v52, 0
    %v148 = vsel %vm71, %v53, 0
    %v151 = vsel %vm71, %v54, 0
    %v154 = vsel %vm71, %v55, 0
    %v157 = vsel %vm71, %v56, 0
    %v160 = vsel %vm71, %v57, 0
    %v163 = vsel %vm71, %v58, 0
    %v166 = vsel %vm71, %v59, 0
    %168 = vmatprep.subr.mxu0 0.0
    %169 = vmatpush1.msra.mxu0 %v60
    %170 = vmatprep.subr.mxu0 0.0
    %171 = vmatpush1.msra.mxu0 %v61
    %172 = vmatprep.subr.mxu0 0.0
    %173 = vmatpush1.msra.mxu0 %v62
    %174 = vmatprep.subr.mxu0 0.0
    %175 = vmatpush1.msra.mxu0 %v63
    %176 = vmatprep.subr.mxu0 0.0
    %177 = vmatpush1.msra.mxu0 0.0
    %178 = vmatprep.subr.mxu0 0.0
    %179 = vmatpush1.msra.mxu0 0.0
    %180 = vmatprep.subr.mxu0 0.0
    %181 = vmatpush1.msra.mxu0 0.0
    %182 = vmatprep.subr.mxu0 0.0
    %183 = vmatpush1.msra.mxu0 0.0
    %184 = vmatprep.subr.mxu0 0.0
    %185 = vmatpush1.msra.mxu0 0.0
    %186 = vmatprep.subr.mxu0 0.0
    %187 = vmatpush1.msra.mxu0 0.0
    %188 = vmatprep.subr.mxu0 0.0
    %189 = vmatpush1.msra.mxu0 0.0
    %190 = vmatprep.subr.mxu0 0.0
    %191 = vmatpush1.msra.mxu0 0.0
    %192 = vmatprep.subr.mxu0 0.0
    %193 = vmatpush1.msra.mxu0 0.0
    %194 = vmatprep.subr.mxu0 0.0
    %195 = vmatpush1.msra.mxu0 0.0
    %196 = vmatprep.subr.mxu0 0.0
    %197 = vmatpush1.msra.mxu0 0.0
    %198 = vmatprep.subr.mxu0 0.0
    %199 = vmatpush1.msra.mxu0 0.0
    %200 = vmatprep.subr.mxu0 0.0
    %201 = vmatpush1.msra.mxu0 0.0
    %202 = vmatprep.subr.mxu0 0.0
    %203 = vmatpush1.msra.mxu0 0.0
    %204 = vmatprep.subr.mxu0 0.0
    %205 = vmatpush1.msra.mxu0 0.0
    %206 = vmatprep.subr.mxu0 0.0
    %207 = vmatpush1.msra.mxu0 0.0
    %208 = vmatprep.subr.mxu0 0.0
    %209 = vmatpush1.msra.mxu0 0.0
    %210 = vmatprep.subr.mxu0 0.0
    %211 = vmatpush1.msra.mxu0 0.0
    %212 = vmatprep.subr.mxu0 0.0
    %213 = vmatpush1.msra.mxu0 0.0
    %214 = vmatprep.subr.mxu0 0.0
    %215 = vmatpush1.msra.mxu0 0.0
    %216 = vmatprep.subr.mxu0 0.0
    %217 = vmatpush1.msra.mxu0 0.0
    %218 = vmatprep.subr.mxu0 0.0
    %219 = vmatpush1.msra.mxu0 0.0
    %220 = vmatprep.subr.mxu0 0.0
    %221 = vmatpush1.msra.mxu0 0.0
    %222 = vmatprep.subr.mxu0 0.0
    %223 = vmatpush1.msra.mxu0 0.0
    %224 = vmatprep.subr.mxu0 0.0
    %225 = vmatpush1.msra.mxu0 0.0
    %226 = vmatprep.subr.mxu0 0.0
    %227 = vmatpush1.msra.mxu0 0.0
    %228 = vmatprep.subr.mxu0 0.0
    %229 = vmatpush1.msra.mxu0 0.0
    %230 = vmatprep.subr.mxu0 0.0
    %231 = vmatpush1.msra.mxu0 0.0
    %232 = vmatprep.mubr.f32.mxu0 0.0
    %233 = vmatmul.mubr.f32.gmra.mrb[0].mxu0 %v73
    %v234 = vpop.f32.mrb[0].mxu0
    %v235 = vadd.f32 %v69, %v234
    %v236 = vpop.f32.mrb[0].mxu0
    %237 = vmatprep.mubr.f32.mxu0 0.0
    %238 = vmatmul.mubr.f32.gmra.mrb[0].mxu0 %v76
    %v239 = vpop.f32.mrb[0].mxu0
    %v240 = vadd.f32 %v69, %v239
    %v241 = vpop.f32.mrb[0].mxu0
    %242 = vmatprep.mubr.f32.mxu0 0.0
    %243 = vmatmul.mubr.f32.gmra.mrb[0].mxu0 %v79
    %v244 = vpop.f32.mrb[0].mxu0
    %v245 = vadd.f32 %v69, %v244
    %v246 = vpop.f32.mrb[0].mxu0
    %247 = vmatprep.mubr.f32.mxu0 0.0
    %248 = vmatmul.mubr.f32.gmra.mrb[0].mxu0 %v82
    %v249 = vpop.f32.mrb[0].mxu0
    %v250 = vadd.f32 %v69, %v249
    %v251 = vpop.f32.mrb[0].mxu0
    %252 = vmatprep.mubr.f32.mxu0 0.0
    %253 = vmatmul.mubr.f32.gmra.mrb[0].mxu0 %v85
    %v254 = vpop.f32.mrb[0].mxu0
    %v255 = vadd.f32 %v69, %v254
    %v256 = vpop.f32.mrb[0].mxu0
    %257 = vmatprep.mubr.f32.mxu0 0.0
    %258 = vmatmul.mubr.f32.gmra.mrb[0].mxu0 %v88
    %v259 = vpop.f32.mrb[0].mxu0
    %v260 = vadd.f32 %v69, %v259
    %v261 = vpop.f32.mrb[0].mxu0
    %262 = vmatprep.mubr.f32.mxu0 0.0
    %263 = vmatmul.mubr.f32.gmra.mrb[0].mxu0 %v91
    %v264 = vpop.f32.mrb[0].mxu0
    %v265 = vadd.f32 %v69, %v264
    %v266 = vpop.f32.mrb[0].mxu0
    %267 = vmatprep.mubr.f32.mxu0 0.0
    %268 = vmatmul.mubr.f32.gmra.mrb[0].mxu0 %v94
    %v269 = vpop.f32.mrb[0].mxu0
    %v270 = vadd.f32 %v69, %v269
    %v271 = vpop.f32.mrb[0].mxu0
    %272 = vmatprep.mubr.f32.mxu0 0.0
    %273 = vmatmul.mubr.f32.gmra.mrb[0].mxu0 %v97
    %v274 = vpop.f32.mrb[0].mxu0
    %v275 = vadd.f32 %v69, %v274
    %v276 = vpop.f32.mrb[0].mxu0
    %277 = vmatprep.mubr.f32.mxu0 0.0
    %278 = vmatmul.mubr.f32.gmra.mrb[0].mxu0 %v100
    %v279 = vpop.f32.mrb[0].mxu0
    %v280 = vadd.f32 %v69, %v279
    %v281 = vpop.f32.mrb[0].mxu0
    %282 = vmatprep.mubr.f32.mxu0 0.0
    %283 = vmatmul.mubr.f32.gmra.mrb[0].mxu0 %v103
    %v284 = vpop.f32.mrb[0].mxu0
    %v285 = vadd.f32 %v69, %v284
    %v286 = vpop.f32.mrb[0].mxu0
    %287 = vmatprep.mubr.f32.mxu0 0.0
    %288 = vmatmul.mubr.f32.gmra.mrb[0].mxu0 %v106
    %v289 = vpop.f32.mrb[0].mxu0
    %v290 = vadd.f32 %v69, %v289
    %v291 = vpop.f32.mrb[0].mxu0
    %292 = vmatprep.mubr.f32.mxu0 0.0
    %293 = vmatmul.mubr.f32.gmra.mrb[0].mxu0 %v109
    %v294 = vpop.f32.mrb[0].mxu0
    %v295 = vadd.f32 %v69, %v294
    %v296 = vpop.f32.mrb[0].mxu0
    %297 = vmatprep.mubr.f32.mxu0 0.0
    %298 = vmatmul.mubr.f32.gmra.mrb[0].mxu0 %v112
    %v299 = vpop.f32.mrb[0].mxu0
    %v300 = vadd.f32 %v69, %v299
    %v301 = vpop.f32.mrb[0].mxu0
    %302 = vmatprep.mubr.f32.mxu0 0.0
    %303 = vmatmul.mubr.f32.gmra.mrb[0].mxu0 %v115
    %v304 = vpop.f32.mrb[0].mxu0
    %v305 = vadd.f32 %v69, %v304
    %v306 = vpop.f32.mrb[0].mxu0
    %307 = vmatprep.mubr.f32.mxu0 0.0
    %308 = vmatmul.mubr.f32.gmra.mrb[0].mxu0 %v118
    %v309 = vpop.f32.mrb[0].mxu0
    %v310 = vadd.f32 %v69, %v309
    %v311 = vpop.f32.mrb[0].mxu0
    %312 = vmatprep.mubr.f32.mxu0 0.0
    %313 = vmatmul.mubr.f32.gmra.mrb[0].mxu0 %v121
    %v314 = vpop.f32.mrb[0].mxu0
    %v315 = vadd.f32 %v69, %v314
    %v316 = vpop.f32.mrb[0].mxu0
    %317 = vmatprep.mubr.f32.mxu0 0.0
    %318 = vmatmul.mubr.f32.gmra.mrb[0].mxu0 %v124
    %v319 = vpop.f32.mrb[0].mxu0
    %v320 = vadd.f32 %v69, %v319
    %v321 = vpop.f32.mrb[0].mxu0
    %322 = vmatprep.mubr.f32.mxu0 0.0
    %323 = vmatmul.mubr.f32.gmra.mrb[0].mxu0 %v127
    %v324 = vpop.f32.mrb[0].mxu0
    %v325 = vadd.f32 %v69, %v324
    %v326 = vpop.f32.mrb[0].mxu0
    %327 = vmatprep.mubr.f32.mxu0 0.0
    %328 = vmatmul.mubr.f32.gmra.mrb[0].mxu0 %v130
    %v329 = vpop.f32.mrb[0].mxu0
    %v330 = vadd.f32 %v69, %v329
    %v331 = vpop.f32.mrb[0].mxu0
    %332 = vmatprep.mubr.f32.mxu0 0.0
    %333 = vmatmul.mubr.f32.gmra.mrb[0].mxu0 %v133
    %v334 = vpop.f32.mrb[0].mxu0
    %v335 = vadd.f32 %v69, %v334
    %v336 = vpop.f32.mrb[0].mxu0
    %337 = vmatprep.mubr.f32.mxu0 0.0
    %338 = vmatmul.mubr.f32.gmra.mrb[0].mxu0 %v136
    %v339 = vpop.f32.mrb[0].mxu0
    %v340 = vadd.f32 %v69, %v339
    %v341 = vpop.f32.mrb[0].mxu0
    %342 = vmatprep.mubr.f32.mxu0 0.0
    %343 = vmatmul.mubr.f32.gmra.mrb[0].mxu0 %v139
    %v344 = vpop.f32.mrb[0].mxu0
    %v345 = vadd.f32 %v69, %v344
    %v346 = vpop.f32.mrb[0].mxu0
    %347 = vmatprep.mubr.f32.mxu0 0.0
    %348 = vmatmul.mubr.f32.gmra.mrb[0].mxu0 %v142
    %v349 = vpop.f32.mrb[0].mxu0
    %v350 = vadd.f32 %v69, %v349
    %v351 = vpop.f32.mrb[0].mxu0
    %352 = vmatprep.mubr.f32.mxu0 0.0
    %353 = vmatmul.mubr.f32.gmra.mrb[0].mxu0 %v145
    %v354 = vpop.f32.mrb[0].mxu0
    %v355 = vadd.f32 %v69, %v354
    %v356 = vpop.f32.mrb[0].mxu0
    %357 = vmatprep.mubr.f32.mxu0 0.0
    %358 = vmatmul.mubr.f32.gmra.mrb[0].mxu0 %v148
    %v359 = vpop.f32.mrb[0].mxu0
    %v360 = vadd.f32 %v69, %v359
    %v361 = vpop.f32.mrb[0].mxu0
    %362 = vmatprep.mubr.f32.mxu0 0.0
    %363 = vmatmul.mubr.f32.gmra.mrb[0].mxu0 %v151
    %v364 = vpop.f32.mrb[0].mxu0
    %v365 = vadd.f32 %v69, %v364
    %v366 = vpop.f32.mrb[0].mxu0
    %367 = vmatprep.mubr.f32.mxu0 0.0
    %368 = vmatmul.mubr.f32.gmra.mrb[0].mxu0 %v154
    %v369 = vpop.f32.mrb[0].mxu0
    %v370 = vadd.f32 %v69, %v369
    %v371 = vpop.f32.mrb[0].mxu0
    %372 = vmatprep.mubr.f32.mxu0 0.0
    %373 = vmatmul.mubr.f32.gmra.mrb[0].mxu0 %v157
    %v374 = vpop.f32.mrb[0].mxu0
    %v375 = vadd.f32 %v69, %v374
    %v376 = vpop.f32.mrb[0].mxu0
    %377 = vmatprep.mubr.f32.mxu0 0.0
    %378 = vmatmul.mubr.f32.gmra.mrb[0].mxu0 %v160
    %v379 = vpop.f32.mrb[0].mxu0
    %v380 = vadd.f32 %v69, %v379
    %v381 = vpop.f32.mrb[0].mxu0
    %382 = vmatprep.mubr.f32.mxu0 0.0
    %383 = vmatmul.mubr.f32.gmra.mrb[0].mxu0 %v163
    %v384 = vpop.f32.mrb[0].mxu0
    %v385 = vadd.f32 %v69, %v384
    %v386 = vpop.f32.mrb[0].mxu0
    %387 = vmatprep.mubr.f32.mxu0 0.0
    %388 = vmatmul.mubr.f32.gmra.mrb[0].mxu0 %v166
    %v389 = vpop.f32.mrb[0].mxu0
    %v390 = vadd.f32 %v69, %v389
    %v391 = vpop.f32.mrb[0].mxu0
    %392 = vdwg.mxu0
    %vm393 = vcmp.gt.f32.partialorder %v235, 0.0
    %vm394 = vcmp.gt.f32.partialorder %v240, 0.0
    %vm395 = vcmp.gt.f32.partialorder %v245, 0.0
    %vm396 = vcmp.gt.f32.partialorder %v250, 0.0
    %vm397 = vcmp.gt.f32.partialorder %v255, 0.0
    %vm398 = vcmp.gt.f32.partialorder %v260, 0.0
    %vm399 = vcmp.gt.f32.partialorder %v265, 0.0
    %vm400 = vcmp.gt.f32.partialorder %v270, 0.0
    %vm401 = vcmp.gt.f32.partialorder %v275, 0.0
    %vm402 = vcmp.gt.f32.partialorder %v280, 0.0
    %vm403 = vcmp.gt.f32.partialorder %v285, 0.0
    %vm404 = vcmp.gt.f32.partialorder %v290, 0.0
    %vm405 = vcmp.gt.f32.partialorder %v295, 0.0
    %vm406 = vcmp.gt.f32.partialorder %v300, 0.0
    %vm407 = vcmp.gt.f32.partialorder %v305, 0.0
    %vm408 = vcmp.gt.f32.partialorder %v310, 0.0
    %vm409 = vcmp.gt.f32.partialorder %v315, 0.0
    %vm410 = vcmp.gt.f32.partialorder %v320, 0.0
    %vm411 = vcmp.gt.f32.partialorder %v325, 0.0
    %vm412 = vcmp.gt.f32.partialorder %v330, 0.0
    %vm413 = vcmp.gt.f32.partialorder %v335, 0.0
    %vm414 = vcmp.gt.f32.partialorder %v340, 0.0
    %vm415 = vcmp.gt.f32.partialorder %v345, 0.0
    %vm416 = vcmp.gt.f32.partialorder %v350, 0.0
    %vm417 = vcmp.gt.f32.partialorder %v355, 0.0
    %vm418 = vcmp.gt.f32.partialorder %v360, 0.0
    %vm419 = vcmp.gt.f32.partialorder %v365, 0.0
    %vm420 = vcmp.gt.f32.partialorder %v370, 0.0
    %vm421 = vcmp.gt.f32.partialorder %v375, 0.0
    %vm422 = vcmp.gt.f32.partialorder %v380, 0.0
    %vm423 = vcmp.gt.f32.partialorder %v385, 0.0
    %vm424 = vcmp.gt.f32.partialorder %v390, 0.0
    %v425 = vmul.f32 %v235, 0.1
    %v426 = vmul.f32 %v240, 0.1
    %v427 = vmul.f32 %v245, 0.1
    %v428 = vmul.f32 %v250, 0.1
    %v429 = vmul.f32 %v255, 0.1
    %v430 = vmul.f32 %v260, 0.1
    %v431 = vmul.f32 %v265, 0.1
    %v432 = vmul.f32 %v270, 0.1
    %v433 = vmul.f32 %v275, 0.1
    %v434 = vmul.f32 %v280, 0.1
    %v435 = vmul.f32 %v285, 0.1
    %v436 = vmul.f32 %v290, 0.1
    %v437 = vmul.f32 %v295, 0.1
    %v438 = vmul.f32 %v300, 0.1
    %v439 = vmul.f32 %v305, 0.1
    %v440 = vmul.f32 %v310, 0.1
    %v441 = vmul.f32 %v315, 0.1
    %v442 = vmul.f32 %v320, 0.1
    %v443 = vmul.f32 %v325, 0.1
    %v444 = vmul.f32 %v330, 0.1
    %v445 = vmul.f32 %v335, 0.1
    %v446 = vmul.f32 %v340, 0.1
    %v447 = vmul.f32 %v345, 0.1
    %v448 = vmul.f32 %v350, 0.1
    %v449 = vmul.f32 %v355, 0.1
    %v450 = vmul.f32 %v360, 0.1
    %v451 = vmul.f32 %v365, 0.1
    %v452 = vmul.f32 %v370, 0.1
    %v453 = vmul.f32 %v375, 0.1
    %v454 = vmul.f32 %v380, 0.1
    %v455 = vmul.f32 %v385, 0.1
    %v456 = vmul.f32 %v390, 0.1
    %v457 = vsel %vm393, %v235, %v425
    %v458 = vsel %vm394, %v240, %v426
    %v459 = vsel %vm395, %v245, %v427
    %v460 = vsel %vm396, %v250, %v428
    %v461 = vsel %vm397, %v255, %v429
    %v462 = vsel %vm398, %v260, %v430
    %v463 = vsel %vm399, %v265, %v431
    %v464 = vsel %vm400, %v270, %v432
    %v465 = vsel %vm401, %v275, %v433
    %v466 = vsel %vm402, %v280, %v434
    %v467 = vsel %vm403, %v285, %v435
    %v468 = vsel %vm404, %v290, %v436
    %v469 = vsel %vm405, %v295, %v437
    %v470 = vsel %vm406, %v300, %v438
    %v471 = vsel %vm407, %v305, %v439
    %v472 = vsel %vm408, %v310, %v440
    %v473 = vsel %vm409, %v315, %v441
    %v474 = vsel %vm410, %v320, %v442
    %v475 = vsel %vm411, %v325, %v443
    %v476 = vsel %vm412, %v330, %v444
    %v477 = vsel %vm413, %v335, %v445
    %v478 = vsel %vm414, %v340, %v446
    %v479 = vsel %vm415, %v345, %v447
    %v480 = vsel %vm416, %v350, %v448
    %v481 = vsel %vm417, %v355, %v449
    %v482 = vsel %vm418, %v360, %v450
    %v483 = vsel %vm419, %v365, %v451
    %v484 = vsel %vm420, %v370, %v452
    %v485 = vsel %vm421, %v375, %v453
    %v486 = vsel %vm422, %v380, %v454
    %v487 = vsel %vm423, %v385, %v455
    %v488 = vsel %vm424, %v390, %v456
    %v489 = vsel %vm71, %v457, 0.0
    %v490 = vsel %vm71, %v458, 0.0
    %v491 = vadd.f32 %v489, %v490
    %v492 = vsel %vm71, %v459, 0.0
    %v493 = vadd.f32 %v491, %v492
    %v494 = vsel %vm71, %v460, 0.0
    %v495 = vadd.f32 %v493, %v494
    %v496 = vsel %vm71, %v461, 0.0
    %v497 = vadd.f32 %v495, %v496
    %v498 = vsel %vm71, %v462, 0.0
    %v499 = vadd.f32 %v497, %v498
    %v500 = vsel %vm71, %v463, 0.0
    %v501 = vadd.f32 %v499, %v500
    %v502 = vsel %vm71, %v464, 0.0
    %v503 = vadd.f32 %v501, %v502
    %v504 = vsel %vm71, %v465, 0.0
    %v505 = vadd.f32 %v503, %v504
    %v506 = vsel %vm71, %v466, 0.0
    %v507 = vadd.f32 %v505, %v506
    %v508 = vsel %vm71, %v467, 0.0
    %v509 = vadd.f32 %v507, %v508
    %v510 = vsel %vm71, %v468, 0.0
    %v511 = vadd.f32 %v509, %v510
    %v512 = vsel %vm71, %v469, 0.0
    %v513 = vadd.f32 %v511, %v512
    %v514 = vsel %vm71, %v470, 0.0
    %v515 = vadd.f32 %v513, %v514
    %v516 = vsel %vm71, %v471, 0.0
    %v517 = vadd.f32 %v515, %v516
    %v518 = vsel %vm71, %v472, 0.0
    %v519 = vadd.f32 %v517, %v518
    %v520 = vsel %vm71, %v473, 0.0
    %v521 = vadd.f32 %v519, %v520
    %v522 = vsel %vm71, %v474, 0.0
    %v523 = vadd.f32 %v521, %v522
    %v524 = vsel %vm71, %v475, 0.0
    %v525 = vadd.f32 %v523, %v524
    %v526 = vsel %vm71, %v476, 0.0
    %v527 = vadd.f32 %v525, %v526
    %v528 = vsel %vm71, %v477, 0.0
    %v529 = vadd.f32 %v527, %v528
    %v530 = vsel %vm71, %v478, 0.0
    %v531 = vadd.f32 %v529, %v530
    %v532 = vsel %vm71, %v479, 0.0
    %v533 = vadd.f32 %v531, %v532
    %v534 = vsel %vm71, %v480, 0.0
    %v535 = vadd.f32 %v533, %v534
    %v536 = vsel %vm71, %v481, 0.0
    %v537 = vadd.f32 %v535, %v536
    %v538 = vsel %vm71, %v482, 0.0
    %v539 = vadd.f32 %v537, %v538
    %v540 = vsel %vm71, %v483, 0.0
    %v541 = vadd.f32 %v539, %v540
    %v542 = vsel %vm71, %v484, 0.0
    %v543 = vadd.f32 %v541, %v542
    %v544 = vsel %vm71, %v485, 0.0
    %v545 = vadd.f32 %v543, %v544
    %v546 = vsel %vm71, %v486, 0.0
    %v547 = vadd.f32 %v545, %v546
    %v548 = vsel %vm71, %v487, 0.0
    %v549 = vadd.f32 %v547, %v548
    %v550 = vsel %vm71, %v488, 0.0
    %v551 = vadd.f32 %v549, %v550
    %v552 = vrot.slane %v551, 4
    %v553 = vadd.f32 %v551, %v552
    %v554 = vrot.slane %v553, 2
    %v555 = vadd.f32 %v553, %v554
    %v556 = vrot.slane %v555, 1
    %v557 = vadd.f32 %v555, %v556
    %v558 = vmul.f32 %v557, 0.00390625
    %v559 = vsub.f32 %v457, %v558
    %v560 = vsub.f32 %v458, %v558
    %v561 = vsub.f32 %v459, %v558
    %v562 = vsub.f32 %v460, %v558
    %v563 = vsub.f32 %v461, %v558
    %v564 = vsub.f32 %v462, %v558
    %v565 = vsub.f32 %v463, %v558
    %v566 = vsub.f32 %v464, %v558
    %v567 = vsub.f32 %v465, %v558
    %v568 = vsub.f32 %v466, %v558
    %v569 = vsub.f32 %v467, %v558
    %v570 = vsub.f32 %v468, %v558
    %v571 = vsub.f32 %v469, %v558
    %v572 = vsub.f32 %v470, %v558
    %v573 = vsub.f32 %v471, %v558
    %v574 = vsub.f32 %v472, %v558
    %v575 = vsub.f32 %v473, %v558
    %v576 = vsub.f32 %v474, %v558
    %v577 = vsub.f32 %v475, %v558
    %v578 = vsub.f32 %v476, %v558
    %v579 = vsub.f32 %v477, %v558
    %v580 = vsub.f32 %v478, %v558
    %v581 = vsub.f32 %v479, %v558
    %v582 = vsub.f32 %v480, %v558
    %v583 = vsub.f32 %v481, %v558
    %v584 = vsub.f32 %v482, %v558
    %v585 = vsub.f32 %v483, %v558
    %v586 = vsub.f32 %v484, %v558
    %v587 = vsub.f32 %v485, %v558
    %v588 = vsub.f32 %v486, %v558
    %v589 = vsub.f32 %v487, %v558
    %v590 = vsub.f32 %v488, %v558
    %v591 = vmul.f32 %v559, %v559
    %v592 = vmul.f32 %v560, %v560
    %v593 = vmul.f32 %v561, %v561
    %v594 = vmul.f32 %v562, %v562
    %v595 = vmul.f32 %v563, %v563
    %v596 = vmul.f32 %v564, %v564
    %v597 = vmul.f32 %v565, %v565
    %v598 = vmul.f32 %v566, %v566
    %v599 = vmul.f32 %v567, %v567
    %v600 = vmul.f32 %v568, %v568
    %v601 = vmul.f32 %v569, %v569
    %v602 = vmul.f32 %v570, %v570
    %v603 = vmul.f32 %v571, %v571
    %v604 = vmul.f32 %v572, %v572
    %v605 = vmul.f32 %v573, %v573
    %v606 = vmul.f32 %v574, %v574
    %v607 = vmul.f32 %v575, %v575
    %v608 = vmul.f32 %v576, %v576
    %v609 = vmul.f32 %v577, %v577
    %v610 = vmul.f32 %v578, %v578
    %v611 = vmul.f32 %v579, %v579
    %v612 = vmul.f32 %v580, %v580
    %v613 = vmul.f32 %v581, %v581
    %v614 = vmul.f32 %v582, %v582
    %v615 = vmul.f32 %v583, %v583
    %v616 = vmul.f32 %v584, %v584
    %v617 = vmul.f32 %v585, %v585
    %v618 = vmul.f32 %v586, %v586
    %v619 = vmul.f32 %v587, %v587
    %v620 = vmul.f32 %v588, %v588
    %v621 = vmul.f32 %v589, %v589
    %v622 = vmul.f32 %v590, %v590
    %v623 = vsel %vm71, %v591, 0.0
    %v624 = vsel %vm71, %v592, 0.0
    %v625 = vadd.f32 %v623, %v624
    %v626 = vsel %vm71, %v593, 0.0
    %v627 = vadd.f32 %v625, %v626
    %v628 = vsel %vm71, %v594, 0.0
    %v629 = vadd.f32 %v627, %v628
    %v630 = vsel %vm71, %v595, 0.0
    %v631 = vadd.f32 %v629, %v630
    %v632 = vsel %vm71, %v596, 0.0
    %v633 = vadd.f32 %v631, %v632
    %v634 = vsel %vm71, %v597, 0.0
    %v635 = vadd.f32 %v633, %v634
    %v636 = vsel %vm71, %v598, 0.0
    %v637 = vadd.f32 %v635, %v636
    %v638 = vsel %vm71, %v599, 0.0
    %v639 = vadd.f32 %v637, %v638
    %v640 = vsel %vm71, %v600, 0.0
    %v641 = vadd.f32 %v639, %v640
    %v642 = vsel %vm71, %v601, 0.0
    %v643 = vadd.f32 %v641, %v642
    %v644 = vsel %vm71, %v602, 0.0
    %v645 = vadd.f32 %v643, %v644
    %v646 = vsel %vm71, %v603, 0.0
    %v647 = vadd.f32 %v645, %v646
    %v648 = vsel %vm71, %v604, 0.0
    %v649 = vadd.f32 %v647, %v648
    %v650 = vsel %vm71, %v605, 0.0
    %v651 = vadd.f32 %v649, %v650
    %v652 = vsel %vm71, %v606, 0.0
    %v653 = vadd.f32 %v651, %v652
    %v654 = vsel %vm71, %v607, 0.0
    %v655 = vadd.f32 %v653, %v654
    %v656 = vsel %vm71, %v608, 0.0
    %v657 = vadd.f32 %v655, %v656
    %v658 = vsel %vm71, %v609, 0.0
    %v659 = vadd.f32 %v657, %v658
    %v660 = vsel %vm71, %v610, 0.0
    %v661 = vadd.f32 %v659, %v660
    %v662 = vsel %vm71, %v611, 0.0
    %v663 = vadd.f32 %v661, %v662
    %v664 = vsel %vm71, %v612, 0.0
    %v665 = vadd.f32 %v663, %v664
    %v666 = vsel %vm71, %v613, 0.0
    %v667 = vadd.f32 %v665, %v666
    %v668 = vsel %vm71, %v614, 0.0
    %v669 = vadd.f32 %v667, %v668
    %v670 = vsel %vm71, %v615, 0.0
    %v671 = vadd.f32 %v669, %v670
    %v672 = vsel %vm71, %v616, 0.0
    %v673 = vadd.f32 %v671, %v672
    %v674 = vsel %vm71, %v617, 0.0
    %v675 = vadd.f32 %v673, %v674
    %v676 = vsel %vm71, %v618, 0.0
    %v677 = vadd.f32 %v675, %v676
    %v678 = vsel %vm71, %v619, 0.0
    %v679 = vadd.f32 %v677, %v678
    %v680 = vsel %vm71, %v620, 0.0
    %v681 = vadd.f32 %v679, %v680
    %v682 = vsel %vm71, %v621, 0.0
    %v683 = vadd.f32 %v681, %v682
    %v684 = vsel %vm71, %v622, 0.0
    %v685 = vadd.f32 %v683, %v684
    %v686 = vrot.slane %v685, 4
    %v687 = vadd.f32 %v685, %v686
    %v688 = vrot.slane %v687, 2
    %v689 = vadd.f32 %v687, %v688
    %v690 = vrot.slane %v689, 1
    %v691 = vadd.f32 %v689, %v690
    %v692 = vmul.f32 %v691, 0.00390625
    %v693 = vadd.f32 %v692, 1e-05
    %v694 = vrsqrt.pop %v693
    %v695 = vmul.f32 %v559, %v694
    %v696 = vmul.f32 %v560, %v694
    %v697 = vmul.f32 %v561, %v694
    %v698 = vmul.f32 %v562, %v694
    %v699 = vmul.f32 %v563, %v694
    %v700 = vmul.f32 %v564, %v694
    %v701 = vmul.f32 %v565, %v694
    %v702 = vmul.f32 %v566, %v694
    %v703 = vmul.f32 %v567, %v694
    %v704 = vmul.f32 %v568, %v694
    %v705 = vmul.f32 %v569, %v694
    %v706 = vmul.f32 %v570, %v694
    %v707 = vmul.f32 %v571, %v694
    %v708 = vmul.f32 %v572, %v694
    %v709 = vmul.f32 %v573, %v694
    %v710 = vmul.f32 %v574, %v694
    %v711 = vmul.f32 %v575, %v694
    %v712 = vmul.f32 %v576, %v694
    %v713 = vmul.f32 %v577, %v694
    %v714 = vmul.f32 %v578, %v694
    %v715 = vmul.f32 %v579, %v694
    %v716 = vmul.f32 %v580, %v694
    %v717 = vmul.f32 %v581, %v694
    %v718 = vmul.f32 %v582, %v694
    %v719 = vmul.f32 %v583, %v694
    %v720 = vmul.f32 %v584, %v694
    %v721 = vmul.f32 %v585, %v694
    %v722 = vmul.f32 %v586, %v694
    %v723 = vmul.f32 %v587, %v694
    %v724 = vmul.f32 %v588, %v694
    %v725 = vmul.f32 %v589, %v694
    %v726 = vmul.f32 %v590, %v694
    %v727 = vld [vmem:[%s3] sm:$0xff]
    %v728 = vld [vmem:[%s3 + $0x8] sm:$0xff]
    %v729 = vld [vmem:[%s3 + $0x10] sm:$0xff]
    %v730 = vld [vmem:[%s3 + $0x18] sm:$0xff]
    %v731 = vld [vmem:[%s4] sm:$0x1]
    %v733 = vlaneseq
    %v734 = vshrl.u32 %v733, 7
    %v735 = vsub.s32 0, %v734
    %v736 = vrot.slane %v731, %v735
    %v739 = vsel %vm71, %v695, 0
    %v742 = vsel %vm71, %v696, 0
    %v745 = vsel %vm71, %v697, 0
    %v748 = vsel %vm71, %v698, 0
    %v751 = vsel %vm71, %v699, 0
    %v754 = vsel %vm71, %v700, 0
    %v757 = vsel %vm71, %v701, 0
    %v760 = vsel %vm71, %v702, 0
    %v763 = vsel %vm71, %v703, 0
    %v766 = vsel %vm71, %v704, 0
    %v769 = vsel %vm71, %v705, 0
    %v772 = vsel %vm71, %v706, 0
    %v775 = vsel %vm71, %v707, 0
    %v778 = vsel %vm71, %v708, 0
    %v781 = vsel %vm71, %v709, 0
    %v784 = vsel %vm71, %v710, 0
    %v787 = vsel %vm71, %v711, 0
    %v790 = vsel %vm71, %v712, 0
    %v793 = vsel %vm71, %v713, 0
    %v796 = vsel %vm71, %v714, 0
    %v799 = vsel %vm71, %v715, 0
    %v802 = vsel %vm71, %v716, 0
    %v805 = vsel %vm71, %v717, 0
    %v808 = vsel %vm71, %v718, 0
    %v811 = vsel %vm71, %v719, 0
    %v814 = vsel %vm71, %v720, 0
    %v817 = vsel %vm71, %v721, 0
    %v820 = vsel %vm71, %v722, 0
    %v823 = vsel %vm71, %v723, 0
    %v826 = vsel %vm71, %v724, 0
    %v829 = vsel %vm71, %v725, 0
    %v832 = vsel %vm71, %v726, 0
    %834 = vmatprep.subr.mxu0 0.0
    %835 = vmatpush1.msra.mxu0 %v727
    %836 = vmatprep.subr.mxu0 0.0
    %837 = vmatpush1.msra.mxu0 %v728
    %838 = vmatprep.subr.mxu0 0.0
    %839 = vmatpush1.msra.mxu0 %v729
    %840 = vmatprep.subr.mxu0 0.0
    %841 = vmatpush1.msra.mxu0 %v730
    %842 = vmatprep.subr.mxu0 0.0
    %843 = vmatpush1.msra.mxu0 0.0
    %844 = vmatprep.subr.mxu0 0.0
    %845 = vmatpush1.msra.mxu0 0.0
    %846 = vmatprep.subr.mxu0 0.0
    %847 = vmatpush1.msra.mxu0 0.0
    %848 = vmatprep.subr.mxu0 0.0
    %849 = vmatpush1.msra.mxu0 0.0
    %850 = vmatprep.subr.mxu0 0.0
    %851 = vmatpush1.msra.mxu0 0.0
    %852 = vmatprep.subr.mxu0 0.0
    %853 = vmatpush1.msra.mxu0 0.0
    %854 = vmatprep.subr.mxu0 0.0
    %855 = vmatpush1.msra.mxu0 0.0
    %856 = vmatprep.subr.mxu0 0.0
    %857 = vmatpush1.msra.mxu0 0.0
    %858 = vmatprep.subr.mxu0 0.0
    %859 = vmatpush1.msra.mxu0 0.0
    %860 = vmatprep.subr.mxu0 0.0
    %861 = vmatpush1.msra.mxu0 0.0
    %862 = vmatprep.subr.mxu0 0.0
    %863 = vmatpush1.msra.mxu0 0.0
    %864 = vmatprep.subr.mxu0 0.0
    %865 = vmatpush1.msra.mxu0 0.0
    %866 = vmatprep.subr.mxu0 0.0
    %867 = vmatpush1.msra.mxu0 0.0
    %868 = vmatprep.subr.mxu0 0.0
    %869 = vmatpush1.msra.mxu0 0.0
    %870 = vmatprep.subr.mxu0 0.0
    %871 = vmatpush1.msra.mxu0 0.0
    %872 = vmatprep.subr.mxu0 0.0
    %873 = vmatpush1.msra.mxu0 0.0
    %874 = vmatprep.subr.mxu0 0.0
    %875 = vmatpush1.msra.mxu0 0.0
    %876 = vmatprep.subr.mxu0 0.0
    %877 = vmatpush1.msra.mxu0 0.0
    %878 = vmatprep.subr.mxu0 0.0
    %879 = vmatpush1.msra.mxu0 0.0
    %880 = vmatprep.subr.mxu0 0.0
    %881 = vmatpush1.msra.mxu0 0.0
    %882 = vmatprep.subr.mxu0 0.0
    %883 = vmatpush1.msra.mxu0 0.0
    %884 = vmatprep.subr.mxu0 0.0
    %885 = vmatpush1.msra.mxu0 0.0
    %886 = vmatprep.subr.mxu0 0.0
    %887 = vmatpush1.msra.mxu0 0.0
    %888 = vmatprep.subr.mxu0 0.0
    %889 = vmatpush1.msra.mxu0 0.0
    %890 = vmatprep.subr.mxu0 0.0
    %891 = vmatpush1.msra.mxu0 0.0
    %892 = vmatprep.subr.mxu0 0.0
    %893 = vmatpush1.msra.mxu0 0.0
    %894 = vmatprep.subr.mxu0 0.0
    %895 = vmatpush1.msra.mxu0 0.0
    %896 = vmatprep.subr.mxu0 0.0
    %897 = vmatpush1.msra.mxu0 0.0
    %898 = vmatprep.mubr.f32.mxu0 0.0
    %899 = vmatmul.mubr.f32.gmra.mrb[0].mxu0 %v739
    %v900 = vpop.f32.mrb[0].mxu0
    %v901 = vadd.f32 %v736, %v900
    %v902 = vpop.f32.mrb[0].mxu0
    %903 = vmatprep.mubr.f32.mxu0 0.0
    %904 = vmatmul.mubr.f32.gmra.mrb[0].mxu0 %v742
    %v905 = vpop.f32.mrb[0].mxu0
    %v906 = vadd.f32 %v736, %v905
    %v907 = vpop.f32.mrb[0].mxu0
    %908 = vmatprep.mubr.f32.mxu0 0.0
    %909 = vmatmul.mubr.f32.gmra.mrb[0].mxu0 %v745
    %v910 = vpop.f32.mrb[0].mxu0
    %v911 = vadd.f32 %v736, %v910
    %v912 = vpop.f32.mrb[0].mxu0
    %913 = vmatprep.mubr.f32.mxu0 0.0
    %914 = vmatmul.mubr.f32.gmra.mrb[0].mxu0 %v748
    %v915 = vpop.f32.mrb[0].mxu0
    %v916 = vadd.f32 %v736, %v915
    %v917 = vpop.f32.mrb[0].mxu0
    %918 = vmatprep.mubr.f32.mxu0 0.0
    %919 = vmatmul.mubr.f32.gmra.mrb[0].mxu0 %v751
    %v920 = vpop.f32.mrb[0].mxu0
    %v921 = vadd.f32 %v736, %v920
    %v922 = vpop.f32.mrb[0].mxu0
    %923 = vmatprep.mubr.f32.mxu0 0.0
    %924 = vmatmul.mubr.f32.gmra.mrb[0].mxu0 %v754
    %v925 = vpop.f32.mrb[0].mxu0
    %v926 = vadd.f32 %v736, %v925
    %v927 = vpop.f32.mrb[0].mxu0
    %928 = vmatprep.mubr.f32.mxu0 0.0
    %929 = vmatmul.mubr.f32.gmra.mrb[0].mxu0 %v757
    %v930 = vpop.f32.mrb[0].mxu0
    %v931 = vadd.f32 %v736, %v930
    %v932 = vpop.f32.mrb[0].mxu0
    %933 = vmatprep.mubr.f32.mxu0 0.0
    %934 = vmatmul.mubr.f32.gmra.mrb[0].mxu0 %v760
    %v935 = vpop.f32.mrb[0].mxu0
    %v936 = vadd.f32 %v736, %v935
    %v937 = vpop.f32.mrb[0].mxu0
    %938 = vmatprep.mubr.f32.mxu0 0.0
    %939 = vmatmul.mubr.f32.gmra.mrb[0].mxu0 %v763
    %v940 = vpop.f32.mrb[0].mxu0
    %v941 = vadd.f32 %v736, %v940
    %v942 = vpop.f32.mrb[0].mxu0
    %943 = vmatprep.mubr.f32.mxu0 0.0
    %944 = vmatmul.mubr.f32.gmra.mrb[0].mxu0 %v766
    %v945 = vpop.f32.mrb[0].mxu0
    %v946 = vadd.f32 %v736, %v945
    %v947 = vpop.f32.mrb[0].mxu0
    %948 = vmatprep.mubr.f32.mxu0 0.0
    %949 = vmatmul.mubr.f32.gmra.mrb[0].mxu0 %v769
    %v950 = vpop.f32.mrb[0].mxu0
    %v951 = vadd.f32 %v736, %v950
    %v952 = vpop.f32.mrb[0].mxu0
    %953 = vmatprep.mubr.f32.mxu0 0.0
    %954 = vmatmul.mubr.f32.gmra.mrb[0].mxu0 %v772
    %v955 = vpop.f32.mrb[0].mxu0
    %v956 = vadd.f32 %v736, %v955
    %v957 = vpop.f32.mrb[0].mxu0
    %958 = vmatprep.mubr.f32.mxu0 0.0
    %959 = vmatmul.mubr.f32.gmra.mrb[0].mxu0 %v775
    %v960 = vpop.f32.mrb[0].mxu0
    %v961 = vadd.f32 %v736, %v960
    %v962 = vpop.f32.mrb[0].mxu0
    %963 = vmatprep.mubr.f32.mxu0 0.0
    %964 = vmatmul.mubr.f32.gmra.mrb[0].mxu0 %v778
    %v965 = vpop.f32.mrb[0].mxu0
    %v966 = vadd.f32 %v736, %v965
    %v967 = vpop.f32.mrb[0].mxu0
    %968 = vmatprep.mubr.f32.mxu0 0.0
    %969 = vmatmul.mubr.f32.gmra.mrb[0].mxu0 %v781
    %v970 = vpop.f32.mrb[0].mxu0
    %v971 = vadd.f32 %v736, %v970
    %v972 = vpop.f32.mrb[0].mxu0
    %973 = vmatprep.mubr.f32.mxu0 0.0
    %974 = vmatmul.mubr.f32.gmra.mrb[0].mxu0 %v784
    %v975 = vpop.f32.mrb[0].mxu0
    %v976 = vadd.f32 %v736, %v975
    %v977 = vpop.f32.mrb[0].mxu0
    %978 = vmatprep.mubr.f32.mxu0 0.0
    %979 = vmatmul.mubr.f32.gmra.mrb[0].mxu0 %v787
    %v980 = vpop.f32.mrb[0].mxu0
    %v981 = vadd.f32 %v736, %v980
    %v982 = vpop.f32.mrb[0].mxu0
    %983 = vmatprep.mubr.f32.mxu0 0.0
    %984 = vmatmul.mubr.f32.gmra.mrb[0].mxu0 %v790
    %v985 = vpop.f32.mrb[0].mxu0
    %v986 = vadd.f32 %v736, %v985
    %v987 = vpop.f32.mrb[0].mxu0
    %988 = vmatprep.mubr.f32.mxu0 0.0
    %989 = vmatmul.mubr.f32.gmra.mrb[0].mxu0 %v793
    %v990 = vpop.f32.mrb[0].mxu0
    %v991 = vadd.f32 %v736, %v990
    %v992 = vpop.f32.mrb[0].mxu0
    %993 = vmatprep.mubr.f32.mxu0 0.0
    %994 = vmatmul.mubr.f32.gmra.mrb[0].mxu0 %v796
    %v995 = vpop.f32.mrb[0].mxu0
    %v996 = vadd.f32 %v736, %v995
    %v997 = vpop.f32.mrb[0].mxu0
    %998 = vmatprep.mubr.f32.mxu0 0.0
    %999 = vmatmul.mubr.f32.gmra.mrb[0].mxu0 %v799
    %v1000 = vpop.f32.mrb[0].mxu0
    %v1001 = vadd.f32 %v736, %v1000
    %v1002 = vpop.f32.mrb[0].mxu0
    %1003 = vmatprep.mubr.f32.mxu0 0.0
    %1004 = vmatmul.mubr.f32.gmra.mrb[0].mxu0 %v802
    %v1005 = vpop.f32.mrb[0].mxu0
    %v1006 = vadd.f32 %v736, %v1005
    %v1007 = vpop.f32.mrb[0].mxu0
    %1008 = vmatprep.mubr.f32.mxu0 0.0
    %1009 = vmatmul.mubr.f32.gmra.mrb[0].mxu0 %v805
    %v1010 = vpop.f32.mrb[0].mxu0
    %v1011 = vadd.f32 %v736, %v1010
    %v1012 = vpop.f32.mrb[0].mxu0
    %1013 = vmatprep.mubr.f32.mxu0 0.0
    %1014 = vmatmul.mubr.f32.gmra.mrb[0].mxu0 %v808
    %v1015 = vpop.f32.mrb[0].mxu0
    %v1016 = vadd.f32 %v736, %v1015
    %v1017 = vpop.f32.mrb[0].mxu0
    %1018 = vmatprep.mubr.f32.mxu0 0.0
    %1019 = vmatmul.mubr.f32.gmra.mrb[0].mxu0 %v811
    %v1020 = vpop.f32.mrb[0].mxu0
    %v1021 = vadd.f32 %v736, %v1020
    %v1022 = vpop.f32.mrb[0].mxu0
    %1023 = vmatprep.mubr.f32.mxu0 0.0
    %1024 = vmatmul.mubr.f32.gmra.mrb[0].mxu0 %v814
    %v1025 = vpop.f32.mrb[0].mxu0
    %v1026 = vadd.f32 %v736, %v1025
    %v1027 = vpop.f32.mrb[0].mxu0
    %1028 = vmatprep.mubr.f32.mxu0 0.0
    %1029 = vmatmul.mubr.f32.gmra.mrb[0].mxu0 %v817
    %v1030 = vpop.f32.mrb[0].mxu0
    %v1031 = vadd.f32 %v736, %v1030
    %v1032 = vpop.f32.mrb[0].mxu0
    %1033 = vmatprep.mubr.f32.mxu0 0.0
    %1034 = vmatmul.mubr.f32.gmra.mrb[0].mxu0 %v820
    %v1035 = vpop.f32.mrb[0].mxu0
    %v1036 = vadd.f32 %v736, %v1035
    %v1037 = vpop.f32.mrb[0].mxu0
    %1038 = vmatprep.mubr.f32.mxu0 0.0
    %1039 = vmatmul.mubr.f32.gmra.mrb[0].mxu0 %v823
    %v1040 = vpop.f32.mrb[0].mxu0
    %v1041 = vadd.f32 %v736, %v1040
    %v1042 = vpop.f32.mrb[0].mxu0
    %1043 = vmatprep.mubr.f32.mxu0 0.0
    %1044 = vmatmul.mubr.f32.gmra.mrb[0].mxu0 %v826
    %v1045 = vpop.f32.mrb[0].mxu0
    %v1046 = vadd.f32 %v736, %v1045
    %v1047 = vpop.f32.mrb[0].mxu0
    %1048 = vmatprep.mubr.f32.mxu0 0.0
    %1049 = vmatmul.mubr.f32.gmra.mrb[0].mxu0 %v829
    %v1050 = vpop.f32.mrb[0].mxu0
    %v1051 = vadd.f32 %v736, %v1050
    %v1052 = vpop.f32.mrb[0].mxu0
    %1053 = vmatprep.mubr.f32.mxu0 0.0
    %1054 = vmatmul.mubr.f32.gmra.mrb[0].mxu0 %v832
    %v1055 = vpop.f32.mrb[0].mxu0
    %v1056 = vadd.f32 %v736, %v1055
    %v1057 = vpop.f32.mrb[0].mxu0
    %1058 = vdwg.mxu0
    %vm1059 = vcmp.gt.f32.partialorder %v901, 0.0
    %vm1060 = vcmp.gt.f32.partialorder %v906, 0.0
    %vm1061 = vcmp.gt.f32.partialorder %v911, 0.0
    %vm1062 = vcmp.gt.f32.partialorder %v916, 0.0
    %vm1063 = vcmp.gt.f32.partialorder %v921, 0.0
    %vm1064 = vcmp.gt.f32.partialorder %v926, 0.0
    %vm1065 = vcmp.gt.f32.partialorder %v931, 0.0
    %vm1066 = vcmp.gt.f32.partialorder %v936, 0.0
    %vm1067 = vcmp.gt.f32.partialorder %v941, 0.0
    %vm1068 = vcmp.gt.f32.partialorder %v946, 0.0
    %vm1069 = vcmp.gt.f32.partialorder %v951, 0.0
    %vm1070 = vcmp.gt.f32.partialorder %v956, 0.0
    %vm1071 = vcmp.gt.f32.partialorder %v961, 0.0
    %vm1072 = vcmp.gt.f32.partialorder %v966, 0.0
    %vm1073 = vcmp.gt.f32.partialorder %v971, 0.0
    %vm1074 = vcmp.gt.f32.partialorder %v976, 0.0
    %vm1075 = vcmp.gt.f32.partialorder %v981, 0.0
    %vm1076 = vcmp.gt.f32.partialorder %v986, 0.0
    %vm1077 = vcmp.gt.f32.partialorder %v991, 0.0
    %vm1078 = vcmp.gt.f32.partialorder %v996, 0.0
    %vm1079 = vcmp.gt.f32.partialorder %v1001, 0.0
    %vm1080 = vcmp.gt.f32.partialorder %v1006, 0.0
    %vm1081 = vcmp.gt.f32.partialorder %v1011, 0.0
    %vm1082 = vcmp.gt.f32.partialorder %v1016, 0.0
    %vm1083 = vcmp.gt.f32.partialorder %v1021, 0.0
    %vm1084 = vcmp.gt.f32.partialorder %v1026, 0.0
    %vm1085 = vcmp.gt.f32.partialorder %v1031, 0.0
    %vm1086 = vcmp.gt.f32.partialorder %v1036, 0.0
    %vm1087 = vcmp.gt.f32.partialorder %v1041, 0.0
    %vm1088 = vcmp.gt.f32.partialorder %v1046, 0.0
    %vm1089 = vcmp.gt.f32.partialorder %v1051, 0.0
    %vm1090 = vcmp.gt.f32.partialorder %v1056, 0.0
    %v1091 = vmul.f32 %v901, 0.05
    %v1092 = vmul.f32 %v906, 0.05
    %v1093 = vmul.f32 %v911, 0.05
    %v1094 = vmul.f32 %v916, 0.05
    %v1095 = vmul.f32 %v921, 0.05
    %v1096 = vmul.f32 %v926, 0.05
    %v1097 = vmul.f32 %v931, 0.05
    %v1098 = vmul.f32 %v936, 0.05
    %v1099 = vmul.f32 %v941, 0.05
    %v1100 = vmul.f32 %v946, 0.05
    %v1101 = vmul.f32 %v951, 0.05
    %v1102 = vmul.f32 %v956, 0.05
    %v1103 = vmul.f32 %v961, 0.05
    %v1104 = vmul.f32 %v966, 0.05
    %v1105 = vmul.f32 %v971, 0.05
    %v1106 = vmul.f32 %v976, 0.05
    %v1107 = vmul.f32 %v981, 0.05
    %v1108 = vmul.f32 %v986, 0.05
    %v1109 = vmul.f32 %v991, 0.05
    %v1110 = vmul.f32 %v996, 0.05
    %v1111 = vmul.f32 %v1001, 0.05
    %v1112 = vmul.f32 %v1006, 0.05
    %v1113 = vmul.f32 %v1011, 0.05
    %v1114 = vmul.f32 %v1016, 0.05
    %v1115 = vmul.f32 %v1021, 0.05
    %v1116 = vmul.f32 %v1026, 0.05
    %v1117 = vmul.f32 %v1031, 0.05
    %v1118 = vmul.f32 %v1036, 0.05
    %v1119 = vmul.f32 %v1041, 0.05
    %v1120 = vmul.f32 %v1046, 0.05
    %v1121 = vmul.f32 %v1051, 0.05
    %v1122 = vmul.f32 %v1056, 0.05
    %v1123 = vsel %vm1059, %v901, %v1091
    %v1124 = vsel %vm1060, %v906, %v1092
    %v1125 = vsel %vm1061, %v911, %v1093
    %v1126 = vsel %vm1062, %v916, %v1094
    %v1127 = vsel %vm1063, %v921, %v1095
    %v1128 = vsel %vm1064, %v926, %v1096
    %v1129 = vsel %vm1065, %v931, %v1097
    %v1130 = vsel %vm1066, %v936, %v1098
    %v1131 = vsel %vm1067, %v941, %v1099
    %v1132 = vsel %vm1068, %v946, %v1100
    %v1133 = vsel %vm1069, %v951, %v1101
    %v1134 = vsel %vm1070, %v956, %v1102
    %v1135 = vsel %vm1071, %v961, %v1103
    %v1136 = vsel %vm1072, %v966, %v1104
    %v1137 = vsel %vm1073, %v971, %v1105
    %v1138 = vsel %vm1074, %v976, %v1106
    %v1139 = vsel %vm1075, %v981, %v1107
    %v1140 = vsel %vm1076, %v986, %v1108
    %v1141 = vsel %vm1077, %v991, %v1109
    %v1142 = vsel %vm1078, %v996, %v1110
    %v1143 = vsel %vm1079, %v1001, %v1111
    %v1144 = vsel %vm1080, %v1006, %v1112
    %v1145 = vsel %vm1081, %v1011, %v1113
    %v1146 = vsel %vm1082, %v1016, %v1114
    %v1147 = vsel %vm1083, %v1021, %v1115
    %v1148 = vsel %vm1084, %v1026, %v1116
    %v1149 = vsel %vm1085, %v1031, %v1117
    %v1150 = vsel %vm1086, %v1036, %v1118
    %v1151 = vsel %vm1087, %v1041, %v1119
    %v1152 = vsel %vm1088, %v1046, %v1120
    %v1153 = vsel %vm1089, %v1051, %v1121
    %v1154 = vsel %vm1090, %v1056, %v1122
    %v1155 = vld [vmem:[%s5] sm:$0x1]
    %v1157 = vlaneseq
    %v1158 = vshrl.u32 %v1157, 7
    %v1159 = vsub.s32 0, %v1158
    %v1160 = vrot.slane %v1155, %v1159
    %v1162 = vmul.f32 %v1123, %v1160
    %v1163 = vmul.f32 %v1124, %v1160
    %v1164 = vmul.f32 %v1125, %v1160
    %v1165 = vmul.f32 %v1126, %v1160
    %v1166 = vmul.f32 %v1127, %v1160
    %v1167 = vmul.f32 %v1128, %v1160
    %v1168 = vmul.f32 %v1129, %v1160
    %v1169 = vmul.f32 %v1130, %v1160
    %v1170 = vmul.f32 %v1131, %v1160
    %v1171 = vmul.f32 %v1132, %v1160
    %v1172 = vmul.f32 %v1133, %v1160
    %v1173 = vmul.f32 %v1134, %v1160
    %v1174 = vmul.f32 %v1135, %v1160
    %v1175 = vmul.f32 %v1136, %v1160
    %v1176 = vmul.f32 %v1137, %v1160
    %v1177 = vmul.f32 %v1138, %v1160
    %v1178 = vmul.f32 %v1139, %v1160
    %v1179 = vmul.f32 %v1140, %v1160
    %v1180 = vmul.f32 %v1141, %v1160
    %v1181 = vmul.f32 %v1142, %v1160
    %v1182 = vmul.f32 %v1143, %v1160
    %v1183 = vmul.f32 %v1144, %v1160
    %v1184 = vmul.f32 %v1145, %v1160
    %v1185 = vmul.f32 %v1146, %v1160
    %v1186 = vmul.f32 %v1147, %v1160
    %v1187 = vmul.f32 %v1148, %v1160
    %v1188 = vmul.f32 %v1149, %v1160
    %v1189 = vmul.f32 %v1150, %v1160
    %v1190 = vmul.f32 %v1151, %v1160
    %v1191 = vmul.f32 %v1152, %v1160
    %v1192 = vmul.f32 %v1153, %v1160
    %v1193 = vmul.f32 %v1154, %v1160
    %vm1194 = vcmask 130048
    %v1195 = vsel %vm1194, %v1162, 0.0
    %1196 = vadd.xlane.f32.xlu0 %v1195
    %v1197 = vpop.xlane.xlu0 %1196
    %v1198 = vsel %vm1194, %v1163, 0.0
    %1199 = vadd.xlane.f32.xlu0 %v1198
    %v1200 = vpop.xlane.xlu0 %1199
    %v1201 = vsel %vm1194, %v1164, 0.0
    %1202 = vadd.xlane.f32.xlu0 %v1201
    %v1203 = vpop.xlane.xlu0 %1202
    %v1204 = vsel %vm1194, %v1165, 0.0
    %1205 = vadd.xlane.f32.xlu0 %v1204
    %v1206 = vpop.xlane.xlu0 %1205
    %v1207 = vsel %vm1194, %v1166, 0.0
    %1208 = vadd.xlane.f32.xlu0 %v1207
    %v1209 = vpop.xlane.xlu0 %1208
    %v1210 = vsel %vm1194, %v1167, 0.0
    %1211 = vadd.xlane.f32.xlu0 %v1210
    %v1212 = vpop.xlane.xlu0 %1211
    %v1213 = vsel %vm1194, %v1168, 0.0
    %1214 = vadd.xlane.f32.xlu0 %v1213
    %v1215 = vpop.xlane.xlu0 %1214
    %v1216 = vsel %vm1194, %v1169, 0.0
    %1217 = vadd.xlane.f32.xlu0 %v1216
    %v1218 = vpop.xlane.xlu0 %1217
    %v1219 = vsel %vm1194, %v1170, 0.0
    %1220 = vadd.xlane.f32.xlu0 %v1219
    %v1221 = vpop.xlane.xlu0 %1220
    %v1222 = vsel %vm1194, %v1171, 0.0
    %1223 = vadd.xlane.f32.xlu0 %v1222
    %v1224 = vpop.xlane.xlu0 %1223
    %v1225 = vsel %vm1194, %v1172, 0.0
    %1226 = vadd.xlane.f32.xlu0 %v1225
    %v1227 = vpop.xlane.xlu0 %1226
    %v1228 = vsel %vm1194, %v1173, 0.0
    %1229 = vadd.xlane.f32.xlu0 %v1228
    %v1230 = vpop.xlane.xlu0 %1229
    %v1231 = vsel %vm1194, %v1174, 0.0
    %1232 = vadd.xlane.f32.xlu0 %v1231
    %v1233 = vpop.xlane.xlu0 %1232
    %v1234 = vsel %vm1194, %v1175, 0.0
    %1235 = vadd.xlane.f32.xlu0 %v1234
    %v1236 = vpop.xlane.xlu0 %1235
    %v1237 = vsel %vm1194, %v1176, 0.0
    %1238 = vadd.xlane.f32.xlu0 %v1237
    %v1239 = vpop.xlane.xlu0 %1238
    %v1240 = vsel %vm1194, %v1177, 0.0
    %1241 = vadd.xlane.f32.xlu0 %v1240
    %v1242 = vpop.xlane.xlu0 %1241
    %v1243 = vsel %vm1194, %v1178, 0.0
    %1244 = vadd.xlane.f32.xlu0 %v1243
    %v1245 = vpop.xlane.xlu0 %1244
    %v1246 = vsel %vm1194, %v1179, 0.0
    %1247 = vadd.xlane.f32.xlu0 %v1246
    %v1248 = vpop.xlane.xlu0 %1247
    %v1249 = vsel %vm1194, %v1180, 0.0
    %1250 = vadd.xlane.f32.xlu0 %v1249
    %v1251 = vpop.xlane.xlu0 %1250
    %v1252 = vsel %vm1194, %v1181, 0.0
    %1253 = vadd.xlane.f32.xlu0 %v1252
    %v1254 = vpop.xlane.xlu0 %1253
    %v1255 = vsel %vm1194, %v1182, 0.0
    %1256 = vadd.xlane.f32.xlu0 %v1255
    %v1257 = vpop.xlane.xlu0 %1256
    %v1258 = vsel %vm1194, %v1183, 0.0
    %1259 = vadd.xlane.f32.xlu0 %v1258
    %v1260 = vpop.xlane.xlu0 %1259
    %v1261 = vsel %vm1194, %v1184, 0.0
    %1262 = vadd.xlane.f32.xlu0 %v1261
    %v1263 = vpop.xlane.xlu0 %1262
    %v1264 = vsel %vm1194, %v1185, 0.0
    %1265 = vadd.xlane.f32.xlu0 %v1264
    %v1266 = vpop.xlane.xlu0 %1265
    %v1267 = vsel %vm1194, %v1186, 0.0
    %1268 = vadd.xlane.f32.xlu0 %v1267
    %v1269 = vpop.xlane.xlu0 %1268
    %v1270 = vsel %vm1194, %v1187, 0.0
    %1271 = vadd.xlane.f32.xlu0 %v1270
    %v1272 = vpop.xlane.xlu0 %1271
    %v1273 = vsel %vm1194, %v1188, 0.0
    %1274 = vadd.xlane.f32.xlu0 %v1273
    %v1275 = vpop.xlane.xlu0 %1274
    %v1276 = vsel %vm1194, %v1189, 0.0
    %1277 = vadd.xlane.f32.xlu0 %v1276
    %v1278 = vpop.xlane.xlu0 %1277
    %v1279 = vsel %vm1194, %v1190, 0.0
    %1280 = vadd.xlane.f32.xlu0 %v1279
    %v1281 = vpop.xlane.xlu0 %1280
    %v1282 = vsel %vm1194, %v1191, 0.0
    %1283 = vadd.xlane.f32.xlu0 %v1282
    %v1284 = vpop.xlane.xlu0 %1283
    %v1285 = vsel %vm1194, %v1192, 0.0
    %1286 = vadd.xlane.f32.xlu0 %v1285
    %v1287 = vpop.xlane.xlu0 %1286
    %v1288 = vsel %vm1194, %v1193, 0.0
    %1289 = vadd.xlane.f32.xlu0 %v1288
    %v1290 = vpop.xlane.xlu0 %1289
    %s1291 = sld [smem:[#allocation2]]
    %v1292 = vstv %s1291
    %v1293 = vadd.f32 %v1197, %v1292
    %v1294 = vadd.f32 %v1200, %v1292
    %v1295 = vadd.f32 %v1203, %v1292
    %v1296 = vadd.f32 %v1206, %v1292
    %v1297 = vadd.f32 %v1209, %v1292
    %v1298 = vadd.f32 %v1212, %v1292
    %v1299 = vadd.f32 %v1215, %v1292
    %v1300 = vadd.f32 %v1218, %v1292
    %v1301 = vadd.f32 %v1221, %v1292
    %v1302 = vadd.f32 %v1224, %v1292
    %v1303 = vadd.f32 %v1227, %v1292
    %v1304 = vadd.f32 %v1230, %v1292
    %v1305 = vadd.f32 %v1233, %v1292
    %v1306 = vadd.f32 %v1236, %v1292
    %v1307 = vadd.f32 %v1239, %v1292
    %v1308 = vadd.f32 %v1242, %v1292
    %v1309 = vadd.f32 %v1245, %v1292
    %v1310 = vadd.f32 %v1248, %v1292
    %v1311 = vadd.f32 %v1251, %v1292
    %v1312 = vadd.f32 %v1254, %v1292
    %v1313 = vadd.f32 %v1257, %v1292
    %v1314 = vadd.f32 %v1260, %v1292
    %v1315 = vadd.f32 %v1263, %v1292
    %v1316 = vadd.f32 %v1266, %v1292
    %v1317 = vadd.f32 %v1269, %v1292
    %v1318 = vadd.f32 %v1272, %v1292
    %v1319 = vadd.f32 %v1275, %v1292
    %v1320 = vadd.f32 %v1278, %v1292
    %v1321 = vadd.f32 %v1281, %v1292
    %v1322 = vadd.f32 %v1284, %v1292
    %v1323 = vadd.f32 %v1287, %v1292
    %v1324 = vadd.f32 %v1290, %v1292
    %v1357 = vlaneseq
    %v1358 = vshrl.u32 %v1357, 7
    %v1359 = vsub.s32 0, %v1358
    %v1360 = vrot.slane %v1293, %v1359
    %v1361 = vlaneseq
    %v1362 = vshrl.u32 %v1361, 7
    %v1363 = vsub.s32 1, %v1362
    %v1364 = vrot.slane %v1293, %v1363
    %v1365 = vlaneseq
    %v1366 = vshrl.u32 %v1365, 7
    %v1367 = vsub.s32 2, %v1366
    %v1368 = vrot.slane %v1293, %v1367
    %v1369 = vlaneseq
    %v1370 = vshrl.u32 %v1369, 7
    %v1371 = vsub.s32 3, %v1370
    %v1372 = vrot.slane %v1293, %v1371
    %v1373 = vlaneseq
    %v1374 = vshrl.u32 %v1373, 7
    %v1375 = vsub.s32 4, %v1374
    %v1376 = vrot.slane %v1293, %v1375
    %v1377 = vlaneseq
    %v1378 = vshrl.u32 %v1377, 7
    %v1379 = vsub.s32 5, %v1378
    %v1380 = vrot.slane %v1293, %v1379
    %v1381 = vlaneseq
    %v1382 = vshrl.u32 %v1381, 7
    %v1383 = vsub.s32 6, %v1382
    %v1384 = vrot.slane %v1293, %v1383
    %v1385 = vlaneseq
    %v1386 = vshrl.u32 %v1385, 7
    %v1387 = vsub.s32 7, %v1386
    %v1388 = vrot.slane %v1293, %v1387
    %v1389 = vlaneseq
    %v1390 = vshrl.u32 %v1389, 7
    %v1391 = vsub.s32 0, %v1390
    %v1392 = vrot.slane %v1294, %v1391
    %v1393 = vlaneseq
    %v1394 = vshrl.u32 %v1393, 7
    %v1395 = vsub.s32 1, %v1394
    %v1396 = vrot.slane %v1294, %v1395
    %v1397 = vlaneseq
    %v1398 = vshrl.u32 %v1397, 7
    %v1399 = vsub.s32 2, %v1398
    %v1400 = vrot.slane %v1294, %v1399
    %v1401 = vlaneseq
    %v1402 = vshrl.u32 %v1401, 7
    %v1403 = vsub.s32 3, %v1402
    %v1404 = vrot.slane %v1294, %v1403
    %v1405 = vlaneseq
    %v1406 = vshrl.u32 %v1405, 7
    %v1407 = vsub.s32 4, %v1406
    %v1408 = vrot.slane %v1294, %v1407
    %v1409 = vlaneseq
    %v1410 = vshrl.u32 %v1409, 7
    %v1411 = vsub.s32 5, %v1410
    %v1412 = vrot.slane %v1294, %v1411
    %v1413 = vlaneseq
    %v1414 = vshrl.u32 %v1413, 7
    %v1415 = vsub.s32 6, %v1414
    %v1416 = vrot.slane %v1294, %v1415
    %v1417 = vlaneseq
    %v1418 = vshrl.u32 %v1417, 7
    %v1419 = vsub.s32 7, %v1418
    %v1420 = vrot.slane %v1294, %v1419
    %v1421 = vlaneseq
    %v1422 = vshrl.u32 %v1421, 7
    %v1423 = vsub.s32 0, %v1422
    %v1424 = vrot.slane %v1295, %v1423
    %v1425 = vlaneseq
    %v1426 = vshrl.u32 %v1425, 7
    %v1427 = vsub.s32 1, %v1426
    %v1428 = vrot.slane %v1295, %v1427
    %v1429 = vlaneseq
    %v1430 = vshrl.u32 %v1429, 7
    %v1431 = vsub.s32 2, %v1430
    %v1432 = vrot.slane %v1295, %v1431
    %v1433 = vlaneseq
    %v1434 = vshrl.u32 %v1433, 7
    %v1435 = vsub.s32 3, %v1434
    %v1436 = vrot.slane %v1295, %v1435
    %v1437 = vlaneseq
    %v1438 = vshrl.u32 %v1437, 7
    %v1439 = vsub.s32 4, %v1438
    %v1440 = vrot.slane %v1295, %v1439
    %v1441 = vlaneseq
    %v1442 = vshrl.u32 %v1441, 7
    %v1443 = vsub.s32 5, %v1442
    %v1444 = vrot.slane %v1295, %v1443
    %v1445 = vlaneseq
    %v1446 = vshrl.u32 %v1445, 7
    %v1447 = vsub.s32 6, %v1446
    %v1448 = vrot.slane %v1295, %v1447
    %v1449 = vlaneseq
    %v1450 = vshrl.u32 %v1449, 7
    %v1451 = vsub.s32 7, %v1450
    %v1452 = vrot.slane %v1295, %v1451
    %v1453 = vlaneseq
    %v1454 = vshrl.u32 %v1453, 7
    %v1455 = vsub.s32 0, %v1454
    %v1456 = vrot.slane %v1296, %v1455
    %v1457 = vlaneseq
    %v1458 = vshrl.u32 %v1457, 7
    %v1459 = vsub.s32 1, %v1458
    %v1460 = vrot.slane %v1296, %v1459
    %v1461 = vlaneseq
    %v1462 = vshrl.u32 %v1461, 7
    %v1463 = vsub.s32 2, %v1462
    %v1464 = vrot.slane %v1296, %v1463
    %v1465 = vlaneseq
    %v1466 = vshrl.u32 %v1465, 7
    %v1467 = vsub.s32 3, %v1466
    %v1468 = vrot.slane %v1296, %v1467
    %v1469 = vlaneseq
    %v1470 = vshrl.u32 %v1469, 7
    %v1471 = vsub.s32 4, %v1470
    %v1472 = vrot.slane %v1296, %v1471
    %v1473 = vlaneseq
    %v1474 = vshrl.u32 %v1473, 7
    %v1475 = vsub.s32 5, %v1474
    %v1476 = vrot.slane %v1296, %v1475
    %v1477 = vlaneseq
    %v1478 = vshrl.u32 %v1477, 7
    %v1479 = vsub.s32 6, %v1478
    %v1480 = vrot.slane %v1296, %v1479
    %v1481 = vlaneseq
    %v1482 = vshrl.u32 %v1481, 7
    %v1483 = vsub.s32 7, %v1482
    %v1484 = vrot.slane %v1296, %v1483
    %v1485 = vlaneseq
    %v1486 = vshrl.u32 %v1485, 7
    %v1487 = vsub.s32 0, %v1486
    %v1488 = vrot.slane %v1297, %v1487
    %v1489 = vlaneseq
    %v1490 = vshrl.u32 %v1489, 7
    %v1491 = vsub.s32 1, %v1490
    %v1492 = vrot.slane %v1297, %v1491
    %v1493 = vlaneseq
    %v1494 = vshrl.u32 %v1493, 7
    %v1495 = vsub.s32 2, %v1494
    %v1496 = vrot.slane %v1297, %v1495
    %v1497 = vlaneseq
    %v1498 = vshrl.u32 %v1497, 7
    %v1499 = vsub.s32 3, %v1498
    %v1500 = vrot.slane %v1297, %v1499
    %v1501 = vlaneseq
    %v1502 = vshrl.u32 %v1501, 7
    %v1503 = vsub.s32 4, %v1502
    %v1504 = vrot.slane %v1297, %v1503
    %v1505 = vlaneseq
    %v1506 = vshrl.u32 %v1505, 7
    %v1507 = vsub.s32 5, %v1506
    %v1508 = vrot.slane %v1297, %v1507
    %v1509 = vlaneseq
    %v1510 = vshrl.u32 %v1509, 7
    %v1511 = vsub.s32 6, %v1510
    %v1512 = vrot.slane %v1297, %v1511
    %v1513 = vlaneseq
    %v1514 = vshrl.u32 %v1513, 7
    %v1515 = vsub.s32 7, %v1514
    %v1516 = vrot.slane %v1297, %v1515
    %v1517 = vlaneseq
    %v1518 = vshrl.u32 %v1517, 7
    %v1519 = vsub.s32 0, %v1518
    %v1520 = vrot.slane %v1298, %v1519
    %v1521 = vlaneseq
    %v1522 = vshrl.u32 %v1521, 7
    %v1523 = vsub.s32 1, %v1522
    %v1524 = vrot.slane %v1298, %v1523
    %v1525 = vlaneseq
    %v1526 = vshrl.u32 %v1525, 7
    %v1527 = vsub.s32 2, %v1526
    %v1528 = vrot.slane %v1298, %v1527
    %v1529 = vlaneseq
    %v1530 = vshrl.u32 %v1529, 7
    %v1531 = vsub.s32 3, %v1530
    %v1532 = vrot.slane %v1298, %v1531
    %v1533 = vlaneseq
    %v1534 = vshrl.u32 %v1533, 7
    %v1535 = vsub.s32 4, %v1534
    %v1536 = vrot.slane %v1298, %v1535
    %v1537 = vlaneseq
    %v1538 = vshrl.u32 %v1537, 7
    %v1539 = vsub.s32 5, %v1538
    %v1540 = vrot.slane %v1298, %v1539
    %v1541 = vlaneseq
    %v1542 = vshrl.u32 %v1541, 7
    %v1543 = vsub.s32 6, %v1542
    %v1544 = vrot.slane %v1298, %v1543
    %v1545 = vlaneseq
    %v1546 = vshrl.u32 %v1545, 7
    %v1547 = vsub.s32 7, %v1546
    %v1548 = vrot.slane %v1298, %v1547
    %v1549 = vlaneseq
    %v1550 = vshrl.u32 %v1549, 7
    %v1551 = vsub.s32 0, %v1550
    %v1552 = vrot.slane %v1299, %v1551
    %v1553 = vlaneseq
    %v1554 = vshrl.u32 %v1553, 7
    %v1555 = vsub.s32 1, %v1554
    %v1556 = vrot.slane %v1299, %v1555
    %v1557 = vlaneseq
    %v1558 = vshrl.u32 %v1557, 7
    %v1559 = vsub.s32 2, %v1558
    %v1560 = vrot.slane %v1299, %v1559
    %v1561 = vlaneseq
    %v1562 = vshrl.u32 %v1561, 7
    %v1563 = vsub.s32 3, %v1562
    %v1564 = vrot.slane %v1299, %v1563
    %v1565 = vlaneseq
    %v1566 = vshrl.u32 %v1565, 7
    %v1567 = vsub.s32 4, %v1566
    %v1568 = vrot.slane %v1299, %v1567
    %v1569 = vlaneseq
    %v1570 = vshrl.u32 %v1569, 7
    %v1571 = vsub.s32 5, %v1570
    %v1572 = vrot.slane %v1299, %v1571
    %v1573 = vlaneseq
    %v1574 = vshrl.u32 %v1573, 7
    %v1575 = vsub.s32 6, %v1574
    %v1576 = vrot.slane %v1299, %v1575
    %v1577 = vlaneseq
    %v1578 = vshrl.u32 %v1577, 7
    %v1579 = vsub.s32 7, %v1578
    %v1580 = vrot.slane %v1299, %v1579
    %v1581 = vlaneseq
    %v1582 = vshrl.u32 %v1581, 7
    %v1583 = vsub.s32 0, %v1582
    %v1584 = vrot.slane %v1300, %v1583
    %v1585 = vlaneseq
    %v1586 = vshrl.u32 %v1585, 7
    %v1587 = vsub.s32 1, %v1586
    %v1588 = vrot.slane %v1300, %v1587
    %v1589 = vlaneseq
    %v1590 = vshrl.u32 %v1589, 7
    %v1591 = vsub.s32 2, %v1590
    %v1592 = vrot.slane %v1300, %v1591
    %v1593 = vlaneseq
    %v1594 = vshrl.u32 %v1593, 7
    %v1595 = vsub.s32 3, %v1594
    %v1596 = vrot.slane %v1300, %v1595
    %v1597 = vlaneseq
    %v1598 = vshrl.u32 %v1597, 7
    %v1599 = vsub.s32 4, %v1598
    %v1600 = vrot.slane %v1300, %v1599
    %v1601 = vlaneseq
    %v1602 = vshrl.u32 %v1601, 7
    %v1603 = vsub.s32 5, %v1602
    %v1604 = vrot.slane %v1300, %v1603
    %v1605 = vlaneseq
    %v1606 = vshrl.u32 %v1605, 7
    %v1607 = vsub.s32 6, %v1606
    %v1608 = vrot.slane %v1300, %v1607
    %v1609 = vlaneseq
    %v1610 = vshrl.u32 %v1609, 7
    %v1611 = vsub.s32 7, %v1610
    %v1612 = vrot.slane %v1300, %v1611
    %v1613 = vlaneseq
    %v1614 = vshrl.u32 %v1613, 7
    %v1615 = vsub.s32 0, %v1614
    %v1616 = vrot.slane %v1301, %v1615
    %v1617 = vlaneseq
    %v1618 = vshrl.u32 %v1617, 7
    %v1619 = vsub.s32 1, %v1618
    %v1620 = vrot.slane %v1301, %v1619
    %v1621 = vlaneseq
    %v1622 = vshrl.u32 %v1621, 7
    %v1623 = vsub.s32 2, %v1622
    %v1624 = vrot.slane %v1301, %v1623
    %v1625 = vlaneseq
    %v1626 = vshrl.u32 %v1625, 7
    %v1627 = vsub.s32 3, %v1626
    %v1628 = vrot.slane %v1301, %v1627
    %v1629 = vlaneseq
    %v1630 = vshrl.u32 %v1629, 7
    %v1631 = vsub.s32 4, %v1630
    %v1632 = vrot.slane %v1301, %v1631
    %v1633 = vlaneseq
    %v1634 = vshrl.u32 %v1633, 7
    %v1635 = vsub.s32 5, %v1634
    %v1636 = vrot.slane %v1301, %v1635
    %v1637 = vlaneseq
    %v1638 = vshrl.u32 %v1637, 7
    %v1639 = vsub.s32 6, %v1638
    %v1640 = vrot.slane %v1301, %v1639
    %v1641 = vlaneseq
    %v1642 = vshrl.u32 %v1641, 7
    %v1643 = vsub.s32 7, %v1642
    %v1644 = vrot.slane %v1301, %v1643
    %v1645 = vlaneseq
    %v1646 = vshrl.u32 %v1645, 7
    %v1647 = vsub.s32 0, %v1646
    %v1648 = vrot.slane %v1302, %v1647
    %v1649 = vlaneseq
    %v1650 = vshrl.u32 %v1649, 7
    %v1651 = vsub.s32 1, %v1650
    %v1652 = vrot.slane %v1302, %v1651
    %v1653 = vlaneseq
    %v1654 = vshrl.u32 %v1653, 7
    %v1655 = vsub.s32 2, %v1654
    %v1656 = vrot.slane %v1302, %v1655
    %v1657 = vlaneseq
    %v1658 = vshrl.u32 %v1657, 7
    %v1659 = vsub.s32 3, %v1658
    %v1660 = vrot.slane %v1302, %v1659
    %v1661 = vlaneseq
    %v1662 = vshrl.u32 %v1661, 7
    %v1663 = vsub.s32 4, %v1662
    %v1664 = vrot.slane %v1302, %v1663
    %v1665 = vlaneseq
    %v1666 = vshrl.u32 %v1665, 7
    %v1667 = vsub.s32 5, %v1666
    %v1668 = vrot.slane %v1302, %v1667
    %v1669 = vlaneseq
    %v1670 = vshrl.u32 %v1669, 7
    %v1671 = vsub.s32 6, %v1670
    %v1672 = vrot.slane %v1302, %v1671
    %v1673 = vlaneseq
    %v1674 = vshrl.u32 %v1673, 7
    %v1675 = vsub.s32 7, %v1674
    %v1676 = vrot.slane %v1302, %v1675
    %v1677 = vlaneseq
    %v1678 = vshrl.u32 %v1677, 7
    %v1679 = vsub.s32 0, %v1678
    %v1680 = vrot.slane %v1303, %v1679
    %v1681 = vlaneseq
    %v1682 = vshrl.u32 %v1681, 7
    %v1683 = vsub.s32 1, %v1682
    %v1684 = vrot.slane %v1303, %v1683
    %v1685 = vlaneseq
    %v1686 = vshrl.u32 %v1685, 7
    %v1687 = vsub.s32 2, %v1686
    %v1688 = vrot.slane %v1303, %v1687
    %v1689 = vlaneseq
    %v1690 = vshrl.u32 %v1689, 7
    %v1691 = vsub.s32 3, %v1690
    %v1692 = vrot.slane %v1303, %v1691
    %v1693 = vlaneseq
    %v1694 = vshrl.u32 %v1693, 7
    %v1695 = vsub.s32 4, %v1694
    %v1696 = vrot.slane %v1303, %v1695
    %v1697 = vlaneseq
    %v1698 = vshrl.u32 %v1697, 7
    %v1699 = vsub.s32 5, %v1698
    %v1700 = vrot.slane %v1303, %v1699
    %v1701 = vlaneseq
    %v1702 = vshrl.u32 %v1701, 7
    %v1703 = vsub.s32 6, %v1702
    %v1704 = vrot.slane %v1303, %v1703
    %v1705 = vlaneseq
    %v1706 = vshrl.u32 %v1705, 7
    %v1707 = vsub.s32 7, %v1706
    %v1708 = vrot.slane %v1303, %v1707
    %v1709 = vlaneseq
    %v1710 = vshrl.u32 %v1709, 7
    %v1711 = vsub.s32 0, %v1710
    %v1712 = vrot.slane %v1304, %v1711
    %v1713 = vlaneseq
    %v1714 = vshrl.u32 %v1713, 7
    %v1715 = vsub.s32 1, %v1714
    %v1716 = vrot.slane %v1304, %v1715
    %v1717 = vlaneseq
    %v1718 = vshrl.u32 %v1717, 7
    %v1719 = vsub.s32 2, %v1718
    %v1720 = vrot.slane %v1304, %v1719
    %v1721 = vlaneseq
    %v1722 = vshrl.u32 %v1721, 7
    %v1723 = vsub.s32 3, %v1722
    %v1724 = vrot.slane %v1304, %v1723
    %v1725 = vlaneseq
    %v1726 = vshrl.u32 %v1725, 7
    %v1727 = vsub.s32 4, %v1726
    %v1728 = vrot.slane %v1304, %v1727
    %v1729 = vlaneseq
    %v1730 = vshrl.u32 %v1729, 7
    %v1731 = vsub.s32 5, %v1730
    %v1732 = vrot.slane %v1304, %v1731
    %v1733 = vlaneseq
    %v1734 = vshrl.u32 %v1733, 7
    %v1735 = vsub.s32 6, %v1734
    %v1736 = vrot.slane %v1304, %v1735
    %v1737 = vlaneseq
    %v1738 = vshrl.u32 %v1737, 7
    %v1739 = vsub.s32 7, %v1738
    %v1740 = vrot.slane %v1304, %v1739
    %v1741 = vlaneseq
    %v1742 = vshrl.u32 %v1741, 7
    %v1743 = vsub.s32 0, %v1742
    %v1744 = vrot.slane %v1305, %v1743
    %v1745 = vlaneseq
    %v1746 = vshrl.u32 %v1745, 7
    %v1747 = vsub.s32 1, %v1746
    %v1748 = vrot.slane %v1305, %v1747
    %v1749 = vlaneseq
    %v1750 = vshrl.u32 %v1749, 7
    %v1751 = vsub.s32 2, %v1750
    %v1752 = vrot.slane %v1305, %v1751
    %v1753 = vlaneseq
    %v1754 = vshrl.u32 %v1753, 7
    %v1755 = vsub.s32 3, %v1754
    %v1756 = vrot.slane %v1305, %v1755
    %v1757 = vlaneseq
    %v1758 = vshrl.u32 %v1757, 7
    %v1759 = vsub.s32 4, %v1758
    %v1760 = vrot.slane %v1305, %v1759
    %v1761 = vlaneseq
    %v1762 = vshrl.u32 %v1761, 7
    %v1763 = vsub.s32 5, %v1762
    %v1764 = vrot.slane %v1305, %v1763
    %v1765 = vlaneseq
    %v1766 = vshrl.u32 %v1765, 7
    %v1767 = vsub.s32 6, %v1766
    %v1768 = vrot.slane %v1305, %v1767
    %v1769 = vlaneseq
    %v1770 = vshrl.u32 %v1769, 7
    %v1771 = vsub.s32 7, %v1770
    %v1772 = vrot.slane %v1305, %v1771
    %v1773 = vlaneseq
    %v1774 = vshrl.u32 %v1773, 7
    %v1775 = vsub.s32 0, %v1774
    %v1776 = vrot.slane %v1306, %v1775
    %v1777 = vlaneseq
    %v1778 = vshrl.u32 %v1777, 7
    %v1779 = vsub.s32 1, %v1778
    %v1780 = vrot.slane %v1306, %v1779
    %v1781 = vlaneseq
    %v1782 = vshrl.u32 %v1781, 7
    %v1783 = vsub.s32 2, %v1782
    %v1784 = vrot.slane %v1306, %v1783
    %v1785 = vlaneseq
    %v1786 = vshrl.u32 %v1785, 7
    %v1787 = vsub.s32 3, %v1786
    %v1788 = vrot.slane %v1306, %v1787
    %v1789 = vlaneseq
    %v1790 = vshrl.u32 %v1789, 7
    %v1791 = vsub.s32 4, %v1790
    %v1792 = vrot.slane %v1306, %v1791
    %v1793 = vlaneseq
    %v1794 = vshrl.u32 %v1793, 7
    %v1795 = vsub.s32 5, %v1794
    %v1796 = vrot.slane %v1306, %v1795
    %v1797 = vlaneseq
    %v1798 = vshrl.u32 %v1797, 7
    %v1799 = vsub.s32 6, %v1798
    %v1800 = vrot.slane %v1306, %v1799
    %v1801 = vlaneseq
    %v1802 = vshrl.u32 %v1801, 7
    %v1803 = vsub.s32 7, %v1802
    %v1804 = vrot.slane %v1306, %v1803
    %v1805 = vlaneseq
    %v1806 = vshrl.u32 %v1805, 7
    %v1807 = vsub.s32 0, %v1806
    %v1808 = vrot.slane %v1307, %v1807
    %v1809 = vlaneseq
    %v1810 = vshrl.u32 %v1809, 7
    %v1811 = vsub.s32 1, %v1810
    %v1812 = vrot.slane %v1307, %v1811
    %v1813 = vlaneseq
    %v1814 = vshrl.u32 %v1813, 7
    %v1815 = vsub.s32 2, %v1814
    %v1816 = vrot.slane %v1307, %v1815
    %v1817 = vlaneseq
    %v1818 = vshrl.u32 %v1817, 7
    %v1819 = vsub.s32 3, %v1818
    %v1820 = vrot.slane %v1307, %v1819
    %v1821 = vlaneseq
    %v1822 = vshrl.u32 %v1821, 7
    %v1823 = vsub.s32 4, %v1822
    %v1824 = vrot.slane %v1307, %v1823
    %v1825 = vlaneseq
    %v1826 = vshrl.u32 %v1825, 7
    %v1827 = vsub.s32 5, %v1826
    %v1828 = vrot.slane %v1307, %v1827
    %v1829 = vlaneseq
    %v1830 = vshrl.u32 %v1829, 7
    %v1831 = vsub.s32 6, %v1830
    %v1832 = vrot.slane %v1307, %v1831
    %v1833 = vlaneseq
    %v1834 = vshrl.u32 %v1833, 7
    %v1835 = vsub.s32 7, %v1834
    %v1836 = vrot.slane %v1307, %v1835
    %v1837 = vlaneseq
    %v1838 = vshrl.u32 %v1837, 7
    %v1839 = vsub.s32 0, %v1838
    %v1840 = vrot.slane %v1308, %v1839
    %v1841 = vlaneseq
    %v1842 = vshrl.u32 %v1841, 7
    %v1843 = vsub.s32 1, %v1842
    %v1844 = vrot.slane %v1308, %v1843
    %v1845 = vlaneseq
    %v1846 = vshrl.u32 %v1845, 7
    %v1847 = vsub.s32 2, %v1846
    %v1848 = vrot.slane %v1308, %v1847
    %v1849 = vlaneseq
    %v1850 = vshrl.u32 %v1849, 7
    %v1851 = vsub.s32 3, %v1850
    %v1852 = vrot.slane %v1308, %v1851
    %v1853 = vlaneseq
    %v1854 = vshrl.u32 %v1853, 7
    %v1855 = vsub.s32 4, %v1854
    %v1856 = vrot.slane %v1308, %v1855
    %v1857 = vlaneseq
    %v1858 = vshrl.u32 %v1857, 7
    %v1859 = vsub.s32 5, %v1858
    %v1860 = vrot.slane %v1308, %v1859
    %v1861 = vlaneseq
    %v1862 = vshrl.u32 %v1861, 7
    %v1863 = vsub.s32 6, %v1862
    %v1864 = vrot.slane %v1308, %v1863
    %v1865 = vlaneseq
    %v1866 = vshrl.u32 %v1865, 7
    %v1867 = vsub.s32 7, %v1866
    %v1868 = vrot.slane %v1308, %v1867
    %v1869 = vlaneseq
    %v1870 = vshrl.u32 %v1869, 7
    %v1871 = vsub.s32 0, %v1870
    %v1872 = vrot.slane %v1309, %v1871
    %v1873 = vlaneseq
    %v1874 = vshrl.u32 %v1873, 7
    %v1875 = vsub.s32 1, %v1874
    %v1876 = vrot.slane %v1309, %v1875
    %v1877 = vlaneseq
    %v1878 = vshrl.u32 %v1877, 7
    %v1879 = vsub.s32 2, %v1878
    %v1880 = vrot.slane %v1309, %v1879
    %v1881 = vlaneseq
    %v1882 = vshrl.u32 %v1881, 7
    %v1883 = vsub.s32 3, %v1882
    %v1884 = vrot.slane %v1309, %v1883
    %v1885 = vlaneseq
    %v1886 = vshrl.u32 %v1885, 7
    %v1887 = vsub.s32 4, %v1886
    %v1888 = vrot.slane %v1309, %v1887
    %v1889 = vlaneseq
    %v1890 = vshrl.u32 %v1889, 7
    %v1891 = vsub.s32 5, %v1890
    %v1892 = vrot.slane %v1309, %v1891
    %v1893 = vlaneseq
    %v1894 = vshrl.u32 %v1893, 7
    %v1895 = vsub.s32 6, %v1894
    %v1896 = vrot.slane %v1309, %v1895
    %v1897 = vlaneseq
    %v1898 = vshrl.u32 %v1897, 7
    %v1899 = vsub.s32 7, %v1898
    %v1900 = vrot.slane %v1309, %v1899
    %v1901 = vlaneseq
    %v1902 = vshrl.u32 %v1901, 7
    %v1903 = vsub.s32 0, %v1902
    %v1904 = vrot.slane %v1310, %v1903
    %v1905 = vlaneseq
    %v1906 = vshrl.u32 %v1905, 7
    %v1907 = vsub.s32 1, %v1906
    %v1908 = vrot.slane %v1310, %v1907
    %v1909 = vlaneseq
    %v1910 = vshrl.u32 %v1909, 7
    %v1911 = vsub.s32 2, %v1910
    %v1912 = vrot.slane %v1310, %v1911
    %v1913 = vlaneseq
    %v1914 = vshrl.u32 %v1913, 7
    %v1915 = vsub.s32 3, %v1914
    %v1916 = vrot.slane %v1310, %v1915
    %v1917 = vlaneseq
    %v1918 = vshrl.u32 %v1917, 7
    %v1919 = vsub.s32 4, %v1918
    %v1920 = vrot.slane %v1310, %v1919
    %v1921 = vlaneseq
    %v1922 = vshrl.u32 %v1921, 7
    %v1923 = vsub.s32 5, %v1922
    %v1924 = vrot.slane %v1310, %v1923
    %v1925 = vlaneseq
    %v1926 = vshrl.u32 %v1925, 7
    %v1927 = vsub.s32 6, %v1926
    %v1928 = vrot.slane %v1310, %v1927
    %v1929 = vlaneseq
    %v1930 = vshrl.u32 %v1929, 7
    %v1931 = vsub.s32 7, %v1930
    %v1932 = vrot.slane %v1310, %v1931
    %v1933 = vlaneseq
    %v1934 = vshrl.u32 %v1933, 7
    %v1935 = vsub.s32 0, %v1934
    %v1936 = vrot.slane %v1311, %v1935
    %v1937 = vlaneseq
    %v1938 = vshrl.u32 %v1937, 7
    %v1939 = vsub.s32 1, %v1938
    %v1940 = vrot.slane %v1311, %v1939
    %v1941 = vlaneseq
    %v1942 = vshrl.u32 %v1941, 7
    %v1943 = vsub.s32 2, %v1942
    %v1944 = vrot.slane %v1311, %v1943
    %v1945 = vlaneseq
    %v1946 = vshrl.u32 %v1945, 7
    %v1947 = vsub.s32 3, %v1946
    %v1948 = vrot.slane %v1311, %v1947
    %v1949 = vlaneseq
    %v1950 = vshrl.u32 %v1949, 7
    %v1951 = vsub.s32 4, %v1950
    %v1952 = vrot.slane %v1311, %v1951
    %v1953 = vlaneseq
    %v1954 = vshrl.u32 %v1953, 7
    %v1955 = vsub.s32 5, %v1954
    %v1956 = vrot.slane %v1311, %v1955
    %v1957 = vlaneseq
    %v1958 = vshrl.u32 %v1957, 7
    %v1959 = vsub.s32 6, %v1958
    %v1960 = vrot.slane %v1311, %v1959
    %v1961 = vlaneseq
    %v1962 = vshrl.u32 %v1961, 7
    %v1963 = vsub.s32 7, %v1962
    %v1964 = vrot.slane %v1311, %v1963
    %v1965 = vlaneseq
    %v1966 = vshrl.u32 %v1965, 7
    %v1967 = vsub.s32 0, %v1966
    %v1968 = vrot.slane %v1312, %v1967
    %v1969 = vlaneseq
    %v1970 = vshrl.u32 %v1969, 7
    %v1971 = vsub.s32 1, %v1970
    %v1972 = vrot.slane %v1312, %v1971
    %v1973 = vlaneseq
    %v1974 = vshrl.u32 %v1973, 7
    %v1975 = vsub.s32 2, %v1974
    %v1976 = vrot.slane %v1312, %v1975
    %v1977 = vlaneseq
    %v1978 = vshrl.u32 %v1977, 7
    %v1979 = vsub.s32 3, %v1978
    %v1980 = vrot.slane %v1312, %v1979
    %v1981 = vlaneseq
    %v1982 = vshrl.u32 %v1981, 7
    %v1983 = vsub.s32 4, %v1982
    %v1984 = vrot.slane %v1312, %v1983
    %v1985 = vlaneseq
    %v1986 = vshrl.u32 %v1985, 7
    %v1987 = vsub.s32 5, %v1986
    %v1988 = vrot.slane %v1312, %v1987
    %v1989 = vlaneseq
    %v1990 = vshrl.u32 %v1989, 7
    %v1991 = vsub.s32 6, %v1990
    %v1992 = vrot.slane %v1312, %v1991
    %v1993 = vlaneseq
    %v1994 = vshrl.u32 %v1993, 7
    %v1995 = vsub.s32 7, %v1994
    %v1996 = vrot.slane %v1312, %v1995
    %v1997 = vlaneseq
    %v1998 = vshrl.u32 %v1997, 7
    %v1999 = vsub.s32 0, %v1998
    %v2000 = vrot.slane %v1313, %v1999
    %v2001 = vlaneseq
    %v2002 = vshrl.u32 %v2001, 7
    %v2003 = vsub.s32 1, %v2002
    %v2004 = vrot.slane %v1313, %v2003
    %v2005 = vlaneseq
    %v2006 = vshrl.u32 %v2005, 7
    %v2007 = vsub.s32 2, %v2006
    %v2008 = vrot.slane %v1313, %v2007
    %v2009 = vlaneseq
    %v2010 = vshrl.u32 %v2009, 7
    %v2011 = vsub.s32 3, %v2010
    %v2012 = vrot.slane %v1313, %v2011
    %v2013 = vlaneseq
    %v2014 = vshrl.u32 %v2013, 7
    %v2015 = vsub.s32 4, %v2014
    %v2016 = vrot.slane %v1313, %v2015
    %v2017 = vlaneseq
    %v2018 = vshrl.u32 %v2017, 7
    %v2019 = vsub.s32 5, %v2018
    %v2020 = vrot.slane %v1313, %v2019
    %v2021 = vlaneseq
    %v2022 = vshrl.u32 %v2021, 7
    %v2023 = vsub.s32 6, %v2022
    %v2024 = vrot.slane %v1313, %v2023
    %v2025 = vlaneseq
    %v2026 = vshrl.u32 %v2025, 7
    %v2027 = vsub.s32 7, %v2026
    %v2028 = vrot.slane %v1313, %v2027
    %v2029 = vlaneseq
    %v2030 = vshrl.u32 %v2029, 7
    %v2031 = vsub.s32 0, %v2030
    %v2032 = vrot.slane %v1314, %v2031
    %v2033 = vlaneseq
    %v2034 = vshrl.u32 %v2033, 7
    %v2035 = vsub.s32 1, %v2034
    %v2036 = vrot.slane %v1314, %v2035
    %v2037 = vlaneseq
    %v2038 = vshrl.u32 %v2037, 7
    %v2039 = vsub.s32 2, %v2038
    %v2040 = vrot.slane %v1314, %v2039
    %v2041 = vlaneseq
    %v2042 = vshrl.u32 %v2041, 7
    %v2043 = vsub.s32 3, %v2042
    %v2044 = vrot.slane %v1314, %v2043
    %v2045 = vlaneseq
    %v2046 = vshrl.u32 %v2045, 7
    %v2047 = vsub.s32 4, %v2046
    %v2048 = vrot.slane %v1314, %v2047
    %v2049 = vlaneseq
    %v2050 = vshrl.u32 %v2049, 7
    %v2051 = vsub.s32 5, %v2050
    %v2052 = vrot.slane %v1314, %v2051
    %v2053 = vlaneseq
    %v2054 = vshrl.u32 %v2053, 7
    %v2055 = vsub.s32 6, %v2054
    %v2056 = vrot.slane %v1314, %v2055
    %v2057 = vlaneseq
    %v2058 = vshrl.u32 %v2057, 7
    %v2059 = vsub.s32 7, %v2058
    %v2060 = vrot.slane %v1314, %v2059
    %v2061 = vlaneseq
    %v2062 = vshrl.u32 %v2061, 7
    %v2063 = vsub.s32 0, %v2062
    %v2064 = vrot.slane %v1315, %v2063
    %v2065 = vlaneseq
    %v2066 = vshrl.u32 %v2065, 7
    %v2067 = vsub.s32 1, %v2066
    %v2068 = vrot.slane %v1315, %v2067
    %v2069 = vlaneseq
    %v2070 = vshrl.u32 %v2069, 7
    %v2071 = vsub.s32 2, %v2070
    %v2072 = vrot.slane %v1315, %v2071
    %v2073 = vlaneseq
    %v2074 = vshrl.u32 %v2073, 7
    %v2075 = vsub.s32 3, %v2074
    %v2076 = vrot.slane %v1315, %v2075
    %v2077 = vlaneseq
    %v2078 = vshrl.u32 %v2077, 7
    %v2079 = vsub.s32 4, %v2078
    %v2080 = vrot.slane %v1315, %v2079
    %v2081 = vlaneseq
    %v2082 = vshrl.u32 %v2081, 7
    %v2083 = vsub.s32 5, %v2082
    %v2084 = vrot.slane %v1315, %v2083
    %v2085 = vlaneseq
    %v2086 = vshrl.u32 %v2085, 7
    %v2087 = vsub.s32 6, %v2086
    %v2088 = vrot.slane %v1315, %v2087
    %v2089 = vlaneseq
    %v2090 = vshrl.u32 %v2089, 7
    %v2091 = vsub.s32 7, %v2090
    %v2092 = vrot.slane %v1315, %v2091
    %v2093 = vlaneseq
    %v2094 = vshrl.u32 %v2093, 7
    %v2095 = vsub.s32 0, %v2094
    %v2096 = vrot.slane %v1316, %v2095
    %v2097 = vlaneseq
    %v2098 = vshrl.u32 %v2097, 7
    %v2099 = vsub.s32 1, %v2098
    %v2100 = vrot.slane %v1316, %v2099
    %v2101 = vlaneseq
    %v2102 = vshrl.u32 %v2101, 7
    %v2103 = vsub.s32 2, %v2102
    %v2104 = vrot.slane %v1316, %v2103
    %v2105 = vlaneseq
    %v2106 = vshrl.u32 %v2105, 7
    %v2107 = vsub.s32 3, %v2106
    %v2108 = vrot.slane %v1316, %v2107
    %v2109 = vlaneseq
    %v2110 = vshrl.u32 %v2109, 7
    %v2111 = vsub.s32 4, %v2110
    %v2112 = vrot.slane %v1316, %v2111
    %v2113 = vlaneseq
    %v2114 = vshrl.u32 %v2113, 7
    %v2115 = vsub.s32 5, %v2114
    %v2116 = vrot.slane %v1316, %v2115
    %v2117 = vlaneseq
    %v2118 = vshrl.u32 %v2117, 7
    %v2119 = vsub.s32 6, %v2118
    %v2120 = vrot.slane %v1316, %v2119
    %v2121 = vlaneseq
    %v2122 = vshrl.u32 %v2121, 7
    %v2123 = vsub.s32 7, %v2122
    %v2124 = vrot.slane %v1316, %v2123
    %v2125 = vlaneseq
    %v2126 = vshrl.u32 %v2125, 7
    %v2127 = vsub.s32 0, %v2126
    %v2128 = vrot.slane %v1317, %v2127
    %v2129 = vlaneseq
    %v2130 = vshrl.u32 %v2129, 7
    %v2131 = vsub.s32 1, %v2130
    %v2132 = vrot.slane %v1317, %v2131
    %v2133 = vlaneseq
    %v2134 = vshrl.u32 %v2133, 7
    %v2135 = vsub.s32 2, %v2134
    %v2136 = vrot.slane %v1317, %v2135
    %v2137 = vlaneseq
    %v2138 = vshrl.u32 %v2137, 7
    %v2139 = vsub.s32 3, %v2138
    %v2140 = vrot.slane %v1317, %v2139
    %v2141 = vlaneseq
    %v2142 = vshrl.u32 %v2141, 7
    %v2143 = vsub.s32 4, %v2142
    %v2144 = vrot.slane %v1317, %v2143
    %v2145 = vlaneseq
    %v2146 = vshrl.u32 %v2145, 7
    %v2147 = vsub.s32 5, %v2146
    %v2148 = vrot.slane %v1317, %v2147
    %v2149 = vlaneseq
    %v2150 = vshrl.u32 %v2149, 7
    %v2151 = vsub.s32 6, %v2150
    %v2152 = vrot.slane %v1317, %v2151
    %v2153 = vlaneseq
    %v2154 = vshrl.u32 %v2153, 7
    %v2155 = vsub.s32 7, %v2154
    %v2156 = vrot.slane %v1317, %v2155
    %v2157 = vlaneseq
    %v2158 = vshrl.u32 %v2157, 7
    %v2159 = vsub.s32 0, %v2158
    %v2160 = vrot.slane %v1318, %v2159
    %v2161 = vlaneseq
    %v2162 = vshrl.u32 %v2161, 7
    %v2163 = vsub.s32 1, %v2162
    %v2164 = vrot.slane %v1318, %v2163
    %v2165 = vlaneseq
    %v2166 = vshrl.u32 %v2165, 7
    %v2167 = vsub.s32 2, %v2166
    %v2168 = vrot.slane %v1318, %v2167
    %v2169 = vlaneseq
    %v2170 = vshrl.u32 %v2169, 7
    %v2171 = vsub.s32 3, %v2170
    %v2172 = vrot.slane %v1318, %v2171
    %v2173 = vlaneseq
    %v2174 = vshrl.u32 %v2173, 7
    %v2175 = vsub.s32 4, %v2174
    %v2176 = vrot.slane %v1318, %v2175
    %v2177 = vlaneseq
    %v2178 = vshrl.u32 %v2177, 7
    %v2179 = vsub.s32 5, %v2178
    %v2180 = vrot.slane %v1318, %v2179
    %v2181 = vlaneseq
    %v2182 = vshrl.u32 %v2181, 7
    %v2183 = vsub.s32 6, %v2182
    %v2184 = vrot.slane %v1318, %v2183
    %v2185 = vlaneseq
    %v2186 = vshrl.u32 %v2185, 7
    %v2187 = vsub.s32 7, %v2186
    %v2188 = vrot.slane %v1318, %v2187
    %v2189 = vlaneseq
    %v2190 = vshrl.u32 %v2189, 7
    %v2191 = vsub.s32 0, %v2190
    %v2192 = vrot.slane %v1319, %v2191
    %v2193 = vlaneseq
    %v2194 = vshrl.u32 %v2193, 7
    %v2195 = vsub.s32 1, %v2194
    %v2196 = vrot.slane %v1319, %v2195
    %v2197 = vlaneseq
    %v2198 = vshrl.u32 %v2197, 7
    %v2199 = vsub.s32 2, %v2198
    %v2200 = vrot.slane %v1319, %v2199
    %v2201 = vlaneseq
    %v2202 = vshrl.u32 %v2201, 7
    %v2203 = vsub.s32 3, %v2202
    %v2204 = vrot.slane %v1319, %v2203
    %v2205 = vlaneseq
    %v2206 = vshrl.u32 %v2205, 7
    %v2207 = vsub.s32 4, %v2206
    %v2208 = vrot.slane %v1319, %v2207
    %v2209 = vlaneseq
    %v2210 = vshrl.u32 %v2209, 7
    %v2211 = vsub.s32 5, %v2210
    %v2212 = vrot.slane %v1319, %v2211
    %v2213 = vlaneseq
    %v2214 = vshrl.u32 %v2213, 7
    %v2215 = vsub.s32 6, %v2214
    %v2216 = vrot.slane %v1319, %v2215
    %v2217 = vlaneseq
    %v2218 = vshrl.u32 %v2217, 7
    %v2219 = vsub.s32 7, %v2218
    %v2220 = vrot.slane %v1319, %v2219
    %v2221 = vlaneseq
    %v2222 = vshrl.u32 %v2221, 7
    %v2223 = vsub.s32 0, %v2222
    %v2224 = vrot.slane %v1320, %v2223
    %v2225 = vlaneseq
    %v2226 = vshrl.u32 %v2225, 7
    %v2227 = vsub.s32 1, %v2226
    %v2228 = vrot.slane %v1320, %v2227
    %v2229 = vlaneseq
    %v2230 = vshrl.u32 %v2229, 7
    %v2231 = vsub.s32 2, %v2230
    %v2232 = vrot.slane %v1320, %v2231
    %v2233 = vlaneseq
    %v2234 = vshrl.u32 %v2233, 7
    %v2235 = vsub.s32 3, %v2234
    %v2236 = vrot.slane %v1320, %v2235
    %v2237 = vlaneseq
    %v2238 = vshrl.u32 %v2237, 7
    %v2239 = vsub.s32 4, %v2238
    %v2240 = vrot.slane %v1320, %v2239
    %v2241 = vlaneseq
    %v2242 = vshrl.u32 %v2241, 7
    %v2243 = vsub.s32 5, %v2242
    %v2244 = vrot.slane %v1320, %v2243
    %v2245 = vlaneseq
    %v2246 = vshrl.u32 %v2245, 7
    %v2247 = vsub.s32 6, %v2246
    %v2248 = vrot.slane %v1320, %v2247
    %v2249 = vlaneseq
    %v2250 = vshrl.u32 %v2249, 7
    %v2251 = vsub.s32 7, %v2250
    %v2252 = vrot.slane %v1320, %v2251
    %v2253 = vlaneseq
    %v2254 = vshrl.u32 %v2253, 7
    %v2255 = vsub.s32 0, %v2254
    %v2256 = vrot.slane %v1321, %v2255
    %v2257 = vlaneseq
    %v2258 = vshrl.u32 %v2257, 7
    %v2259 = vsub.s32 1, %v2258
    %v2260 = vrot.slane %v1321, %v2259
    %v2261 = vlaneseq
    %v2262 = vshrl.u32 %v2261, 7
    %v2263 = vsub.s32 2, %v2262
    %v2264 = vrot.slane %v1321, %v2263
    %v2265 = vlaneseq
    %v2266 = vshrl.u32 %v2265, 7
    %v2267 = vsub.s32 3, %v2266
    %v2268 = vrot.slane %v1321, %v2267
    %v2269 = vlaneseq
    %v2270 = vshrl.u32 %v2269, 7
    %v2271 = vsub.s32 4, %v2270
    %v2272 = vrot.slane %v1321, %v2271
    %v2273 = vlaneseq
    %v2274 = vshrl.u32 %v2273, 7
    %v2275 = vsub.s32 5, %v2274
    %v2276 = vrot.slane %v1321, %v2275
    %v2277 = vlaneseq
    %v2278 = vshrl.u32 %v2277, 7
    %v2279 = vsub.s32 6, %v2278
    %v2280 = vrot.slane %v1321, %v2279
    %v2281 = vlaneseq
    %v2282 = vshrl.u32 %v2281, 7
    %v2283 = vsub.s32 7, %v2282
    %v2284 = vrot.slane %v1321, %v2283
    %v2285 = vlaneseq
    %v2286 = vshrl.u32 %v2285, 7
    %v2287 = vsub.s32 0, %v2286
    %v2288 = vrot.slane %v1322, %v2287
    %v2289 = vlaneseq
    %v2290 = vshrl.u32 %v2289, 7
    %v2291 = vsub.s32 1, %v2290
    %v2292 = vrot.slane %v1322, %v2291
    %v2293 = vlaneseq
    %v2294 = vshrl.u32 %v2293, 7
    %v2295 = vsub.s32 2, %v2294
    %v2296 = vrot.slane %v1322, %v2295
    %v2297 = vlaneseq
    %v2298 = vshrl.u32 %v2297, 7
    %v2299 = vsub.s32 3, %v2298
    %v2300 = vrot.slane %v1322, %v2299
    %v2301 = vlaneseq
    %v2302 = vshrl.u32 %v2301, 7
    %v2303 = vsub.s32 4, %v2302
    %v2304 = vrot.slane %v1322, %v2303
    %v2305 = vlaneseq
    %v2306 = vshrl.u32 %v2305, 7
    %v2307 = vsub.s32 5, %v2306
    %v2308 = vrot.slane %v1322, %v2307
    %v2309 = vlaneseq
    %v2310 = vshrl.u32 %v2309, 7
    %v2311 = vsub.s32 6, %v2310
    %v2312 = vrot.slane %v1322, %v2311
    %v2313 = vlaneseq
    %v2314 = vshrl.u32 %v2313, 7
    %v2315 = vsub.s32 7, %v2314
    %v2316 = vrot.slane %v1322, %v2315
    %v2317 = vlaneseq
    %v2318 = vshrl.u32 %v2317, 7
    %v2319 = vsub.s32 0, %v2318
    %v2320 = vrot.slane %v1323, %v2319
    %v2321 = vlaneseq
    %v2322 = vshrl.u32 %v2321, 7
    %v2323 = vsub.s32 1, %v2322
    %v2324 = vrot.slane %v1323, %v2323
    %v2325 = vlaneseq
    %v2326 = vshrl.u32 %v2325, 7
    %v2327 = vsub.s32 2, %v2326
    %v2328 = vrot.slane %v1323, %v2327
    %v2329 = vlaneseq
    %v2330 = vshrl.u32 %v2329, 7
    %v2331 = vsub.s32 3, %v2330
    %v2332 = vrot.slane %v1323, %v2331
    %v2333 = vlaneseq
    %v2334 = vshrl.u32 %v2333, 7
    %v2335 = vsub.s32 4, %v2334
    %v2336 = vrot.slane %v1323, %v2335
    %v2337 = vlaneseq
    %v2338 = vshrl.u32 %v2337, 7
    %v2339 = vsub.s32 5, %v2338
    %v2340 = vrot.slane %v1323, %v2339
    %v2341 = vlaneseq
    %v2342 = vshrl.u32 %v2341, 7
    %v2343 = vsub.s32 6, %v2342
    %v2344 = vrot.slane %v1323, %v2343
    %v2345 = vlaneseq
    %v2346 = vshrl.u32 %v2345, 7
    %v2347 = vsub.s32 7, %v2346
    %v2348 = vrot.slane %v1323, %v2347
    %v2349 = vlaneseq
    %v2350 = vshrl.u32 %v2349, 7
    %v2351 = vsub.s32 0, %v2350
    %v2352 = vrot.slane %v1324, %v2351
    %v2353 = vlaneseq
    %v2354 = vshrl.u32 %v2353, 7
    %v2355 = vsub.s32 1, %v2354
    %v2356 = vrot.slane %v1324, %v2355
    %v2357 = vlaneseq
    %v2358 = vshrl.u32 %v2357, 7
    %v2359 = vsub.s32 2, %v2358
    %v2360 = vrot.slane %v1324, %v2359
    %v2361 = vlaneseq
    %v2362 = vshrl.u32 %v2361, 7
    %v2363 = vsub.s32 3, %v2362
    %v2364 = vrot.slane %v1324, %v2363
    %v2365 = vlaneseq
    %v2366 = vshrl.u32 %v2365, 7
    %v2367 = vsub.s32 4, %v2366
    %v2368 = vrot.slane %v1324, %v2367
    %v2369 = vlaneseq
    %v2370 = vshrl.u32 %v2369, 7
    %v2371 = vsub.s32 5, %v2370
    %v2372 = vrot.slane %v1324, %v2371
    %v2373 = vlaneseq
    %v2374 = vshrl.u32 %v2373, 7
    %v2375 = vsub.s32 6, %v2374
    %v2376 = vrot.slane %v1324, %v2375
    %v2377 = vlaneseq
    %v2378 = vshrl.u32 %v2377, 7
    %v2379 = vsub.s32 7, %v2378
    %v2380 = vrot.slane %v1324, %v2379
    %v2381 = vcombine.low %v1360, %v1364
    %v2382 = vcombine.low %v1368, %v1372
    %v2383 = vcombine.low %v1376, %v1380
    %v2384 = vcombine.low %v1384, %v1388
    %v2386 = vunpack.c.l.s4 1966171168
    %v2387 = vunpack.c.0.s8 %v2386
    %v2388 = vlaneseq
    %v2389 = vshrl.u32 %v2388, 7
    %v2390 = vsub.s32 %v2387, %v2389
    %v2391 = vrot.slane %v2381, %v2390
    %v2393 = vunpack.c.l.s4 1966171168
    %v2394 = vunpack.c.0.s8 %v2393
    %v2395 = vlaneseq
    %v2396 = vshrl.u32 %v2395, 7
    %v2397 = vsub.s32 %v2394, %v2396
    %v2398 = vrot.slane %v2382, %v2397
    %v2400 = vunpack.c.l.s4 1966171168
    %v2401 = vunpack.c.0.s8 %v2400
    %v2402 = vlaneseq
    %v2403 = vshrl.u32 %v2402, 7
    %v2404 = vsub.s32 %v2401, %v2403
    %v2405 = vrot.slane %v2383, %v2404
    %v2407 = vunpack.c.l.s4 1966171168
    %v2408 = vunpack.c.0.s8 %v2407
    %v2409 = vlaneseq
    %v2410 = vshrl.u32 %v2409, 7
    %v2411 = vsub.s32 %v2408, %v2410
    %v2412 = vrot.slane %v2384, %v2411
    %v2413 = vcombine.low %v2391, %v2398
    %v2414 = vcombine.low %v2405, %v2412
    %v2416 = vunpack.c.l.s4 1966171168
    %v2417 = vunpack.c.0.s8 %v2416
    %v2418 = vlaneseq
    %v2419 = vshrl.u32 %v2418, 7
    %v2420 = vsub.s32 %v2417, %v2419
    %v2421 = vrot.slane %v2413, %v2420
    %v2423 = vunpack.c.l.s4 1966171168
    %v2424 = vunpack.c.0.s8 %v2423
    %v2425 = vlaneseq
    %v2426 = vshrl.u32 %v2425, 7
    %v2427 = vsub.s32 %v2424, %v2426
    %v2428 = vrot.slane %v2414, %v2427
    %v2429 = vcombine.low %v2421, %v2428
    %v2430 = vcombine.low %v1392, %v1396
    %v2431 = vcombine.low %v1400, %v1404
    %v2432 = vcombine.low %v1408, %v1412
    %v2433 = vcombine.low %v1416, %v1420
    %v2435 = vunpack.c.l.s4 1966171168
    %v2436 = vunpack.c.0.s8 %v2435
    %v2437 = vlaneseq
    %v2438 = vshrl.u32 %v2437, 7
    %v2439 = vsub.s32 %v2436, %v2438
    %v2440 = vrot.slane %v2430, %v2439
    %v2442 = vunpack.c.l.s4 1966171168
    %v2443 = vunpack.c.0.s8 %v2442
    %v2444 = vlaneseq
    %v2445 = vshrl.u32 %v2444, 7
    %v2446 = vsub.s32 %v2443, %v2445
    %v2447 = vrot.slane %v2431, %v2446
    %v2449 = vunpack.c.l.s4 1966171168
    %v2450 = vunpack.c.0.s8 %v2449
    %v2451 = vlaneseq
    %v2452 = vshrl.u32 %v2451, 7
    %v2453 = vsub.s32 %v2450, %v2452
    %v2454 = vrot.slane %v2432, %v2453
    %v2456 = vunpack.c.l.s4 1966171168
    %v2457 = vunpack.c.0.s8 %v2456
    %v2458 = vlaneseq
    %v2459 = vshrl.u32 %v2458, 7
    %v2460 = vsub.s32 %v2457, %v2459
    %v2461 = vrot.slane %v2433, %v2460
    %v2462 = vcombine.low %v2440, %v2447
    %v2463 = vcombine.low %v2454, %v2461
    %v2465 = vunpack.c.l.s4 1966171168
    %v2466 = vunpack.c.0.s8 %v2465
    %v2467 = vlaneseq
    %v2468 = vshrl.u32 %v2467, 7
    %v2469 = vsub.s32 %v2466, %v2468
    %v2470 = vrot.slane %v2462, %v2469
    %v2472 = vunpack.c.l.s4 1966171168
    %v2473 = vunpack.c.0.s8 %v2472
    %v2474 = vlaneseq
    %v2475 = vshrl.u32 %v2474, 7
    %v2476 = vsub.s32 %v2473, %v2475
    %v2477 = vrot.slane %v2463, %v2476
    %v2478 = vcombine.low %v2470, %v2477
    %v2479 = vcombine.low %v1424, %v1428
    %v2480 = vcombine.low %v1432, %v1436
    %v2481 = vcombine.low %v1440, %v1444
    %v2482 = vcombine.low %v1448, %v1452
    %v2484 = vunpack.c.l.s4 1966171168
    %v2485 = vunpack.c.0.s8 %v2484
    %v2486 = vlaneseq
    %v2487 = vshrl.u32 %v2486, 7
    %v2488 = vsub.s32 %v2485, %v2487
    %v2489 = vrot.slane %v2479, %v2488
    %v2491 = vunpack.c.l.s4 1966171168
    %v2492 = vunpack.c.0.s8 %v2491
    %v2493 = vlaneseq
    %v2494 = vshrl.u32 %v2493, 7
    %v2495 = vsub.s32 %v2492, %v2494
    %v2496 = vrot.slane %v2480, %v2495
    %v2498 = vunpack.c.l.s4 1966171168
    %v2499 = vunpack.c.0.s8 %v2498
    %v2500 = vlaneseq
    %v2501 = vshrl.u32 %v2500, 7
    %v2502 = vsub.s32 %v2499, %v2501
    %v2503 = vrot.slane %v2481, %v2502
    %v2505 = vunpack.c.l.s4 1966171168
    %v2506 = vunpack.c.0.s8 %v2505
    %v2507 = vlaneseq
    %v2508 = vshrl.u32 %v2507, 7
    %v2509 = vsub.s32 %v2506, %v2508
    %v2510 = vrot.slane %v2482, %v2509
    %v2511 = vcombine.low %v2489, %v2496
    %v2512 = vcombine.low %v2503, %v2510
    %v2514 = vunpack.c.l.s4 1966171168
    %v2515 = vunpack.c.0.s8 %v2514
    %v2516 = vlaneseq
    %v2517 = vshrl.u32 %v2516, 7
    %v2518 = vsub.s32 %v2515, %v2517
    %v2519 = vrot.slane %v2511, %v2518
    %v2521 = vunpack.c.l.s4 1966171168
    %v2522 = vunpack.c.0.s8 %v2521
    %v2523 = vlaneseq
    %v2524 = vshrl.u32 %v2523, 7
    %v2525 = vsub.s32 %v2522, %v2524
    %v2526 = vrot.slane %v2512, %v2525
    %v2527 = vcombine.low %v2519, %v2526
    %v2528 = vcombine.low %v1456, %v1460
    %v2529 = vcombine.low %v1464, %v1468
    %v2530 = vcombine.low %v1472, %v1476
    %v2531 = vcombine.low %v1480, %v1484
    %v2533 = vunpack.c.l.s4 1966171168
    %v2534 = vunpack.c.0.s8 %v2533
    %v2535 = vlaneseq
    %v2536 = vshrl.u32 %v2535, 7
    %v2537 = vsub.s32 %v2534, %v2536
    %v2538 = vrot.slane %v2528, %v2537
    %v2540 = vunpack.c.l.s4 1966171168
    %v2541 = vunpack.c.0.s8 %v2540
    %v2542 = vlaneseq
    %v2543 = vshrl.u32 %v2542, 7
    %v2544 = vsub.s32 %v2541, %v2543
    %v2545 = vrot.slane %v2529, %v2544
    %v2547 = vunpack.c.l.s4 1966171168
    %v2548 = vunpack.c.0.s8 %v2547
    %v2549 = vlaneseq
    %v2550 = vshrl.u32 %v2549, 7
    %v2551 = vsub.s32 %v2548, %v2550
    %v2552 = vrot.slane %v2530, %v2551
    %v2554 = vunpack.c.l.s4 1966171168
    %v2555 = vunpack.c.0.s8 %v2554
    %v2556 = vlaneseq
    %v2557 = vshrl.u32 %v2556, 7
    %v2558 = vsub.s32 %v2555, %v2557
    %v2559 = vrot.slane %v2531, %v2558
    %v2560 = vcombine.low %v2538, %v2545
    %v2561 = vcombine.low %v2552, %v2559
    %v2563 = vunpack.c.l.s4 1966171168
    %v2564 = vunpack.c.0.s8 %v2563
    %v2565 = vlaneseq
    %v2566 = vshrl.u32 %v2565, 7
    %v2567 = vsub.s32 %v2564, %v2566
    %v2568 = vrot.slane %v2560, %v2567
    %v2570 = vunpack.c.l.s4 1966171168
    %v2571 = vunpack.c.0.s8 %v2570
    %v2572 = vlaneseq
    %v2573 = vshrl.u32 %v2572, 7
    %v2574 = vsub.s32 %v2571, %v2573
    %v2575 = vrot.slane %v2561, %v2574
    %v2576 = vcombine.low %v2568, %v2575
    %v2577 = vcombine.low %v1488, %v1492
    %v2578 = vcombine.low %v1496, %v1500
    %v2579 = vcombine.low %v1504, %v1508
    %v2580 = vcombine.low %v1512, %v1516
    %v2582 = vunpack.c.l.s4 1966171168
    %v2583 = vunpack.c.0.s8 %v2582
    %v2584 = vlaneseq
    %v2585 = vshrl.u32 %v2584, 7
    %v2586 = vsub.s32 %v2583, %v2585
    %v2587 = vrot.slane %v2577, %v2586
    %v2589 = vunpack.c.l.s4 1966171168
    %v2590 = vunpack.c.0.s8 %v2589
    %v2591 = vlaneseq
    %v2592 = vshrl.u32 %v2591, 7
    %v2593 = vsub.s32 %v2590, %v2592
    %v2594 = vrot.slane %v2578, %v2593
    %v2596 = vunpack.c.l.s4 1966171168
    %v2597 = vunpack.c.0.s8 %v2596
    %v2598 = vlaneseq
    %v2599 = vshrl.u32 %v2598, 7
    %v2600 = vsub.s32 %v2597, %v2599
    %v2601 = vrot.slane %v2579, %v2600
    %v2603 = vunpack.c.l.s4 1966171168
    %v2604 = vunpack.c.0.s8 %v2603
    %v2605 = vlaneseq
    %v2606 = vshrl.u32 %v2605, 7
    %v2607 = vsub.s32 %v2604, %v2606
    %v2608 = vrot.slane %v2580, %v2607
    %v2609 = vcombine.low %v2587, %v2594
    %v2610 = vcombine.low %v2601, %v2608
    %v2612 = vunpack.c.l.s4 1966171168
    %v2613 = vunpack.c.0.s8 %v2612
    %v2614 = vlaneseq
    %v2615 = vshrl.u32 %v2614, 7
    %v2616 = vsub.s32 %v2613, %v2615
    %v2617 = vrot.slane %v2609, %v2616
    %v2619 = vunpack.c.l.s4 1966171168
    %v2620 = vunpack.c.0.s8 %v2619
    %v2621 = vlaneseq
    %v2622 = vshrl.u32 %v2621, 7
    %v2623 = vsub.s32 %v2620, %v2622
    %v2624 = vrot.slane %v2610, %v2623
    %v2625 = vcombine.low %v2617, %v2624
    %v2626 = vcombine.low %v1520, %v1524
    %v2627 = vcombine.low %v1528, %v1532
    %v2628 = vcombine.low %v1536, %v1540
    %v2629 = vcombine.low %v1544, %v1548
    %v2631 = vunpack.c.l.s4 1966171168
    %v2632 = vunpack.c.0.s8 %v2631
    %v2633 = vlaneseq
    %v2634 = vshrl.u32 %v2633, 7
    %v2635 = vsub.s32 %v2632, %v2634
    %v2636 = vrot.slane %v2626, %v2635
    %v2638 = vunpack.c.l.s4 1966171168
    %v2639 = vunpack.c.0.s8 %v2638
    %v2640 = vlaneseq
    %v2641 = vshrl.u32 %v2640, 7
    %v2642 = vsub.s32 %v2639, %v2641
    %v2643 = vrot.slane %v2627, %v2642
    %v2645 = vunpack.c.l.s4 1966171168
    %v2646 = vunpack.c.0.s8 %v2645
    %v2647 = vlaneseq
    %v2648 = vshrl.u32 %v2647, 7
    %v2649 = vsub.s32 %v2646, %v2648
    %v2650 = vrot.slane %v2628, %v2649
    %v2652 = vunpack.c.l.s4 1966171168
    %v2653 = vunpack.c.0.s8 %v2652
    %v2654 = vlaneseq
    %v2655 = vshrl.u32 %v2654, 7
    %v2656 = vsub.s32 %v2653, %v2655
    %v2657 = vrot.slane %v2629, %v2656
    %v2658 = vcombine.low %v2636, %v2643
    %v2659 = vcombine.low %v2650, %v2657
    %v2661 = vunpack.c.l.s4 1966171168
    %v2662 = vunpack.c.0.s8 %v2661
    %v2663 = vlaneseq
    %v2664 = vshrl.u32 %v2663, 7
    %v2665 = vsub.s32 %v2662, %v2664
    %v2666 = vrot.slane %v2658, %v2665
    %v2668 = vunpack.c.l.s4 1966171168
    %v2669 = vunpack.c.0.s8 %v2668
    %v2670 = vlaneseq
    %v2671 = vshrl.u32 %v2670, 7
    %v2672 = vsub.s32 %v2669, %v2671
    %v2673 = vrot.slane %v2659, %v2672
    %v2674 = vcombine.low %v2666, %v2673
    %v2675 = vcombine.low %v1552, %v1556
    %v2676 = vcombine.low %v1560, %v1564
    %v2677 = vcombine.low %v1568, %v1572
    %v2678 = vcombine.low %v1576, %v1580
    %v2680 = vunpack.c.l.s4 1966171168
    %v2681 = vunpack.c.0.s8 %v2680
    %v2682 = vlaneseq
    %v2683 = vshrl.u32 %v2682, 7
    %v2684 = vsub.s32 %v2681, %v2683
    %v2685 = vrot.slane %v2675, %v2684
    %v2687 = vunpack.c.l.s4 1966171168
    %v2688 = vunpack.c.0.s8 %v2687
    %v2689 = vlaneseq
    %v2690 = vshrl.u32 %v2689, 7
    %v2691 = vsub.s32 %v2688, %v2690
    %v2692 = vrot.slane %v2676, %v2691
    %v2694 = vunpack.c.l.s4 1966171168
    %v2695 = vunpack.c.0.s8 %v2694
    %v2696 = vlaneseq
    %v2697 = vshrl.u32 %v2696, 7
    %v2698 = vsub.s32 %v2695, %v2697
    %v2699 = vrot.slane %v2677, %v2698
    %v2701 = vunpack.c.l.s4 1966171168
    %v2702 = vunpack.c.0.s8 %v2701
    %v2703 = vlaneseq
    %v2704 = vshrl.u32 %v2703, 7
    %v2705 = vsub.s32 %v2702, %v2704
    %v2706 = vrot.slane %v2678, %v2705
    %v2707 = vcombine.low %v2685, %v2692
    %v2708 = vcombine.low %v2699, %v2706
    %v2710 = vunpack.c.l.s4 1966171168
    %v2711 = vunpack.c.0.s8 %v2710
    %v2712 = vlaneseq
    %v2713 = vshrl.u32 %v2712, 7
    %v2714 = vsub.s32 %v2711, %v2713
    %v2715 = vrot.slane %v2707, %v2714
    %v2717 = vunpack.c.l.s4 1966171168
    %v2718 = vunpack.c.0.s8 %v2717
    %v2719 = vlaneseq
    %v2720 = vshrl.u32 %v2719, 7
    %v2721 = vsub.s32 %v2718, %v2720
    %v2722 = vrot.slane %v2708, %v2721
    %v2723 = vcombine.low %v2715, %v2722
    %v2724 = vcombine.low %v1584, %v1588
    %v2725 = vcombine.low %v1592, %v1596
    %v2726 = vcombine.low %v1600, %v1604
    %v2727 = vcombine.low %v1608, %v1612
    %v2729 = vunpack.c.l.s4 1966171168
    %v2730 = vunpack.c.0.s8 %v2729
    %v2731 = vlaneseq
    %v2732 = vshrl.u32 %v2731, 7
    %v2733 = vsub.s32 %v2730, %v2732
    %v2734 = vrot.slane %v2724, %v2733
    %v2736 = vunpack.c.l.s4 1966171168
    %v2737 = vunpack.c.0.s8 %v2736
    %v2738 = vlaneseq
    %v2739 = vshrl.u32 %v2738, 7
    %v2740 = vsub.s32 %v2737, %v2739
    %v2741 = vrot.slane %v2725, %v2740
    %v2743 = vunpack.c.l.s4 1966171168
    %v2744 = vunpack.c.0.s8 %v2743
    %v2745 = vlaneseq
    %v2746 = vshrl.u32 %v2745, 7
    %v2747 = vsub.s32 %v2744, %v2746
    %v2748 = vrot.slane %v2726, %v2747
    %v2750 = vunpack.c.l.s4 1966171168
    %v2751 = vunpack.c.0.s8 %v2750
    %v2752 = vlaneseq
    %v2753 = vshrl.u32 %v2752, 7
    %v2754 = vsub.s32 %v2751, %v2753
    %v2755 = vrot.slane %v2727, %v2754
    %v2756 = vcombine.low %v2734, %v2741
    %v2757 = vcombine.low %v2748, %v2755
    %v2759 = vunpack.c.l.s4 1966171168
    %v2760 = vunpack.c.0.s8 %v2759
    %v2761 = vlaneseq
    %v2762 = vshrl.u32 %v2761, 7
    %v2763 = vsub.s32 %v2760, %v2762
    %v2764 = vrot.slane %v2756, %v2763
    %v2766 = vunpack.c.l.s4 1966171168
    %v2767 = vunpack.c.0.s8 %v2766
    %v2768 = vlaneseq
    %v2769 = vshrl.u32 %v2768, 7
    %v2770 = vsub.s32 %v2767, %v2769
    %v2771 = vrot.slane %v2757, %v2770
    %v2772 = vcombine.low %v2764, %v2771
    %v2773 = vcombine.low %v1616, %v1620
    %v2774 = vcombine.low %v1624, %v1628
    %v2775 = vcombine.low %v1632, %v1636
    %v2776 = vcombine.low %v1640, %v1644
    %v2778 = vunpack.c.l.s4 1966171168
    %v2779 = vunpack.c.0.s8 %v2778
    %v2780 = vlaneseq
    %v2781 = vshrl.u32 %v2780, 7
    %v2782 = vsub.s32 %v2779, %v2781
    %v2783 = vrot.slane %v2773, %v2782
    %v2785 = vunpack.c.l.s4 1966171168
    %v2786 = vunpack.c.0.s8 %v2785
    %v2787 = vlaneseq
    %v2788 = vshrl.u32 %v2787, 7
    %v2789 = vsub.s32 %v2786, %v2788
    %v2790 = vrot.slane %v2774, %v2789
    %v2792 = vunpack.c.l.s4 1966171168
    %v2793 = vunpack.c.0.s8 %v2792
    %v2794 = vlaneseq
    %v2795 = vshrl.u32 %v2794, 7
    %v2796 = vsub.s32 %v2793, %v2795
    %v2797 = vrot.slane %v2775, %v2796
    %v2799 = vunpack.c.l.s4 1966171168
    %v2800 = vunpack.c.0.s8 %v2799
    %v2801 = vlaneseq
    %v2802 = vshrl.u32 %v2801, 7
    %v2803 = vsub.s32 %v2800, %v2802
    %v2804 = vrot.slane %v2776, %v2803
    %v2805 = vcombine.low %v2783, %v2790
    %v2806 = vcombine.low %v2797, %v2804
    %v2808 = vunpack.c.l.s4 1966171168
    %v2809 = vunpack.c.0.s8 %v2808
    %v2810 = vlaneseq
    %v2811 = vshrl.u32 %v2810, 7
    %v2812 = vsub.s32 %v2809, %v2811
    %v2813 = vrot.slane %v2805, %v2812
    %v2815 = vunpack.c.l.s4 1966171168
    %v2816 = vunpack.c.0.s8 %v2815
    %v2817 = vlaneseq
    %v2818 = vshrl.u32 %v2817, 7
    %v2819 = vsub.s32 %v2816, %v2818
    %v2820 = vrot.slane %v2806, %v2819
    %v2821 = vcombine.low %v2813, %v2820
    %v2822 = vcombine.low %v1648, %v1652
    %v2823 = vcombine.low %v1656, %v1660
    %v2824 = vcombine.low %v1664, %v1668
    %v2825 = vcombine.low %v1672, %v1676
    %v2827 = vunpack.c.l.s4 1966171168
    %v2828 = vunpack.c.0.s8 %v2827
    %v2829 = vlaneseq
    %v2830 = vshrl.u32 %v2829, 7
    %v2831 = vsub.s32 %v2828, %v2830
    %v2832 = vrot.slane %v2822, %v2831
    %v2834 = vunpack.c.l.s4 1966171168
    %v2835 = vunpack.c.0.s8 %v2834
    %v2836 = vlaneseq
    %v2837 = vshrl.u32 %v2836, 7
    %v2838 = vsub.s32 %v2835, %v2837
    %v2839 = vrot.slane %v2823, %v2838
    %v2841 = vunpack.c.l.s4 1966171168
    %v2842 = vunpack.c.0.s8 %v2841
    %v2843 = vlaneseq
    %v2844 = vshrl.u32 %v2843, 7
    %v2845 = vsub.s32 %v2842, %v2844
    %v2846 = vrot.slane %v2824, %v2845
    %v2848 = vunpack.c.l.s4 1966171168
    %v2849 = vunpack.c.0.s8 %v2848
    %v2850 = vlaneseq
    %v2851 = vshrl.u32 %v2850, 7
    %v2852 = vsub.s32 %v2849, %v2851
    %v2853 = vrot.slane %v2825, %v2852
    %v2854 = vcombine.low %v2832, %v2839
    %v2855 = vcombine.low %v2846, %v2853
    %v2857 = vunpack.c.l.s4 1966171168
    %v2858 = vunpack.c.0.s8 %v2857
    %v2859 = vlaneseq
    %v2860 = vshrl.u32 %v2859, 7
    %v2861 = vsub.s32 %v2858, %v2860
    %v2862 = vrot.slane %v2854, %v2861
    %v2864 = vunpack.c.l.s4 1966171168
    %v2865 = vunpack.c.0.s8 %v2864
    %v2866 = vlaneseq
    %v2867 = vshrl.u32 %v2866, 7
    %v2868 = vsub.s32 %v2865, %v2867
    %v2869 = vrot.slane %v2855, %v2868
    %v2870 = vcombine.low %v2862, %v2869
    %v2871 = vcombine.low %v1680, %v1684
    %v2872 = vcombine.low %v1688, %v1692
    %v2873 = vcombine.low %v1696, %v1700
    %v2874 = vcombine.low %v1704, %v1708
    %v2876 = vunpack.c.l.s4 1966171168
    %v2877 = vunpack.c.0.s8 %v2876
    %v2878 = vlaneseq
    %v2879 = vshrl.u32 %v2878, 7
    %v2880 = vsub.s32 %v2877, %v2879
    %v2881 = vrot.slane %v2871, %v2880
    %v2883 = vunpack.c.l.s4 1966171168
    %v2884 = vunpack.c.0.s8 %v2883
    %v2885 = vlaneseq
    %v2886 = vshrl.u32 %v2885, 7
    %v2887 = vsub.s32 %v2884, %v2886
    %v2888 = vrot.slane %v2872, %v2887
    %v2890 = vunpack.c.l.s4 1966171168
    %v2891 = vunpack.c.0.s8 %v2890
    %v2892 = vlaneseq
    %v2893 = vshrl.u32 %v2892, 7
    %v2894 = vsub.s32 %v2891, %v2893
    %v2895 = vrot.slane %v2873, %v2894
    %v2897 = vunpack.c.l.s4 1966171168
    %v2898 = vunpack.c.0.s8 %v2897
    %v2899 = vlaneseq
    %v2900 = vshrl.u32 %v2899, 7
    %v2901 = vsub.s32 %v2898, %v2900
    %v2902 = vrot.slane %v2874, %v2901
    %v2903 = vcombine.low %v2881, %v2888
    %v2904 = vcombine.low %v2895, %v2902
    %v2906 = vunpack.c.l.s4 1966171168
    %v2907 = vunpack.c.0.s8 %v2906
    %v2908 = vlaneseq
    %v2909 = vshrl.u32 %v2908, 7
    %v2910 = vsub.s32 %v2907, %v2909
    %v2911 = vrot.slane %v2903, %v2910
    %v2913 = vunpack.c.l.s4 1966171168
    %v2914 = vunpack.c.0.s8 %v2913
    %v2915 = vlaneseq
    %v2916 = vshrl.u32 %v2915, 7
    %v2917 = vsub.s32 %v2914, %v2916
    %v2918 = vrot.slane %v2904, %v2917
    %v2919 = vcombine.low %v2911, %v2918
    %v2920 = vcombine.low %v1712, %v1716
    %v2921 = vcombine.low %v1720, %v1724
    %v2922 = vcombine.low %v1728, %v1732
    %v2923 = vcombine.low %v1736, %v1740
    %v2925 = vunpack.c.l.s4 1966171168
    %v2926 = vunpack.c.0.s8 %v2925
    %v2927 = vlaneseq
    %v2928 = vshrl.u32 %v2927, 7
    %v2929 = vsub.s32 %v2926, %v2928
    %v2930 = vrot.slane %v2920, %v2929
    %v2932 = vunpack.c.l.s4 1966171168
    %v2933 = vunpack.c.0.s8 %v2932
    %v2934 = vlaneseq
    %v2935 = vshrl.u32 %v2934, 7
    %v2936 = vsub.s32 %v2933, %v2935
    %v2937 = vrot.slane %v2921, %v2936
    %v2939 = vunpack.c.l.s4 1966171168
    %v2940 = vunpack.c.0.s8 %v2939
    %v2941 = vlaneseq
    %v2942 = vshrl.u32 %v2941, 7
    %v2943 = vsub.s32 %v2940, %v2942
    %v2944 = vrot.slane %v2922, %v2943
    %v2946 = vunpack.c.l.s4 1966171168
    %v2947 = vunpack.c.0.s8 %v2946
    %v2948 = vlaneseq
    %v2949 = vshrl.u32 %v2948, 7
    %v2950 = vsub.s32 %v2947, %v2949
    %v2951 = vrot.slane %v2923, %v2950
    %v2952 = vcombine.low %v2930, %v2937
    %v2953 = vcombine.low %v2944, %v2951
    %v2955 = vunpack.c.l.s4 1966171168
    %v2956 = vunpack.c.0.s8 %v2955
    %v2957 = vlaneseq
    %v2958 = vshrl.u32 %v2957, 7
    %v2959 = vsub.s32 %v2956, %v2958
    %v2960 = vrot.slane %v2952, %v2959
    %v2962 = vunpack.c.l.s4 1966171168
    %v2963 = vunpack.c.0.s8 %v2962
    %v2964 = vlaneseq
    %v2965 = vshrl.u32 %v2964, 7
    %v2966 = vsub.s32 %v2963, %v2965
    %v2967 = vrot.slane %v2953, %v2966
    %v2968 = vcombine.low %v2960, %v2967
    %v2969 = vcombine.low %v1744, %v1748
    %v2970 = vcombine.low %v1752, %v1756
    %v2971 = vcombine.low %v1760, %v1764
    %v2972 = vcombine.low %v1768, %v1772
    %v2974 = vunpack.c.l.s4 1966171168
    %v2975 = vunpack.c.0.s8 %v2974
    %v2976 = vlaneseq
    %v2977 = vshrl.u32 %v2976, 7
    %v2978 = vsub.s32 %v2975, %v2977
    %v2979 = vrot.slane %v2969, %v2978
    %v2981 = vunpack.c.l.s4 1966171168
    %v2982 = vunpack.c.0.s8 %v2981
    %v2983 = vlaneseq
    %v2984 = vshrl.u32 %v2983, 7
    %v2985 = vsub.s32 %v2982, %v2984
    %v2986 = vrot.slane %v2970, %v2985
    %v2988 = vunpack.c.l.s4 1966171168
    %v2989 = vunpack.c.0.s8 %v2988
    %v2990 = vlaneseq
    %v2991 = vshrl.u32 %v2990, 7
    %v2992 = vsub.s32 %v2989, %v2991
    %v2993 = vrot.slane %v2971, %v2992
    %v2995 = vunpack.c.l.s4 1966171168
    %v2996 = vunpack.c.0.s8 %v2995
    %v2997 = vlaneseq
    %v2998 = vshrl.u32 %v2997, 7
    %v2999 = vsub.s32 %v2996, %v2998
    %v3000 = vrot.slane %v2972, %v2999
    %v3001 = vcombine.low %v2979, %v2986
    %v3002 = vcombine.low %v2993, %v3000
    %v3004 = vunpack.c.l.s4 1966171168
    %v3005 = vunpack.c.0.s8 %v3004
    %v3006 = vlaneseq
    %v3007 = vshrl.u32 %v3006, 7
    %v3008 = vsub.s32 %v3005, %v3007
    %v3009 = vrot.slane %v3001, %v3008
    %v3011 = vunpack.c.l.s4 1966171168
    %v3012 = vunpack.c.0.s8 %v3011
    %v3013 = vlaneseq
    %v3014 = vshrl.u32 %v3013, 7
    %v3015 = vsub.s32 %v3012, %v3014
    %v3016 = vrot.slane %v3002, %v3015
    %v3017 = vcombine.low %v3009, %v3016
    %v3018 = vcombine.low %v1776, %v1780
    %v3019 = vcombine.low %v1784, %v1788
    %v3020 = vcombine.low %v1792, %v1796
    %v3021 = vcombine.low %v1800, %v1804
    %v3023 = vunpack.c.l.s4 1966171168
    %v3024 = vunpack.c.0.s8 %v3023
    %v3025 = vlaneseq
    %v3026 = vshrl.u32 %v3025, 7
    %v3027 = vsub.s32 %v3024, %v3026
    %v3028 = vrot.slane %v3018, %v3027
    %v3030 = vunpack.c.l.s4 1966171168
    %v3031 = vunpack.c.0.s8 %v3030
    %v3032 = vlaneseq
    %v3033 = vshrl.u32 %v3032, 7
    %v3034 = vsub.s32 %v3031, %v3033
    %v3035 = vrot.slane %v3019, %v3034
    %v3037 = vunpack.c.l.s4 1966171168
    %v3038 = vunpack.c.0.s8 %v3037
    %v3039 = vlaneseq
    %v3040 = vshrl.u32 %v3039, 7
    %v3041 = vsub.s32 %v3038, %v3040
    %v3042 = vrot.slane %v3020, %v3041
    %v3044 = vunpack.c.l.s4 1966171168
    %v3045 = vunpack.c.0.s8 %v3044
    %v3046 = vlaneseq
    %v3047 = vshrl.u32 %v3046, 7
    %v3048 = vsub.s32 %v3045, %v3047
    %v3049 = vrot.slane %v3021, %v3048
    %v3050 = vcombine.low %v3028, %v3035
    %v3051 = vcombine.low %v3042, %v3049
    %v3053 = vunpack.c.l.s4 1966171168
    %v3054 = vunpack.c.0.s8 %v3053
    %v3055 = vlaneseq
    %v3056 = vshrl.u32 %v3055, 7
    %v3057 = vsub.s32 %v3054, %v3056
    %v3058 = vrot.slane %v3050, %v3057
    %v3060 = vunpack.c.l.s4 1966171168
    %v3061 = vunpack.c.0.s8 %v3060
    %v3062 = vlaneseq
    %v3063 = vshrl.u32 %v3062, 7
    %v3064 = vsub.s32 %v3061, %v3063
    %v3065 = vrot.slane %v3051, %v3064
    %v3066 = vcombine.low %v3058, %v3065
    %v3067 = vcombine.low %v1808, %v1812
    %v3068 = vcombine.low %v1816, %v1820
    %v3069 = vcombine.low %v1824, %v1828
    %v3070 = vcombine.low %v1832, %v1836
    %v3072 = vunpack.c.l.s4 1966171168
    %v3073 = vunpack.c.0.s8 %v3072
    %v3074 = vlaneseq
    %v3075 = vshrl.u32 %v3074, 7
    %v3076 = vsub.s32 %v3073, %v3075
    %v3077 = vrot.slane %v3067, %v3076
    %v3079 = vunpack.c.l.s4 1966171168
    %v3080 = vunpack.c.0.s8 %v3079
    %v3081 = vlaneseq
    %v3082 = vshrl.u32 %v3081, 7
    %v3083 = vsub.s32 %v3080, %v3082
    %v3084 = vrot.slane %v3068, %v3083
    %v3086 = vunpack.c.l.s4 1966171168
    %v3087 = vunpack.c.0.s8 %v3086
    %v3088 = vlaneseq
    %v3089 = vshrl.u32 %v3088, 7
    %v3090 = vsub.s32 %v3087, %v3089
    %v3091 = vrot.slane %v3069, %v3090
    %v3093 = vunpack.c.l.s4 1966171168
    %v3094 = vunpack.c.0.s8 %v3093
    %v3095 = vlaneseq
    %v3096 = vshrl.u32 %v3095, 7
    %v3097 = vsub.s32 %v3094, %v3096
    %v3098 = vrot.slane %v3070, %v3097
    %v3099 = vcombine.low %v3077, %v3084
    %v3100 = vcombine.low %v3091, %v3098
    %v3102 = vunpack.c.l.s4 1966171168
    %v3103 = vunpack.c.0.s8 %v3102
    %v3104 = vlaneseq
    %v3105 = vshrl.u32 %v3104, 7
    %v3106 = vsub.s32 %v3103, %v3105
    %v3107 = vrot.slane %v3099, %v3106
    %v3109 = vunpack.c.l.s4 1966171168
    %v3110 = vunpack.c.0.s8 %v3109
    %v3111 = vlaneseq
    %v3112 = vshrl.u32 %v3111, 7
    %v3113 = vsub.s32 %v3110, %v3112
    %v3114 = vrot.slane %v3100, %v3113
    %v3115 = vcombine.low %v3107, %v3114
    %v3116 = vcombine.low %v1840, %v1844
    %v3117 = vcombine.low %v1848, %v1852
    %v3118 = vcombine.low %v1856, %v1860
    %v3119 = vcombine.low %v1864, %v1868
    %v3121 = vunpack.c.l.s4 1966171168
    %v3122 = vunpack.c.0.s8 %v3121
    %v3123 = vlaneseq
    %v3124 = vshrl.u32 %v3123, 7
    %v3125 = vsub.s32 %v3122, %v3124
    %v3126 = vrot.slane %v3116, %v3125
    %v3128 = vunpack.c.l.s4 1966171168
    %v3129 = vunpack.c.0.s8 %v3128
    %v3130 = vlaneseq
    %v3131 = vshrl.u32 %v3130, 7
    %v3132 = vsub.s32 %v3129, %v3131
    %v3133 = vrot.slane %v3117, %v3132
    %v3135 = vunpack.c.l.s4 1966171168
    %v3136 = vunpack.c.0.s8 %v3135
    %v3137 = vlaneseq
    %v3138 = vshrl.u32 %v3137, 7
    %v3139 = vsub.s32 %v3136, %v3138
    %v3140 = vrot.slane %v3118, %v3139
    %v3142 = vunpack.c.l.s4 1966171168
    %v3143 = vunpack.c.0.s8 %v3142
    %v3144 = vlaneseq
    %v3145 = vshrl.u32 %v3144, 7
    %v3146 = vsub.s32 %v3143, %v3145
    %v3147 = vrot.slane %v3119, %v3146
    %v3148 = vcombine.low %v3126, %v3133
    %v3149 = vcombine.low %v3140, %v3147
    %v3151 = vunpack.c.l.s4 1966171168
    %v3152 = vunpack.c.0.s8 %v3151
    %v3153 = vlaneseq
    %v3154 = vshrl.u32 %v3153, 7
    %v3155 = vsub.s32 %v3152, %v3154
    %v3156 = vrot.slane %v3148, %v3155
    %v3158 = vunpack.c.l.s4 1966171168
    %v3159 = vunpack.c.0.s8 %v3158
    %v3160 = vlaneseq
    %v3161 = vshrl.u32 %v3160, 7
    %v3162 = vsub.s32 %v3159, %v3161
    %v3163 = vrot.slane %v3149, %v3162
    %v3164 = vcombine.low %v3156, %v3163
    %v3165 = vcombine.low %v1872, %v1876
    %v3166 = vcombine.low %v1880, %v1884
    %v3167 = vcombine.low %v1888, %v1892
    %v3168 = vcombine.low %v1896, %v1900
    %v3170 = vunpack.c.l.s4 1966171168
    %v3171 = vunpack.c.0.s8 %v3170
    %v3172 = vlaneseq
    %v3173 = vshrl.u32 %v3172, 7
    %v3174 = vsub.s32 %v3171, %v3173
    %v3175 = vrot.slane %v3165, %v3174
    %v3177 = vunpack.c.l.s4 1966171168
    %v3178 = vunpack.c.0.s8 %v3177
    %v3179 = vlaneseq
    %v3180 = vshrl.u32 %v3179, 7
    %v3181 = vsub.s32 %v3178, %v3180
    %v3182 = vrot.slane %v3166, %v3181
    %v3184 = vunpack.c.l.s4 1966171168
    %v3185 = vunpack.c.0.s8 %v3184
    %v3186 = vlaneseq
    %v3187 = vshrl.u32 %v3186, 7
    %v3188 = vsub.s32 %v3185, %v3187
    %v3189 = vrot.slane %v3167, %v3188
    %v3191 = vunpack.c.l.s4 1966171168
    %v3192 = vunpack.c.0.s8 %v3191
    %v3193 = vlaneseq
    %v3194 = vshrl.u32 %v3193, 7
    %v3195 = vsub.s32 %v3192, %v3194
    %v3196 = vrot.slane %v3168, %v3195
    %v3197 = vcombine.low %v3175, %v3182
    %v3198 = vcombine.low %v3189, %v3196
    %v3200 = vunpack.c.l.s4 1966171168
    %v3201 = vunpack.c.0.s8 %v3200
    %v3202 = vlaneseq
    %v3203 = vshrl.u32 %v3202, 7
    %v3204 = vsub.s32 %v3201, %v3203
    %v3205 = vrot.slane %v3197, %v3204
    %v3207 = vunpack.c.l.s4 1966171168
    %v3208 = vunpack.c.0.s8 %v3207
    %v3209 = vlaneseq
    %v3210 = vshrl.u32 %v3209, 7
    %v3211 = vsub.s32 %v3208, %v3210
    %v3212 = vrot.slane %v3198, %v3211
    %v3213 = vcombine.low %v3205, %v3212
    %v3214 = vcombine.low %v1904, %v1908
    %v3215 = vcombine.low %v1912, %v1916
    %v3216 = vcombine.low %v1920, %v1924
    %v3217 = vcombine.low %v1928, %v1932
    %v3219 = vunpack.c.l.s4 1966171168
    %v3220 = vunpack.c.0.s8 %v3219
    %v3221 = vlaneseq
    %v3222 = vshrl.u32 %v3221, 7
    %v3223 = vsub.s32 %v3220, %v3222
    %v3224 = vrot.slane %v3214, %v3223
    %v3226 = vunpack.c.l.s4 1966171168
    %v3227 = vunpack.c.0.s8 %v3226
    %v3228 = vlaneseq
    %v3229 = vshrl.u32 %v3228, 7
    %v3230 = vsub.s32 %v3227, %v3229
    %v3231 = vrot.slane %v3215, %v3230
    %v3233 = vunpack.c.l.s4 1966171168
    %v3234 = vunpack.c.0.s8 %v3233
    %v3235 = vlaneseq
    %v3236 = vshrl.u32 %v3235, 7
    %v3237 = vsub.s32 %v3234, %v3236
    %v3238 = vrot.slane %v3216, %v3237
    %v3240 = vunpack.c.l.s4 1966171168
    %v3241 = vunpack.c.0.s8 %v3240
    %v3242 = vlaneseq
    %v3243 = vshrl.u32 %v3242, 7
    %v3244 = vsub.s32 %v3241, %v3243
    %v3245 = vrot.slane %v3217, %v3244
    %v3246 = vcombine.low %v3224, %v3231
    %v3247 = vcombine.low %v3238, %v3245
    %v3249 = vunpack.c.l.s4 1966171168
    %v3250 = vunpack.c.0.s8 %v3249
    %v3251 = vlaneseq
    %v3252 = vshrl.u32 %v3251, 7
    %v3253 = vsub.s32 %v3250, %v3252
    %v3254 = vrot.slane %v3246, %v3253
    %v3256 = vunpack.c.l.s4 1966171168
    %v3257 = vunpack.c.0.s8 %v3256
    %v3258 = vlaneseq
    %v3259 = vshrl.u32 %v3258, 7
    %v3260 = vsub.s32 %v3257, %v3259
    %v3261 = vrot.slane %v3247, %v3260
    %v3262 = vcombine.low %v3254, %v3261
    %v3263 = vcombine.low %v1936, %v1940
    %v3264 = vcombine.low %v1944, %v1948
    %v3265 = vcombine.low %v1952, %v1956
    %v3266 = vcombine.low %v1960, %v1964
    %v3268 = vunpack.c.l.s4 1966171168
    %v3269 = vunpack.c.0.s8 %v3268
    %v3270 = vlaneseq
    %v3271 = vshrl.u32 %v3270, 7
    %v3272 = vsub.s32 %v3269, %v3271
    %v3273 = vrot.slane %v3263, %v3272
    %v3275 = vunpack.c.l.s4 1966171168
    %v3276 = vunpack.c.0.s8 %v3275
    %v3277 = vlaneseq
    %v3278 = vshrl.u32 %v3277, 7
    %v3279 = vsub.s32 %v3276, %v3278
    %v3280 = vrot.slane %v3264, %v3279
    %v3282 = vunpack.c.l.s4 1966171168
    %v3283 = vunpack.c.0.s8 %v3282
    %v3284 = vlaneseq
    %v3285 = vshrl.u32 %v3284, 7
    %v3286 = vsub.s32 %v3283, %v3285
    %v3287 = vrot.slane %v3265, %v3286
    %v3289 = vunpack.c.l.s4 1966171168
    %v3290 = vunpack.c.0.s8 %v3289
    %v3291 = vlaneseq
    %v3292 = vshrl.u32 %v3291, 7
    %v3293 = vsub.s32 %v3290, %v3292
    %v3294 = vrot.slane %v3266, %v3293
    %v3295 = vcombine.low %v3273, %v3280
    %v3296 = vcombine.low %v3287, %v3294
    %v3298 = vunpack.c.l.s4 1966171168
    %v3299 = vunpack.c.0.s8 %v3298
    %v3300 = vlaneseq
    %v3301 = vshrl.u32 %v3300, 7
    %v3302 = vsub.s32 %v3299, %v3301
    %v3303 = vrot.slane %v3295, %v3302
    %v3305 = vunpack.c.l.s4 1966171168
    %v3306 = vunpack.c.0.s8 %v3305
    %v3307 = vlaneseq
    %v3308 = vshrl.u32 %v3307, 7
    %v3309 = vsub.s32 %v3306, %v3308
    %v3310 = vrot.slane %v3296, %v3309
    %v3311 = vcombine.low %v3303, %v3310
    %v3312 = vcombine.low %v1968, %v1972
    %v3313 = vcombine.low %v1976, %v1980
    %v3314 = vcombine.low %v1984, %v1988
    %v3315 = vcombine.low %v1992, %v1996
    %v3317 = vunpack.c.l.s4 1966171168
    %v3318 = vunpack.c.0.s8 %v3317
    %v3319 = vlaneseq
    %v3320 = vshrl.u32 %v3319, 7
    %v3321 = vsub.s32 %v3318, %v3320
    %v3322 = vrot.slane %v3312, %v3321
    %v3324 = vunpack.c.l.s4 1966171168
    %v3325 = vunpack.c.0.s8 %v3324
    %v3326 = vlaneseq
    %v3327 = vshrl.u32 %v3326, 7
    %v3328 = vsub.s32 %v3325, %v3327
    %v3329 = vrot.slane %v3313, %v3328
    %v3331 = vunpack.c.l.s4 1966171168
    %v3332 = vunpack.c.0.s8 %v3331
    %v3333 = vlaneseq
    %v3334 = vshrl.u32 %v3333, 7
    %v3335 = vsub.s32 %v3332, %v3334
    %v3336 = vrot.slane %v3314, %v3335
    %v3338 = vunpack.c.l.s4 1966171168
    %v3339 = vunpack.c.0.s8 %v3338
    %v3340 = vlaneseq
    %v3341 = vshrl.u32 %v3340, 7
    %v3342 = vsub.s32 %v3339, %v3341
    %v3343 = vrot.slane %v3315, %v3342
    %v3344 = vcombine.low %v3322, %v3329
    %v3345 = vcombine.low %v3336, %v3343
    %v3347 = vunpack.c.l.s4 1966171168
    %v3348 = vunpack.c.0.s8 %v3347
    %v3349 = vlaneseq
    %v3350 = vshrl.u32 %v3349, 7
    %v3351 = vsub.s32 %v3348, %v3350
    %v3352 = vrot.slane %v3344, %v3351
    %v3354 = vunpack.c.l.s4 1966171168
    %v3355 = vunpack.c.0.s8 %v3354
    %v3356 = vlaneseq
    %v3357 = vshrl.u32 %v3356, 7
    %v3358 = vsub.s32 %v3355, %v3357
    %v3359 = vrot.slane %v3345, %v3358
    %v3360 = vcombine.low %v3352, %v3359
    %v3361 = vcombine.low %v2000, %v2004
    %v3362 = vcombine.low %v2008, %v2012
    %v3363 = vcombine.low %v2016, %v2020
    %v3364 = vcombine.low %v2024, %v2028
    %v3366 = vunpack.c.l.s4 1966171168
    %v3367 = vunpack.c.0.s8 %v3366
    %v3368 = vlaneseq
    %v3369 = vshrl.u32 %v3368, 7
    %v3370 = vsub.s32 %v3367, %v3369
    %v3371 = vrot.slane %v3361, %v3370
    %v3373 = vunpack.c.l.s4 1966171168
    %v3374 = vunpack.c.0.s8 %v3373
    %v3375 = vlaneseq
    %v3376 = vshrl.u32 %v3375, 7
    %v3377 = vsub.s32 %v3374, %v3376
    %v3378 = vrot.slane %v3362, %v3377
    %v3380 = vunpack.c.l.s4 1966171168
    %v3381 = vunpack.c.0.s8 %v3380
    %v3382 = vlaneseq
    %v3383 = vshrl.u32 %v3382, 7
    %v3384 = vsub.s32 %v3381, %v3383
    %v3385 = vrot.slane %v3363, %v3384
    %v3387 = vunpack.c.l.s4 1966171168
    %v3388 = vunpack.c.0.s8 %v3387
    %v3389 = vlaneseq
    %v3390 = vshrl.u32 %v3389, 7
    %v3391 = vsub.s32 %v3388, %v3390
    %v3392 = vrot.slane %v3364, %v3391
    %v3393 = vcombine.low %v3371, %v3378
    %v3394 = vcombine.low %v3385, %v3392
    %v3396 = vunpack.c.l.s4 1966171168
    %v3397 = vunpack.c.0.s8 %v3396
    %v3398 = vlaneseq
    %v3399 = vshrl.u32 %v3398, 7
    %v3400 = vsub.s32 %v3397, %v3399
    %v3401 = vrot.slane %v3393, %v3400
    %v3403 = vunpack.c.l.s4 1966171168
    %v3404 = vunpack.c.0.s8 %v3403
    %v3405 = vlaneseq
    %v3406 = vshrl.u32 %v3405, 7
    %v3407 = vsub.s32 %v3404, %v3406
    %v3408 = vrot.slane %v3394, %v3407
    %v3409 = vcombine.low %v3401, %v3408
    %v3410 = vcombine.low %v2032, %v2036
    %v3411 = vcombine.low %v2040, %v2044
    %v3412 = vcombine.low %v2048, %v2052
    %v3413 = vcombine.low %v2056, %v2060
    %v3415 = vunpack.c.l.s4 1966171168
    %v3416 = vunpack.c.0.s8 %v3415
    %v3417 = vlaneseq
    %v3418 = vshrl.u32 %v3417, 7
    %v3419 = vsub.s32 %v3416, %v3418
    %v3420 = vrot.slane %v3410, %v3419
    %v3422 = vunpack.c.l.s4 1966171168
    %v3423 = vunpack.c.0.s8 %v3422
    %v3424 = vlaneseq
    %v3425 = vshrl.u32 %v3424, 7
    %v3426 = vsub.s32 %v3423, %v3425
    %v3427 = vrot.slane %v3411, %v3426
    %v3429 = vunpack.c.l.s4 1966171168
    %v3430 = vunpack.c.0.s8 %v3429
    %v3431 = vlaneseq
    %v3432 = vshrl.u32 %v3431, 7
    %v3433 = vsub.s32 %v3430, %v3432
    %v3434 = vrot.slane %v3412, %v3433
    %v3436 = vunpack.c.l.s4 1966171168
    %v3437 = vunpack.c.0.s8 %v3436
    %v3438 = vlaneseq
    %v3439 = vshrl.u32 %v3438, 7
    %v3440 = vsub.s32 %v3437, %v3439
    %v3441 = vrot.slane %v3413, %v3440
    %v3442 = vcombine.low %v3420, %v3427
    %v3443 = vcombine.low %v3434, %v3441
    %v3445 = vunpack.c.l.s4 1966171168
    %v3446 = vunpack.c.0.s8 %v3445
    %v3447 = vlaneseq
    %v3448 = vshrl.u32 %v3447, 7
    %v3449 = vsub.s32 %v3446, %v3448
    %v3450 = vrot.slane %v3442, %v3449
    %v3452 = vunpack.c.l.s4 1966171168
    %v3453 = vunpack.c.0.s8 %v3452
    %v3454 = vlaneseq
    %v3455 = vshrl.u32 %v3454, 7
    %v3456 = vsub.s32 %v3453, %v3455
    %v3457 = vrot.slane %v3443, %v3456
    %v3458 = vcombine.low %v3450, %v3457
    %v3459 = vcombine.low %v2064, %v2068
    %v3460 = vcombine.low %v2072, %v2076
    %v3461 = vcombine.low %v2080, %v2084
    %v3462 = vcombine.low %v2088, %v2092
    %v3464 = vunpack.c.l.s4 1966171168
    %v3465 = vunpack.c.0.s8 %v3464
    %v3466 = vlaneseq
    %v3467 = vshrl.u32 %v3466, 7
    %v3468 = vsub.s32 %v3465, %v3467
    %v3469 = vrot.slane %v3459, %v3468
    %v3471 = vunpack.c.l.s4 1966171168
    %v3472 = vunpack.c.0.s8 %v3471
    %v3473 = vlaneseq
    %v3474 = vshrl.u32 %v3473, 7
    %v3475 = vsub.s32 %v3472, %v3474
    %v3476 = vrot.slane %v3460, %v3475
    %v3478 = vunpack.c.l.s4 1966171168
    %v3479 = vunpack.c.0.s8 %v3478
    %v3480 = vlaneseq
    %v3481 = vshrl.u32 %v3480, 7
    %v3482 = vsub.s32 %v3479, %v3481
    %v3483 = vrot.slane %v3461, %v3482
    %v3485 = vunpack.c.l.s4 1966171168
    %v3486 = vunpack.c.0.s8 %v3485
    %v3487 = vlaneseq
    %v3488 = vshrl.u32 %v3487, 7
    %v3489 = vsub.s32 %v3486, %v3488
    %v3490 = vrot.slane %v3462, %v3489
    %v3491 = vcombine.low %v3469, %v3476
    %v3492 = vcombine.low %v3483, %v3490
    %v3494 = vunpack.c.l.s4 1966171168
    %v3495 = vunpack.c.0.s8 %v3494
    %v3496 = vlaneseq
    %v3497 = vshrl.u32 %v3496, 7
    %v3498 = vsub.s32 %v3495, %v3497
    %v3499 = vrot.slane %v3491, %v3498
    %v3501 = vunpack.c.l.s4 1966171168
    %v3502 = vunpack.c.0.s8 %v3501
    %v3503 = vlaneseq
    %v3504 = vshrl.u32 %v3503, 7
    %v3505 = vsub.s32 %v3502, %v3504
    %v3506 = vrot.slane %v3492, %v3505
    %v3507 = vcombine.low %v3499, %v3506
    %v3508 = vcombine.low %v2096, %v2100
    %v3509 = vcombine.low %v2104, %v2108
    %v3510 = vcombine.low %v2112, %v2116
    %v3511 = vcombine.low %v2120, %v2124
    %v3513 = vunpack.c.l.s4 1966171168
    %v3514 = vunpack.c.0.s8 %v3513
    %v3515 = vlaneseq
    %v3516 = vshrl.u32 %v3515, 7
    %v3517 = vsub.s32 %v3514, %v3516
    %v3518 = vrot.slane %v3508, %v3517
    %v3520 = vunpack.c.l.s4 1966171168
    %v3521 = vunpack.c.0.s8 %v3520
    %v3522 = vlaneseq
    %v3523 = vshrl.u32 %v3522, 7
    %v3524 = vsub.s32 %v3521, %v3523
    %v3525 = vrot.slane %v3509, %v3524
    %v3527 = vunpack.c.l.s4 1966171168
    %v3528 = vunpack.c.0.s8 %v3527
    %v3529 = vlaneseq
    %v3530 = vshrl.u32 %v3529, 7
    %v3531 = vsub.s32 %v3528, %v3530
    %v3532 = vrot.slane %v3510, %v3531
    %v3534 = vunpack.c.l.s4 1966171168
    %v3535 = vunpack.c.0.s8 %v3534
    %v3536 = vlaneseq
    %v3537 = vshrl.u32 %v3536, 7
    %v3538 = vsub.s32 %v3535, %v3537
    %v3539 = vrot.slane %v3511, %v3538
    %v3540 = vcombine.low %v3518, %v3525
    %v3541 = vcombine.low %v3532, %v3539
    %v3543 = vunpack.c.l.s4 1966171168
    %v3544 = vunpack.c.0.s8 %v3543
    %v3545 = vlaneseq
    %v3546 = vshrl.u32 %v3545, 7
    %v3547 = vsub.s32 %v3544, %v3546
    %v3548 = vrot.slane %v3540, %v3547
    %v3550 = vunpack.c.l.s4 1966171168
    %v3551 = vunpack.c.0.s8 %v3550
    %v3552 = vlaneseq
    %v3553 = vshrl.u32 %v3552, 7
    %v3554 = vsub.s32 %v3551, %v3553
    %v3555 = vrot.slane %v3541, %v3554
    %v3556 = vcombine.low %v3548, %v3555
    %v3557 = vcombine.low %v2128, %v2132
    %v3558 = vcombine.low %v2136, %v2140
    %v3559 = vcombine.low %v2144, %v2148
    %v3560 = vcombine.low %v2152, %v2156
    %v3562 = vunpack.c.l.s4 1966171168
    %v3563 = vunpack.c.0.s8 %v3562
    %v3564 = vlaneseq
    %v3565 = vshrl.u32 %v3564, 7
    %v3566 = vsub.s32 %v3563, %v3565
    %v3567 = vrot.slane %v3557, %v3566
    %v3569 = vunpack.c.l.s4 1966171168
    %v3570 = vunpack.c.0.s8 %v3569
    %v3571 = vlaneseq
    %v3572 = vshrl.u32 %v3571, 7
    %v3573 = vsub.s32 %v3570, %v3572
    %v3574 = vrot.slane %v3558, %v3573
    %v3576 = vunpack.c.l.s4 1966171168
    %v3577 = vunpack.c.0.s8 %v3576
    %v3578 = vlaneseq
    %v3579 = vshrl.u32 %v3578, 7
    %v3580 = vsub.s32 %v3577, %v3579
    %v3581 = vrot.slane %v3559, %v3580
    %v3583 = vunpack.c.l.s4 1966171168
    %v3584 = vunpack.c.0.s8 %v3583
    %v3585 = vlaneseq
    %v3586 = vshrl.u32 %v3585, 7
    %v3587 = vsub.s32 %v3584, %v3586
    %v3588 = vrot.slane %v3560, %v3587
    %v3589 = vcombine.low %v3567, %v3574
    %v3590 = vcombine.low %v3581, %v3588
    %v3592 = vunpack.c.l.s4 1966171168
    %v3593 = vunpack.c.0.s8 %v3592
    %v3594 = vlaneseq
    %v3595 = vshrl.u32 %v3594, 7
    %v3596 = vsub.s32 %v3593, %v3595
    %v3597 = vrot.slane %v3589, %v3596
    %v3599 = vunpack.c.l.s4 1966171168
    %v3600 = vunpack.c.0.s8 %v3599
    %v3601 = vlaneseq
    %v3602 = vshrl.u32 %v3601, 7
    %v3603 = vsub.s32 %v3600, %v3602
    %v3604 = vrot.slane %v3590, %v3603
    %v3605 = vcombine.low %v3597, %v3604
    %v3606 = vcombine.low %v2160, %v2164
    %v3607 = vcombine.low %v2168, %v2172
    %v3608 = vcombine.low %v2176, %v2180
    %v3609 = vcombine.low %v2184, %v2188
    %v3611 = vunpack.c.l.s4 1966171168
    %v3612 = vunpack.c.0.s8 %v3611
    %v3613 = vlaneseq
    %v3614 = vshrl.u32 %v3613, 7
    %v3615 = vsub.s32 %v3612, %v3614
    %v3616 = vrot.slane %v3606, %v3615
    %v3618 = vunpack.c.l.s4 1966171168
    %v3619 = vunpack.c.0.s8 %v3618
    %v3620 = vlaneseq
    %v3621 = vshrl.u32 %v3620, 7
    %v3622 = vsub.s32 %v3619, %v3621
    %v3623 = vrot.slane %v3607, %v3622
    %v3625 = vunpack.c.l.s4 1966171168
    %v3626 = vunpack.c.0.s8 %v3625
    %v3627 = vlaneseq
    %v3628 = vshrl.u32 %v3627, 7
    %v3629 = vsub.s32 %v3626, %v3628
    %v3630 = vrot.slane %v3608, %v3629
    %v3632 = vunpack.c.l.s4 1966171168
    %v3633 = vunpack.c.0.s8 %v3632
    %v3634 = vlaneseq
    %v3635 = vshrl.u32 %v3634, 7
    %v3636 = vsub.s32 %v3633, %v3635
    %v3637 = vrot.slane %v3609, %v3636
    %v3638 = vcombine.low %v3616, %v3623
    %v3639 = vcombine.low %v3630, %v3637
    %v3641 = vunpack.c.l.s4 1966171168
    %v3642 = vunpack.c.0.s8 %v3641
    %v3643 = vlaneseq
    %v3644 = vshrl.u32 %v3643, 7
    %v3645 = vsub.s32 %v3642, %v3644
    %v3646 = vrot.slane %v3638, %v3645
    %v3648 = vunpack.c.l.s4 1966171168
    %v3649 = vunpack.c.0.s8 %v3648
    %v3650 = vlaneseq
    %v3651 = vshrl.u32 %v3650, 7
    %v3652 = vsub.s32 %v3649, %v3651
    %v3653 = vrot.slane %v3639, %v3652
    %v3654 = vcombine.low %v3646, %v3653
    %v3655 = vcombine.low %v2192, %v2196
    %v3656 = vcombine.low %v2200, %v2204
    %v3657 = vcombine.low %v2208, %v2212
    %v3658 = vcombine.low %v2216, %v2220
    %v3660 = vunpack.c.l.s4 1966171168
    %v3661 = vunpack.c.0.s8 %v3660
    %v3662 = vlaneseq
    %v3663 = vshrl.u32 %v3662, 7
    %v3664 = vsub.s32 %v3661, %v3663
    %v3665 = vrot.slane %v3655, %v3664
    %v3667 = vunpack.c.l.s4 1966171168
    %v3668 = vunpack.c.0.s8 %v3667
    %v3669 = vlaneseq
    %v3670 = vshrl.u32 %v3669, 7
    %v3671 = vsub.s32 %v3668, %v3670
    %v3672 = vrot.slane %v3656, %v3671
    %v3674 = vunpack.c.l.s4 1966171168
    %v3675 = vunpack.c.0.s8 %v3674
    %v3676 = vlaneseq
    %v3677 = vshrl.u32 %v3676, 7
    %v3678 = vsub.s32 %v3675, %v3677
    %v3679 = vrot.slane %v3657, %v3678
    %v3681 = vunpack.c.l.s4 1966171168
    %v3682 = vunpack.c.0.s8 %v3681
    %v3683 = vlaneseq
    %v3684 = vshrl.u32 %v3683, 7
    %v3685 = vsub.s32 %v3682, %v3684
    %v3686 = vrot.slane %v3658, %v3685
    %v3687 = vcombine.low %v3665, %v3672
    %v3688 = vcombine.low %v3679, %v3686
    %v3690 = vunpack.c.l.s4 1966171168
    %v3691 = vunpack.c.0.s8 %v3690
    %v3692 = vlaneseq
    %v3693 = vshrl.u32 %v3692, 7
    %v3694 = vsub.s32 %v3691, %v3693
    %v3695 = vrot.slane %v3687, %v3694
    %v3697 = vunpack.c.l.s4 1966171168
    %v3698 = vunpack.c.0.s8 %v3697
    %v3699 = vlaneseq
    %v3700 = vshrl.u32 %v3699, 7
    %v3701 = vsub.s32 %v3698, %v3700
    %v3702 = vrot.slane %v3688, %v3701
    %v3703 = vcombine.low %v3695, %v3702
    %v3704 = vcombine.low %v2224, %v2228
    %v3705 = vcombine.low %v2232, %v2236
    %v3706 = vcombine.low %v2240, %v2244
    %v3707 = vcombine.low %v2248, %v2252
    %v3709 = vunpack.c.l.s4 1966171168
    %v3710 = vunpack.c.0.s8 %v3709
    %v3711 = vlaneseq
    %v3712 = vshrl.u32 %v3711, 7
    %v3713 = vsub.s32 %v3710, %v3712
    %v3714 = vrot.slane %v3704, %v3713
    %v3716 = vunpack.c.l.s4 1966171168
    %v3717 = vunpack.c.0.s8 %v3716
    %v3718 = vlaneseq
    %v3719 = vshrl.u32 %v3718, 7
    %v3720 = vsub.s32 %v3717, %v3719
    %v3721 = vrot.slane %v3705, %v3720
    %v3723 = vunpack.c.l.s4 1966171168
    %v3724 = vunpack.c.0.s8 %v3723
    %v3725 = vlaneseq
    %v3726 = vshrl.u32 %v3725, 7
    %v3727 = vsub.s32 %v3724, %v3726
    %v3728 = vrot.slane %v3706, %v3727
    %v3730 = vunpack.c.l.s4 1966171168
    %v3731 = vunpack.c.0.s8 %v3730
    %v3732 = vlaneseq
    %v3733 = vshrl.u32 %v3732, 7
    %v3734 = vsub.s32 %v3731, %v3733
    %v3735 = vrot.slane %v3707, %v3734
    %v3736 = vcombine.low %v3714, %v3721
    %v3737 = vcombine.low %v3728, %v3735
    %v3739 = vunpack.c.l.s4 1966171168
    %v3740 = vunpack.c.0.s8 %v3739
    %v3741 = vlaneseq
    %v3742 = vshrl.u32 %v3741, 7
    %v3743 = vsub.s32 %v3740, %v3742
    %v3744 = vrot.slane %v3736, %v3743
    %v3746 = vunpack.c.l.s4 1966171168
    %v3747 = vunpack.c.0.s8 %v3746
    %v3748 = vlaneseq
    %v3749 = vshrl.u32 %v3748, 7
    %v3750 = vsub.s32 %v3747, %v3749
    %v3751 = vrot.slane %v3737, %v3750
    %v3752 = vcombine.low %v3744, %v3751
    %v3753 = vcombine.low %v2256, %v2260
    %v3754 = vcombine.low %v2264, %v2268
    %v3755 = vcombine.low %v2272, %v2276
    %v3756 = vcombine.low %v2280, %v2284
    %v3758 = vunpack.c.l.s4 1966171168
    %v3759 = vunpack.c.0.s8 %v3758
    %v3760 = vlaneseq
    %v3761 = vshrl.u32 %v3760, 7
    %v3762 = vsub.s32 %v3759, %v3761
    %v3763 = vrot.slane %v3753, %v3762
    %v3765 = vunpack.c.l.s4 1966171168
    %v3766 = vunpack.c.0.s8 %v3765
    %v3767 = vlaneseq
    %v3768 = vshrl.u32 %v3767, 7
    %v3769 = vsub.s32 %v3766, %v3768
    %v3770 = vrot.slane %v3754, %v3769
    %v3772 = vunpack.c.l.s4 1966171168
    %v3773 = vunpack.c.0.s8 %v3772
    %v3774 = vlaneseq
    %v3775 = vshrl.u32 %v3774, 7
    %v3776 = vsub.s32 %v3773, %v3775
    %v3777 = vrot.slane %v3755, %v3776
    %v3779 = vunpack.c.l.s4 1966171168
    %v3780 = vunpack.c.0.s8 %v3779
    %v3781 = vlaneseq
    %v3782 = vshrl.u32 %v3781, 7
    %v3783 = vsub.s32 %v3780, %v3782
    %v3784 = vrot.slane %v3756, %v3783
    %v3785 = vcombine.low %v3763, %v3770
    %v3786 = vcombine.low %v3777, %v3784
    %v3788 = vunpack.c.l.s4 1966171168
    %v3789 = vunpack.c.0.s8 %v3788
    %v3790 = vlaneseq
    %v3791 = vshrl.u32 %v3790, 7
    %v3792 = vsub.s32 %v3789, %v3791
    %v3793 = vrot.slane %v3785, %v3792
    %v3795 = vunpack.c.l.s4 1966171168
    %v3796 = vunpack.c.0.s8 %v3795
    %v3797 = vlaneseq
    %v3798 = vshrl.u32 %v3797, 7
    %v3799 = vsub.s32 %v3796, %v3798
    %v3800 = vrot.slane %v3786, %v3799
    %v3801 = vcombine.low %v3793, %v3800
    %v3802 = vcombine.low %v2288, %v2292
    %v3803 = vcombine.low %v2296, %v2300
    %v3804 = vcombine.low %v2304, %v2308
    %v3805 = vcombine.low %v2312, %v2316
    %v3807 = vunpack.c.l.s4 1966171168
    %v3808 = vunpack.c.0.s8 %v3807
    %v3809 = vlaneseq
    %v3810 = vshrl.u32 %v3809, 7
    %v3811 = vsub.s32 %v3808, %v3810
    %v3812 = vrot.slane %v3802, %v3811
    %v3814 = vunpack.c.l.s4 1966171168
    %v3815 = vunpack.c.0.s8 %v3814
    %v3816 = vlaneseq
    %v3817 = vshrl.u32 %v3816, 7
    %v3818 = vsub.s32 %v3815, %v3817
    %v3819 = vrot.slane %v3803, %v3818
    %v3821 = vunpack.c.l.s4 1966171168
    %v3822 = vunpack.c.0.s8 %v3821
    %v3823 = vlaneseq
    %v3824 = vshrl.u32 %v3823, 7
    %v3825 = vsub.s32 %v3822, %v3824
    %v3826 = vrot.slane %v3804, %v3825
    %v3828 = vunpack.c.l.s4 1966171168
    %v3829 = vunpack.c.0.s8 %v3828
    %v3830 = vlaneseq
    %v3831 = vshrl.u32 %v3830, 7
    %v3832 = vsub.s32 %v3829, %v3831
    %v3833 = vrot.slane %v3805, %v3832
    %v3834 = vcombine.low %v3812, %v3819
    %v3835 = vcombine.low %v3826, %v3833
    %v3837 = vunpack.c.l.s4 1966171168
    %v3838 = vunpack.c.0.s8 %v3837
    %v3839 = vlaneseq
    %v3840 = vshrl.u32 %v3839, 7
    %v3841 = vsub.s32 %v3838, %v3840
    %v3842 = vrot.slane %v3834, %v3841
    %v3844 = vunpack.c.l.s4 1966171168
    %v3845 = vunpack.c.0.s8 %v3844
    %v3846 = vlaneseq
    %v3847 = vshrl.u32 %v3846, 7
    %v3848 = vsub.s32 %v3845, %v3847
    %v3849 = vrot.slane %v3835, %v3848
    %v3850 = vcombine.low %v3842, %v3849
    %v3851 = vcombine.low %v2320, %v2324
    %v3852 = vcombine.low %v2328, %v2332
    %v3853 = vcombine.low %v2336, %v2340
    %v3854 = vcombine.low %v2344, %v2348
    %v3856 = vunpack.c.l.s4 1966171168
    %v3857 = vunpack.c.0.s8 %v3856
    %v3858 = vlaneseq
    %v3859 = vshrl.u32 %v3858, 7
    %v3860 = vsub.s32 %v3857, %v3859
    %v3861 = vrot.slane %v3851, %v3860
    %v3863 = vunpack.c.l.s4 1966171168
    %v3864 = vunpack.c.0.s8 %v3863
    %v3865 = vlaneseq
    %v3866 = vshrl.u32 %v3865, 7
    %v3867 = vsub.s32 %v3864, %v3866
    %v3868 = vrot.slane %v3852, %v3867
    %v3870 = vunpack.c.l.s4 1966171168
    %v3871 = vunpack.c.0.s8 %v3870
    %v3872 = vlaneseq
    %v3873 = vshrl.u32 %v3872, 7
    %v3874 = vsub.s32 %v3871, %v3873
    %v3875 = vrot.slane %v3853, %v3874
    %v3877 = vunpack.c.l.s4 1966171168
    %v3878 = vunpack.c.0.s8 %v3877
    %v3879 = vlaneseq
    %v3880 = vshrl.u32 %v3879, 7
    %v3881 = vsub.s32 %v3878, %v3880
    %v3882 = vrot.slane %v3854, %v3881
    %v3883 = vcombine.low %v3861, %v3868
    %v3884 = vcombine.low %v3875, %v3882
    %v3886 = vunpack.c.l.s4 1966171168
    %v3887 = vunpack.c.0.s8 %v3886
    %v3888 = vlaneseq
    %v3889 = vshrl.u32 %v3888, 7
    %v3890 = vsub.s32 %v3887, %v3889
    %v3891 = vrot.slane %v3883, %v3890
    %v3893 = vunpack.c.l.s4 1966171168
    %v3894 = vunpack.c.0.s8 %v3893
    %v3895 = vlaneseq
    %v3896 = vshrl.u32 %v3895, 7
    %v3897 = vsub.s32 %v3894, %v3896
    %v3898 = vrot.slane %v3884, %v3897
    %v3899 = vcombine.low %v3891, %v3898
    %v3900 = vcombine.low %v2352, %v2356
    %v3901 = vcombine.low %v2360, %v2364
    %v3902 = vcombine.low %v2368, %v2372
    %v3903 = vcombine.low %v2376, %v2380
    %v3905 = vunpack.c.l.s4 1966171168
    %v3906 = vunpack.c.0.s8 %v3905
    %v3907 = vlaneseq
    %v3908 = vshrl.u32 %v3907, 7
    %v3909 = vsub.s32 %v3906, %v3908
    %v3910 = vrot.slane %v3900, %v3909
    %v3912 = vunpack.c.l.s4 1966171168
    %v3913 = vunpack.c.0.s8 %v3912
    %v3914 = vlaneseq
    %v3915 = vshrl.u32 %v3914, 7
    %v3916 = vsub.s32 %v3913, %v3915
    %v3917 = vrot.slane %v3901, %v3916
    %v3919 = vunpack.c.l.s4 1966171168
    %v3920 = vunpack.c.0.s8 %v3919
    %v3921 = vlaneseq
    %v3922 = vshrl.u32 %v3921, 7
    %v3923 = vsub.s32 %v3920, %v3922
    %v3924 = vrot.slane %v3902, %v3923
    %v3926 = vunpack.c.l.s4 1966171168
    %v3927 = vunpack.c.0.s8 %v3926
    %v3928 = vlaneseq
    %v3929 = vshrl.u32 %v3928, 7
    %v3930 = vsub.s32 %v3927, %v3929
    %v3931 = vrot.slane %v3903, %v3930
    %v3932 = vcombine.low %v3910, %v3917
    %v3933 = vcombine.low %v3924, %v3931
    %v3935 = vunpack.c.l.s4 1966171168
    %v3936 = vunpack.c.0.s8 %v3935
    %v3937 = vlaneseq
    %v3938 = vshrl.u32 %v3937, 7
    %v3939 = vsub.s32 %v3936, %v3938
    %v3940 = vrot.slane %v3932, %v3939
    %v3942 = vunpack.c.l.s4 1966171168
    %v3943 = vunpack.c.0.s8 %v3942
    %v3944 = vlaneseq
    %v3945 = vshrl.u32 %v3944, 7
    %v3946 = vsub.s32 %v3943, %v3945
    %v3947 = vrot.slane %v3933, %v3946
    %v3948 = vcombine.low %v3940, %v3947
    %3949 = vset.pattern.permute.xlu0 0
    %3950 = vperm.xlu0 %3949, %v2429
    %v3951 = vpop.permute.xlu0 %3950
    %3952 = vset.pattern.permute.xlu0 0
    %3953 = vperm.xlu0 %3952, %v2478
    %v3954 = vpop.permute.xlu0 %3953
    %3955 = vset.pattern.permute.xlu0 0
    %3956 = vperm.xlu0 %3955, %v2527
    %v3957 = vpop.permute.xlu0 %3956
    %3958 = vset.pattern.permute.xlu0 0
    %3959 = vperm.xlu0 %3958, %v2576
    %v3960 = vpop.permute.xlu0 %3959
    %3961 = vset.pattern.permute.xlu0 0
    %3962 = vperm.xlu0 %3961, %v2625
    %v3963 = vpop.permute.xlu0 %3962
    %3964 = vset.pattern.permute.xlu0 0
    %3965 = vperm.xlu0 %3964, %v2674
    %v3966 = vpop.permute.xlu0 %3965
    %3967 = vset.pattern.permute.xlu0 0
    %3968 = vperm.xlu0 %3967, %v2723
    %v3969 = vpop.permute.xlu0 %3968
    %3970 = vset.pattern.permute.xlu0 0
    %3971 = vperm.xlu0 %3970, %v2772
    %v3972 = vpop.permute.xlu0 %3971
    %3973 = vset.pattern.permute.xlu0 0
    %3974 = vperm.xlu0 %3973, %v2821
    %v3975 = vpop.permute.xlu0 %3974
    %3976 = vset.pattern.permute.xlu0 0
    %3977 = vperm.xlu0 %3976, %v2870
    %v3978 = vpop.permute.xlu0 %3977
    %3979 = vset.pattern.permute.xlu0 0
    %3980 = vperm.xlu0 %3979, %v2919
    %v3981 = vpop.permute.xlu0 %3980
    %3982 = vset.pattern.permute.xlu0 0
    %3983 = vperm.xlu0 %3982, %v2968
    %v3984 = vpop.permute.xlu0 %3983
    %3985 = vset.pattern.permute.xlu0 0
    %3986 = vperm.xlu0 %3985, %v3017
    %v3987 = vpop.permute.xlu0 %3986
    %3988 = vset.pattern.permute.xlu0 0
    %3989 = vperm.xlu0 %3988, %v3066
    %v3990 = vpop.permute.xlu0 %3989
    %3991 = vset.pattern.permute.xlu0 0
    %3992 = vperm.xlu0 %3991, %v3115
    %v3993 = vpop.permute.xlu0 %3992
    %3994 = vset.pattern.permute.xlu0 0
    %3995 = vperm.xlu0 %3994, %v3164
    %v3996 = vpop.permute.xlu0 %3995
    %3997 = vset.pattern.permute.xlu0 0
    %3998 = vperm.xlu0 %3997, %v3213
    %v3999 = vpop.permute.xlu0 %3998
    %4000 = vset.pattern.permute.xlu0 0
    %4001 = vperm.xlu0 %4000, %v3262
    %v4002 = vpop.permute.xlu0 %4001
    %4003 = vset.pattern.permute.xlu0 0
    %4004 = vperm.xlu0 %4003, %v3311
    %v4005 = vpop.permute.xlu0 %4004
    %4006 = vset.pattern.permute.xlu0 0
    %4007 = vperm.xlu0 %4006, %v3360
    %v4008 = vpop.permute.xlu0 %4007
    %4009 = vset.pattern.permute.xlu0 0
    %4010 = vperm.xlu0 %4009, %v3409
    %v4011 = vpop.permute.xlu0 %4010
    %4012 = vset.pattern.permute.xlu0 0
    %4013 = vperm.xlu0 %4012, %v3458
    %v4014 = vpop.permute.xlu0 %4013
    %4015 = vset.pattern.permute.xlu0 0
    %4016 = vperm.xlu0 %4015, %v3507
    %v4017 = vpop.permute.xlu0 %4016
    %4018 = vset.pattern.permute.xlu0 0
    %4019 = vperm.xlu0 %4018, %v3556
    %v4020 = vpop.permute.xlu0 %4019
    %4021 = vset.pattern.permute.xlu0 0
    %4022 = vperm.xlu0 %4021, %v3605
    %v4023 = vpop.permute.xlu0 %4022
    %4024 = vset.pattern.permute.xlu0 0
    %4025 = vperm.xlu0 %4024, %v3654
    %v4026 = vpop.permute.xlu0 %4025
    %4027 = vset.pattern.permute.xlu0 0
    %4028 = vperm.xlu0 %4027, %v3703
    %v4029 = vpop.permute.xlu0 %4028
    %4030 = vset.pattern.permute.xlu0 0
    %4031 = vperm.xlu0 %4030, %v3752
    %v4032 = vpop.permute.xlu0 %4031
    %4033 = vset.pattern.permute.xlu0 0
    %4034 = vperm.xlu0 %4033, %v3801
    %v4035 = vpop.permute.xlu0 %4034
    %4036 = vset.pattern.permute.xlu0 0
    %4037 = vperm.xlu0 %4036, %v3850
    %v4038 = vpop.permute.xlu0 %4037
    %4039 = vset.pattern.permute.xlu0 0
    %4040 = vperm.xlu0 %4039, %v3899
    %v4041 = vpop.permute.xlu0 %4040
    %4042 = vset.pattern.permute.xlu0 0
    %4043 = vperm.xlu0 %4042, %v3948
    %v4044 = vpop.permute.xlu0 %4043
    %v4045 = vlaneseq
    %v4046 = vand.u32 %v4045, 127
    %v4047 = vlaneseq
    %v4048 = vshrl.u32 %v4047, 7
    %v4049 = vsub.s32 %v4046, %v4048
    %v4050 = vrot.slane %v3951, %v4049
    %v4051 = vadd.s32 %v4046, 4294967288
    %v4052 = vlaneseq
    %v4053 = vshrl.u32 %v4052, 7
    %v4054 = vsub.s32 %v4051, %v4053
    %v4055 = vrot.slane %v3954, %v4054
    %vm4056 = vcmask 130112
    %v4057 = vsel %vm4056, %v4055, %v4050
    %v4058 = vadd.s32 %v4046, 4294967280
    %v4059 = vlaneseq
    %v4060 = vshrl.u32 %v4059, 7
    %v4061 = vsub.s32 %v4058, %v4060
    %v4062 = vrot.slane %v3957, %v4061
    %vm4063 = vcmask 195712
    %v4064 = vsel %vm4063, %v4062, %v4057
    %v4065 = vadd.s32 %v4046, 4294967272
    %v4066 = vlaneseq
    %v4067 = vshrl.u32 %v4066, 7
    %v4068 = vsub.s32 %v4065, %v4067
    %v4069 = vrot.slane %v3960, %v4068
    %vm4070 = vcmask 261312
    %v4071 = vsel %vm4070, %v4069, %v4064
    %v4072 = vadd.s32 %v4046, 4294967264
    %v4073 = vlaneseq
    %v4074 = vshrl.u32 %v4073, 7
    %v4075 = vsub.s32 %v4072, %v4074
    %v4076 = vrot.slane %v3963, %v4075
    %vm4077 = vcmask 326912
    %v4078 = vsel %vm4077, %v4076, %v4071
    %v4079 = vadd.s32 %v4046, 4294967256
    %v4080 = vlaneseq
    %v4081 = vshrl.u32 %v4080, 7
    %v4082 = vsub.s32 %v4079, %v4081
    %v4083 = vrot.slane %v3966, %v4082
    %vm4084 = vcmask 392512
    %v4085 = vsel %vm4084, %v4083, %v4078
    %v4086 = vadd.s32 %v4046, 4294967248
    %v4087 = vlaneseq
    %v4088 = vshrl.u32 %v4087, 7
    %v4089 = vsub.s32 %v4086, %v4088
    %v4090 = vrot.slane %v3969, %v4089
    %vm4091 = vcmask 458112
    %v4092 = vsel %vm4091, %v4090, %v4085
    %v4093 = vadd.s32 %v4046, 4294967240
    %v4094 = vlaneseq
    %v4095 = vshrl.u32 %v4094, 7
    %v4096 = vsub.s32 %v4093, %v4095
    %v4097 = vrot.slane %v3972, %v4096
    %vm4098 = vcmask 523712
    %v4099 = vsel %vm4098, %v4097, %v4092
    %v4100 = vadd.s32 %v4046, 4294967232
    %v4101 = vlaneseq
    %v4102 = vshrl.u32 %v4101, 7
    %v4103 = vsub.s32 %v4100, %v4102
    %v4104 = vrot.slane %v3975, %v4103
    %vm4105 = vcmask 589312
    %v4106 = vsel %vm4105, %v4104, %v4099
    %v4107 = vadd.s32 %v4046, 4294967224
    %v4108 = vlaneseq
    %v4109 = vshrl.u32 %v4108, 7
    %v4110 = vsub.s32 %v4107, %v4109
    %v4111 = vrot.slane %v3978, %v4110
    %vm4112 = vcmask 654912
    %v4113 = vsel %vm4112, %v4111, %v4106
    %v4114 = vadd.s32 %v4046, 4294967216
    %v4115 = vlaneseq
    %v4116 = vshrl.u32 %v4115, 7
    %v4117 = vsub.s32 %v4114, %v4116
    %v4118 = vrot.slane %v3981, %v4117
    %vm4119 = vcmask 720512
    %v4120 = vsel %vm4119, %v4118, %v4113
    %v4121 = vadd.s32 %v4046, 4294967208
    %v4122 = vlaneseq
    %v4123 = vshrl.u32 %v4122, 7
    %v4124 = vsub.s32 %v4121, %v4123
    %v4125 = vrot.slane %v3984, %v4124
    %vm4126 = vcmask 786112
    %v4127 = vsel %vm4126, %v4125, %v4120
    %v4128 = vadd.s32 %v4046, 4294967200
    %v4129 = vlaneseq
    %v4130 = vshrl.u32 %v4129, 7
    %v4131 = vsub.s32 %v4128, %v4130
    %v4132 = vrot.slane %v3987, %v4131
    %vm4133 = vcmask 851712
    %v4134 = vsel %vm4133, %v4132, %v4127
    %v4135 = vadd.s32 %v4046, 4294967192
    %v4136 = vlaneseq
    %v4137 = vshrl.u32 %v4136, 7
    %v4138 = vsub.s32 %v4135, %v4137
    %v4139 = vrot.slane %v3990, %v4138
    %vm4140 = vcmask 917312
    %v4141 = vsel %vm4140, %v4139, %v4134
    %v4142 = vadd.s32 %v4046, 4294967184
    %v4143 = vlaneseq
    %v4144 = vshrl.u32 %v4143, 7
    %v4145 = vsub.s32 %v4142, %v4144
    %v4146 = vrot.slane %v3993, %v4145
    %vm4147 = vcmask 982912
    %v4148 = vsel %vm4147, %v4146, %v4141
    %v4149 = vadd.s32 %v4046, 4294967176
    %v4150 = vlaneseq
    %v4151 = vshrl.u32 %v4150, 7
    %v4152 = vsub.s32 %v4149, %v4151
    %v4153 = vrot.slane %v3996, %v4152
    %vm4154 = vcmask 1048512
    %v4155 = vsel %vm4154, %v4153, %v4148
    %v4156 = vlaneseq
    %v4157 = vshrl.u32 %v4156, 7
    %v4158 = vsub.s32 %v4046, %v4157
    %v4159 = vrot.slane %v3999, %v4158
    %v4160 = vlaneseq
    %v4161 = vshrl.u32 %v4160, 7
    %v4162 = vsub.s32 %v4051, %v4161
    %v4163 = vrot.slane %v4002, %v4162
    %v4164 = vsel %vm4056, %v4163, %v4159
    %v4165 = vlaneseq
    %v4166 = vshrl.u32 %v4165, 7
    %v4167 = vsub.s32 %v4058, %v4166
    %v4168 = vrot.slane %v4005, %v4167
    %v4169 = vsel %vm4063, %v4168, %v4164
    %v4170 = vlaneseq
    %v4171 = vshrl.u32 %v4170, 7
    %v4172 = vsub.s32 %v4065, %v4171
    %v4173 = vrot.slane %v4008, %v4172
    %v4174 = vsel %vm4070, %v4173, %v4169
    %v4175 = vlaneseq
    %v4176 = vshrl.u32 %v4175, 7
    %v4177 = vsub.s32 %v4072, %v4176
    %v4178 = vrot.slane %v4011, %v4177
    %v4179 = vsel %vm4077, %v4178, %v4174
    %v4180 = vlaneseq
    %v4181 = vshrl.u32 %v4180, 7
    %v4182 = vsub.s32 %v4079, %v4181
    %v4183 = vrot.slane %v4014, %v4182
    %v4184 = vsel %vm4084, %v4183, %v4179
    %v4185 = vlaneseq
    %v4186 = vshrl.u32 %v4185, 7
    %v4187 = vsub.s32 %v4086, %v4186
    %v4188 = vrot.slane %v4017, %v4187
    %v4189 = vsel %vm4091, %v4188, %v4184
    %v4190 = vlaneseq
    %v4191 = vshrl.u32 %v4190, 7
    %v4192 = vsub.s32 %v4093, %v4191
    %v4193 = vrot.slane %v4020, %v4192
    %v4194 = vsel %vm4098, %v4193, %v4189
    %v4195 = vlaneseq
    %v4196 = vshrl.u32 %v4195, 7
    %v4197 = vsub.s32 %v4100, %v4196
    %v4198 = vrot.slane %v4023, %v4197
    %v4199 = vsel %vm4105, %v4198, %v4194
    %v4200 = vlaneseq
    %v4201 = vshrl.u32 %v4200, 7
    %v4202 = vsub.s32 %v4107, %v4201
    %v4203 = vrot.slane %v4026, %v4202
    %v4204 = vsel %vm4112, %v4203, %v4199
    %v4205 = vlaneseq
    %v4206 = vshrl.u32 %v4205, 7
    %v4207 = vsub.s32 %v4114, %v4206
    %v4208 = vrot.slane %v4029, %v4207
    %v4209 = vsel %vm4119, %v4208, %v4204
    %v4210 = vlaneseq
    %v4211 = vshrl.u32 %v4210, 7
    %v4212 = vsub.s32 %v4121, %v4211
    %v4213 = vrot.slane %v4032, %v4212
    %v4214 = vsel %vm4126, %v4213, %v4209
    %v4215 = vlaneseq
    %v4216 = vshrl.u32 %v4215, 7
    %v4217 = vsub.s32 %v4128, %v4216
    %v4218 = vrot.slane %v4035, %v4217
    %v4219 = vsel %vm4133, %v4218, %v4214
    %v4220 = vlaneseq
    %v4221 = vshrl.u32 %v4220, 7
    %v4222 = vsub.s32 %v4135, %v4221
    %v4223 = vrot.slane %v4038, %v4222
    %v4224 = vsel %vm4140, %v4223, %v4219
    %v4225 = vlaneseq
    %v4226 = vshrl.u32 %v4225, 7
    %v4227 = vsub.s32 %v4142, %v4226
    %v4228 = vrot.slane %v4041, %v4227
    %v4229 = vsel %vm4147, %v4228, %v4224
    %v4230 = vlaneseq
    %v4231 = vshrl.u32 %v4230, 7
    %v4232 = vsub.s32 %v4149, %v4231
    %v4233 = vrot.slane %v4044, %v4232
    %v4234 = vsel %vm4154, %v4233, %v4229
    %v4235 = vcombine.low %v4155, %v4234
    %v4237 = vunpack.c.l.s4 1966171168
    %v4238 = vunpack.c.0.s8 %v4237
    %v4239 = vlaneseq
    %v4240 = vshrl.u32 %v4239, 7
    %v4241 = vsub.s32 %v4238, %v4240
    %v4242 = vrot.slane %v4235, %v4241
    %v4244 = vunpack.c.l.s4 1966171168
    %v4245 = vunpack.c.0.s8 %v4244
    %v4246 = vlaneseq
    %v4247 = vshrl.u32 %v4246, 7
    %v4248 = vsub.s32 %v4245, %v4247
    %v4249 = vrot.slane %v4242, %v4248
    %v4251 = vlaneseq
    %vm4252 = vcmp.ge.s32.totalorder %v4251, 0
    %vm4253 = vcmp.lt.s32.totalorder %v4251, 256
    %vm4254 = vmand %vm4252, %vm4253
    %4255 = vst.msk [vmem:[#allocation3] sm:$0x3] %vm4254, %v4249
    // Predicated region
    $region30: #{tpu_custom_call.1} parent=1 // pred_check
      _
    $region31: #{tpu_custom_call.1} parent=1 // pred_check_branch
      %4257 = sbr.rel (0) target = $region33
    $region32: #{tpu_custom_call.1} parent=1 // pred_region
      %s4259 = ssub.s32 32, 32
      %4260 = vsyncadd [#allocation4], %s4259
      %s4262 = sshll.u32 [#allocation3], 4
      %s4263 = int_to_ptr.vmem [resolvable:$true] %s4262
      %4265 = dma.vmem_to_hbm [thread:$0]  %s4263, 32, %s7, [#allocation4]
    $region33: #{tpu_custom_call.1} parent=1 // pred_fallthru
      _
    // Predicated region
    $region34: #{tpu_custom_call.1} parent=1 // pred_check
      _
    $region35: #{tpu_custom_call.1} parent=1 // pred_check_branch
      %4267 = sbr.rel (0) target = $region37
    $region36: #{tpu_custom_call.1} parent=1 // pred_region
      %4268 = dma.done [#allocation4], 32
    $region37: #{tpu_custom_call.1} parent=1 // pred_fallthru
      _
    %4269 = vsyncpa [#allocation4], 1

</llo_original>
